<compile_context>
chip_gen: v6e
topology: v6e:2x2x1
jax: 0.10.0
libtpu: 0.0.40
codegen_flags: <defaults>
</compile_context>

<pallas_src>
import functools

import jax
import jax.numpy as jnp
from jax.experimental import pallas as pl
from jax.experimental.pallas import tpu as pltpu

_LN_EPS = 1e-5
_MAX_TILE_M = 256     # row-tile cap (fits v7x's 64 MiB VMEM with resident MLP weights)
_NEG_INF = -1e30


def _round_up(x, m):
    return (x + m - 1) // m * m


def _pick_row_tile(m, max_tile=_MAX_TILE_M):
    """Largest multiple-of-8 divisor of m that is <= max_tile and (when possible)
    <= m // 2, so the 'parallel' grid has >= 2 steps (v7x has 2 TensorCores).
    m is expected to be a multiple of 8 (sequence length is padded up front)."""
    if m % 8 != 0:
        return m  # fallback: single full-extent block
    cap = min(max_tile, m // 2 if m >= 16 else m)
    best = 8
    t = 8
    while t <= cap:
        if m % t == 0:
            best = t
        t += 8
    return best


# ----------------------------------------------------------------------------
# Single-buffering probe for grid-invariant operands (pl.Buffered(1)).
# ----------------------------------------------------------------------------

def _probe_buffered1():
    try:
        def k(x_ref, w_ref, o_ref):
            o_ref[...] = x_ref[...] + w_ref[...]

        x = jnp.zeros((16, 128), jnp.float32)
        w = jnp.zeros((8, 128), jnp.float32)
        out = pl.pallas_call(
            k,
            out_shape=jax.ShapeDtypeStruct((16, 128), jnp.float32),
            grid=(2,),
            in_specs=[
                pl.BlockSpec((8, 128), lambda i: (i, 0)),
                pl.BlockSpec((8, 128), lambda i: (0, 0),
                             pipeline_mode=pl.Buffered(1)),
            ],
            out_specs=pl.BlockSpec((8, 128), lambda i: (i, 0)),
        )(x, w)
        jax.block_until_ready(out)
        return True
    except Exception:
        return False


_BUFFERED1_OK = _probe_buffered1()


def _resident_spec(shape, index_map):
    """BlockSpec for a grid-invariant operand; single-buffered when supported."""
    if _BUFFERED1_OK:
        return pl.BlockSpec(shape, index_map, pipeline_mode=pl.Buffered(1))
    return pl.BlockSpec(shape, index_map)


def _compiler_params(*, tiled_bytes, resident_bytes, extra_bytes=0):
    """Explicit scoped-VMEM limit sized from the actual tile + weight footprint
    (generous margin; never below 8 MiB, never above 40 MiB so it is safe on
    v5e/v6e/v7x alike)."""
    res_mult = 1 if _BUFFERED1_OK else 2
    need = 2 * tiled_bytes + res_mult * resident_bytes + extra_bytes
    limit = int(min(max(4 * need, 8 << 20), 40 << 20))
    return pltpu.CompilerParams(dimension_semantics=("parallel",),
                                vmem_limit_bytes=limit)


def _layernorm_f32(x, g, b):
    x = x.astype(jnp.float32)
    mean = jnp.mean(x, axis=-1, keepdims=True)
    var = jnp.mean(jnp.square(x - mean), axis=-1, keepdims=True)
    return (x - mean) * jax.lax.rsqrt(var + _LN_EPS) * g + b


# ----------------------------------------------------------------------------
# Pallas kernels
# ----------------------------------------------------------------------------

def _patch_embed_kernel(x_ref, w_ref, o_ref):
    # x: (tm, Kp) bf16, w: (Kp, D) bf16 -> o: (tm, D) bf16 (f32 accumulation)
    o_ref[...] = jnp.dot(x_ref[...], w_ref[...],
                         preferred_element_type=jnp.float32).astype(o_ref.dtype)


def _pos_ln_kernel(tok_ref, pos_ref, g_ref, b_ref, o_ref):
    # tokens: (1, Lp, D) bf16; pos: (Lp, D) f32 -> LayerNorm(tokens + pos) f32
    t = tok_ref[0].astype(jnp.float32) + pos_ref[...]
    o_ref[0] = _layernorm_f32(t, g_ref[...], b_ref[...])


def _ln_qkv_kernel(x_ref, g_ref, b_ref, w_ref, wb_ref, o_ref):
    # qkv = LN(x) @ W_qkv + b, stored bf16
    xn = _layernorm_f32(x_ref[...], g_ref[...], b_ref[...])
    y = jnp.dot(xn.astype(jnp.bfloat16), w_ref[...],
                preferred_element_type=jnp.float32) + wb_ref[...]
    o_ref[...] = y.astype(o_ref.dtype)


def _attn_block_kernel(qkv_ref, wout_ref, bout_ref, res_ref, o_ref, *,
                       heads, head_dim, seq_len, scale):
    # One batch element: all heads, softmax attention, head-merge (lane-dense),
    # out_proj + bias + residual add — all fused.
    qkv = qkv_ref[0]                         # (Lp, 3D) bf16
    l_pad = qkv.shape[0]
    d = heads * head_dim

    head_outs = []
    for h in range(heads):                   # static unroll (heads is small)
        qh = qkv[:, h * head_dim:(h + 1) * head_dim]
        kh = qkv[:, d + h * head_dim: d + (h + 1) * head_dim]
        vh = qkv[:, 2 * d + h * head_dim: 2 * d + (h + 1) * head_dim]
        s = jax.lax.dot_general(qh, kh, (((1,), (1,)), ((), ())),
                                preferred_element_type=jnp.float32) * scale
        if seq_len < l_pad:                  # mask padded key columns
            col = jax.lax.broadcasted_iota(jnp.int32, s.shape, 1)
            s = jnp.where(col < seq_len, s, _NEG_INF)
        m = jnp.max(s, axis=-1, keepdims=True)
        p = jnp.exp(s - m)
        # approx reciprocal (EUP); switch approx=False if bit-parity is needed
        p = p * pl.reciprocal(jnp.sum(p, axis=-1, keepdims=True), approx=True)
        head_outs.append(jnp.dot(p.astype(jnp.bfloat16), vh,
                                 preferred_element_type=jnp.float32))

    o = jnp.concatenate(head_outs, axis=-1)  # (Lp, D) f32, lane-dense
    y = jnp.dot(o.astype(jnp.bfloat16), wout_ref[...],
                preferred_element_type=jnp.float32)
    o_ref[0] = y + bout_ref[...] + res_ref[0]


def _mlp_block_kernel(x_ref, g_ref, b_ref, wfc_ref, bfc_ref, wpr_ref, bpr_ref,
                      o_ref):
    # x + c_proj(QuickGELU(c_fc(LN(x)))); 4*width hidden stays in VMEM/regs.
    x = x_ref[...]
    xn = _layernorm_f32(x, g_ref[...], b_ref[...])
    h = jnp.dot(xn.astype(jnp.bfloat16), wfc_ref[...],
                preferred_element_type=jnp.float32) + bfc_ref[...]
    h = h * jax.nn.sigmoid(1.702 * h)        # QuickGELU, f32 (v5e-safe)
    y = jnp.dot(h.astype(jnp.bfloat16), wpr_ref[...],
                preferred_element_type=jnp.float32) + bpr_ref[...]
    o_ref[...] = x + y


def _head_kernel(x_ref, g_ref, b_ref, w_ref, o_ref):
    # ln_post(CLS) @ proj (no bias in the PyTorch module)
    xn = _layernorm_f32(x_ref[...], g_ref[...], b_ref[...])
    o_ref[...] = jnp.dot(xn.astype(jnp.bfloat16), w_ref[...],
                         preferred_element_type=jnp.float32)


# ----------------------------------------------------------------------------
# Pallas wrappers
# ----------------------------------------------------------------------------

def patch_embed(patches_bf16, w_ko):
    m, kp = patches_bf16.shape
    d = w_ko.shape[1]
    m8 = _round_up(m, 8)
    if m8 != m:
        patches_bf16 = jnp.pad(patches_bf16, ((0, m8 - m), (0, 0)))
    tm = _pick_row_tile(m8)
    out = pl.pallas_call(
        _patch_embed_kernel,
        out_shape=jax.ShapeDtypeStruct((m8, d), jnp.bfloat16),
        grid=(m8 // tm,),
        in_specs=[pl.BlockSpec((tm, kp), lambda i: (i, 0)),
                  _resident_spec((kp, d), lambda i: (0, 0))],
        out_specs=pl.BlockSpec((tm, d), lambda i: (i, 0)),
        compiler_params=_compiler_params(
            tiled_bytes=tm * kp * 2 + tm * d * 2,
            resident_bytes=kp * d * 2),
    )(patches_bf16, w_ko)
    return out[:m] if m8 != m else out


def add_pos_ln_pre(tokens_bf16, pos, g, b):
    n, l, d = tokens_bf16.shape
    return pl.pallas_call(
        _pos_ln_kernel,
        out_shape=jax.ShapeDtypeStruct((n, l, d), jnp.float32),
        grid=(n,),
        in_specs=[pl.BlockSpec((1, l, d), lambda i: (i, 0, 0)),
                  _resident_spec((l, d), lambda i: (0, 0)),
                  _resident_spec((1, d), lambda i: (0, 0)),
                  _resident_spec((1, d), lambda i: (0, 0))],
        out_specs=pl.BlockSpec((1, l, d), lambda i: (i, 0, 0)),
        compiler_params=_compiler_params(
            tiled_bytes=l * d * 2 + l * d * 4,
            resident_bytes=l * d * 4 + 2 * d * 4),
    )(tokens_bf16, pos, g.reshape(1, d), b.reshape(1, d))


def ln_qkv(x, g, b, w_ko, bias):
    m, d = x.shape
    o = w_ko.shape[1]
    tm = _pick_row_tile(m)
    return pl.pallas_call(
        _ln_qkv_kernel,
        out_shape=jax.ShapeDtypeStruct((m, o), jnp.bfloat16),
        grid=(m // tm,),
        in_specs=[pl.BlockSpec((tm, d), lambda i: (i, 0)),
                  _resident_spec((1, d), lambda i: (0, 0)),
                  _resident_spec((1, d), lambda i: (0, 0)),
                  _resident_spec((d, o), lambda i: (0, 0)),
                  _resident_spec((1, o), lambda i: (0, 0))],
        out_specs=pl.BlockSpec((tm, o), lambda i: (i, 0)),
        compiler_params=_compiler_params(
            tiled_bytes=tm * d * 4 + tm * o * 2,
            resident_bytes=d * o * 2 + 2 * d * 4 + o * 4),
    )(x, g.reshape(1, d), b.reshape(1, d), w_ko, bias.reshape(1, o))


def attention_block(qkv, resid, w_out, b_out, *, heads, seq_len, scale):
    n, l, d3 = qkv.shape
    d = d3 // 3
    hd = d // heads
    return pl.pallas_call(
        functools.partial(_attn_block_kernel, heads=heads, head_dim=hd,
                          seq_len=seq_len, scale=scale),
        out_shape=jax.ShapeDtypeStruct((n, l, d), jnp.float32),
        grid=(n,),
        in_specs=[pl.BlockSpec((1, l, d3), lambda i: (i, 0, 0)),
                  _resident_spec((d, d), lambda i: (0, 0)),
                  _resident_spec((1, d), lambda i: (0, 0)),
                  pl.BlockSpec((1, l, d), lambda i: (i, 0, 0))],
        out_specs=pl.BlockSpec((1, l, d), lambda i: (i, 0, 0)),
        compiler_params=_compiler_params(
            tiled_bytes=l * d3 * 2 + 2 * l * d * 4,
            resident_bytes=d * d * 2 + d * 4,
            extra_bytes=heads * l * l * 4 + l * d * 4),
    )(qkv, w_out, b_out.reshape(1, d), resid)


def mlp_block(x, g, b, w_fc, b_fc, w_pr, b_pr):
    m, d = x.shape
    dh = w_fc.shape[1]
    tm = _pick_row_tile(m)
    return pl.pallas_call(
        _mlp_block_kernel,
        out_shape=jax.ShapeDtypeStruct((m, d), jnp.float32),
        grid=(m // tm,),
        in_specs=[pl.BlockSpec((tm, d), lambda i: (i, 0)),
                  _resident_spec((1, d), lambda i: (0, 0)),
                  _resident_spec((1, d), lambda i: (0, 0)),
                  _resident_spec((d, dh), lambda i: (0, 0)),
                  _resident_spec((1, dh), lambda i: (0, 0)),
                  _resident_spec((dh, d), lambda i: (0, 0)),
                  _resident_spec((1, d), lambda i: (0, 0))],
        out_specs=pl.BlockSpec((tm, d), lambda i: (i, 0)),
        compiler_params=_compiler_params(
            tiled_bytes=2 * tm * d * 4,
            resident_bytes=d * dh * 2 + dh * d * 2 + (3 * d + dh) * 4,
            extra_bytes=tm * dh * 4),
    )(x, g.reshape(1, d), b.reshape(1, d), w_fc, b_fc.reshape(1, dh),
      w_pr, b_pr.reshape(1, d))


def head_proj(cls_rows, g, b, w_proj):
    n, d = cls_rows.shape
    o = w_proj.shape[1]
    return pl.pallas_call(
        _head_kernel,
        out_shape=jax.ShapeDtypeStruct((n, o), jnp.float32),
        grid=(1,),
        in_specs=[pl.BlockSpec((n, d), lambda i: (0, 0)),
                  _resident_spec((1, d), lambda i: (0, 0)),
                  _resident_spec((1, d), lambda i: (0, 0)),
                  _resident_spec((d, o), lambda i: (0, 0))],
        out_specs=pl.BlockSpec((n, o), lambda i: (0, 0)),
        compiler_params=_compiler_params(
            tiled_bytes=n * d * 4 + n * o * 4,
            resident_bytes=d * o * 2 + 2 * d * 4),
    )(cls_rows, g.reshape(1, d), b.reshape(1, d), w_proj)


# ----------------------------------------------------------------------------
# Model forward (tiny glue in XLA; all matmul-bearing compute in Pallas)
# ----------------------------------------------------------------------------

def residual_attention_block(xf, n, l_pad, seq_len, heads, lp):
    d = xf.shape[1]
    hd = d // heads
    qkv = ln_qkv(xf, lp["ln1_g"], lp["ln1_b"], lp["qkv_w"], lp["qkv_b"])  # bf16
    xf = attention_block(qkv.reshape(n, l_pad, 3 * d), xf.reshape(n, l_pad, d),
                         lp["out_w"], lp["out_b"],
                         heads=heads, seq_len=seq_len, scale=float(hd) ** -0.5)
    xf = xf.reshape(n * l_pad, d)
    xf = mlp_block(xf, lp["ln2_g"], lp["ln2_b"], lp["fc_w"], lp["fc_b"],
                   lp["cproj_w"], lp["cproj_b"])
    return xf


def visual_transformer_forward(params, x_nchw, *, patch_size, heads):
    p = params
    width = p["ln_pre_g"].shape[0]
    n, c, hh, ww = x_nchw.shape
    gh, gw = hh // patch_size, ww // patch_size
    num_patches = gh * gw
    seq_len = num_patches + 1
    l_pad = p["pos"].shape[0]               # padded at init to a multiple of 8
    kp = c * patch_size * patch_size
    kp_pad = p["conv_w_ko"].shape[0]

    # non-overlapping patchify (pure reshape/permute, no im2col duplication)
    x = x_nchw.astype(jnp.float32)
    patches = x.reshape(n, c, gh, patch_size, gw, patch_size)
    patches = jnp.transpose(patches, (0, 2, 4, 1, 3, 5)).reshape(n * num_patches, kp)
    if kp_pad != kp:
        patches = jnp.pad(patches, ((0, 0), (0, kp_pad - kp)))
    patches = patches.astype(jnp.bfloat16)

    emb = patch_embed(patches, p["conv_w_ko"]).reshape(n, num_patches, width)
    cls = jnp.broadcast_to(p["cls"].astype(jnp.bfloat16).reshape(1, 1, width),
                           (n, 1, width))
    tokens = jnp.concatenate([cls, emb], axis=1)            # (n, seq_len, D) bf16
    if l_pad != seq_len:                                    # pad sequence ONCE
        tokens = jnp.pad(tokens, ((0, 0), (0, l_pad - seq_len), (0, 0)))

    xres = add_pos_ln_pre(tokens, p["pos"], p["ln_pre_g"], p["ln_pre_b"])
    xf = xres.reshape(n * l_pad, width)                     # f32 residual stream
    for lp in p["blocks"]:
        xf = residual_attention_block(xf, n, l_pad, seq_len, heads, lp)

    cls_tok = xf.reshape(n, l_pad, width)[:, 0, :]          # CLS rows only
    return head_proj(cls_tok, p["ln_post_g"], p["ln_post_b"], p["proj_w"])


# ----------------------------------------------------------------------------
# Deterministic parameter init (shapes follow the PyTorch __init__; weights are
# pre-transposed to (K, O) bf16; conv K and pos sequence padded once here)
# ----------------------------------------------------------------------------

def init_visual_transformer_params(key, input_resolution, patch_size, width,
                                   layers, heads, output_dim):
    keys = iter(jax.random.split(key, 256))
    scale = width ** -0.5

    def ln_params(d):
        g = 1.0 + 0.1 * jax.random.normal(next(keys), (d,), jnp.float32)
        b = 0.1 * jax.random.normal(next(keys), (d,), jnp.float32)
        return g, b

    def linear_ko(i, o):
        w = jax.random.normal(next(keys), (o, i), jnp.float32) / jnp.sqrt(i)
        b = 0.02 * jax.random.normal(next(keys), (o,), jnp.float32)
        return w.T.astype(jnp.bfloat16), b        # (K, O) bf16, bias f32

    kp = 3 * patch_size * patch_size
    kp_pad = _round_up(kp, 128)
    seq_len = (input_resolution // patch_size) ** 2 + 1
    l_pad = _round_up(seq_len, 8)

    conv_w = (jax.random.normal(next(keys), (width, 3, patch_size, patch_size),
                                jnp.float32) / jnp.sqrt(kp))
    conv_ko = jnp.pad(conv_w.reshape(width, kp).T, ((0, kp_pad - kp), (0, 0)))
    pos = scale * jax.random.normal(next(keys), (seq_len, width), jnp.float32)
    pos = jnp.pad(pos, ((0, l_pad - seq_len), (0, 0)))

    p = {"conv_w_ko": conv_ko.astype(jnp.bfloat16),
         "cls": scale * jax.random.normal(next(keys), (width,), jnp.float32),
         "pos": pos}
    p["ln_pre_g"], p["ln_pre_b"] = ln_params(width)

    blocks = []
    for _ in range(layers):
        lp = {}
        lp["ln1_g"], lp["ln1_b"] = ln_params(width)
        lp["qkv_w"], lp["qkv_b"] = linear_ko(width, 3 * width)
        lp["out_w"], lp["out_b"] = linear_ko(width, width)
        lp["ln2_g"], lp["ln2_b"] = ln_params(width)
        lp["fc_w"], lp["fc_b"] = linear_ko(width, 4 * width)
        lp["cproj_w"], lp["cproj_b"] = linear_ko(4 * width, width)
        blocks.append(lp)
    p["blocks"] = blocks

    p["ln_post_g"], p["ln_post_b"] = ln_params(width)
    p["proj_w"] = (scale * jax.random.normal(next(keys), (width, output_dim),
                                             jnp.float32)).astype(jnp.bfloat16)
    return p


# ----------------------------------------------------------------------------

if __name__ == "__main__":
    key = jax.random.PRNGKey(0)
    pkey, xkey = jax.random.split(key)

    # small, lane-dense config:
    # VisualTransformer(input_resolution=32, patch_size=8, width=128,
    #                   layers=2, heads=4, output_dim=128)
    input_resolution, patch_size = 32, 8
    width, layers, heads, output_dim = 128, 2, 4, 128
    batch = 2

    params = init_visual_transformer_params(pkey, input_resolution, patch_size,
                                             width, layers, heads, output_dim)
    x = jax.random.normal(xkey, (batch, 3, input_resolution, input_resolution),
                          jnp.float32)

    fwd = jax.jit(functools.partial(visual_transformer_forward,
                                    patch_size=patch_size, heads=heads))
    out = fwd(params, x)
    out = jax.block_until_ready(out)

    assert out.shape == (batch, output_dim), out.shape
    assert bool(jnp.all(jnp.isfinite(out)))
    print("KERNEL_OK")
</pallas_src>

<mosaic_0001>
module attributes {stable_mosaic.version = 11 : i64} {
  func.func @k(%arg0: i32, %arg1: memref<8x128xf32, #tpu.memory_space<vmem>>, %arg2: memref<8x128xf32, #tpu.memory_space<vmem>>, %arg3: memref<8x128xf32, #tpu.memory_space<vmem>>) attributes {dimension_semantics = [#tpu.dimension_semantics<arbitrary>], iteration_bounds = array<i64: 2>, scalar_prefetch = 0 : i64, scratch_operands = 0 : i64, tpu.core_type = #tpu.core_type<tc>, window_params = [{transform_indices = @transform_0, window_bounds = array<i64: 8, 128>}, {pipeline_mode = #tpu.pipeline_mode<synchronous>, transform_indices = @transform_1, window_bounds = array<i64: 8, 128>}, {transform_indices = @transform_2, window_bounds = array<i64: 8, 128>}]} {
    %c0 = arith.constant 0 : index
    %c0_0 = arith.constant 0 : index
    %0 = vector.load %arg1[%c0, %c0_0] : memref<8x128xf32, #tpu.memory_space<vmem>>, vector<8x128xf32>
    %c0_1 = arith.constant 0 : index
    %c0_2 = arith.constant 0 : index
    %1 = vector.load %arg2[%c0_1, %c0_2] : memref<8x128xf32, #tpu.memory_space<vmem>>, vector<8x128xf32>
    %2 = arith.addf %0, %1 : vector<8x128xf32>
    %c0_3 = arith.constant 0 : index
    %c0_4 = arith.constant 0 : index
    %3 = vector.load %arg3[%c0_3, %c0_4] : memref<8x128xf32, #tpu.memory_space<vmem>>, vector<8x128xf32>
    tpu.vector_store %arg3[%c0_3, %c0_4], %2 {strides = array<i32>} : memref<8x128xf32, #tpu.memory_space<vmem>>, vector<8x128xf32>,
    return
  }
  func.func @transform_0(%arg0: i32) -> (i32, i32) {
    %c0_i32 = arith.constant 0 : i32
    %c0_i32_0 = arith.constant 0 : i32
    return %arg0, %c0_i32 : i32, i32
  }
  func.func @transform_1(%arg0: i32) -> (i32, i32) {
    %c0_i32 = arith.constant 0 : i32
    %c0_i32_0 = arith.constant 0 : i32
    %c0_i32_1 = arith.constant 0 : i32
    return %c0_i32, %c0_i32_0 : i32, i32
  }
  func.func @transform_2(%arg0: i32) -> (i32, i32) {
    %c0_i32 = arith.constant 0 : i32
    %c0_i32_0 = arith.constant 0 : i32
    return %arg0, %c0_i32 : i32, i32
  }
}

module attributes {stable_mosaic.version = 11 : i64} {
  func.func @_patch_embed_kernel(%arg0: i32, %arg1: memref<16x256xbf16, #tpu.memory_space<vmem>>, %arg2: memref<256x128xbf16, #tpu.memory_space<vmem>>, %arg3: memref<16x128xbf16, #tpu.memory_space<vmem>>) attributes {dimension_semantics = [#tpu.dimension_semantics<parallel>], iteration_bounds = array<i64: 2>, scalar_prefetch = 0 : i64, scratch_operands = 0 : i64, tpu.core_type = #tpu.core_type<tc>, window_params = [{transform_indices = @transform_0, window_bounds = array<i64: 16, 256>}, {pipeline_mode = #tpu.pipeline_mode<synchronous>, transform_indices = @transform_1, window_bounds = array<i64: 256, 128>}, {transform_indices = @transform_2, window_bounds = array<i64: 16, 128>}]} {
    %c0 = arith.constant 0 : index
    %c0_0 = arith.constant 0 : index
    %0 = vector.load %arg1[%c0, %c0_0] : memref<16x256xbf16, #tpu.memory_space<vmem>>, vector<16x256xbf16>
    %c0_1 = arith.constant 0 : index
    %c0_2 = arith.constant 0 : index
    %1 = vector.load %arg2[%c0_1, %c0_2] : memref<256x128xbf16, #tpu.memory_space<vmem>>, vector<256x128xbf16>
    %cst = arith.constant dense<0.000000e+00> : vector<16x128xf32>
    %2 = tpu.matmul %0, %1, %cst {dimension_numbers = #tpu.dot_dimension_numbers<[1], [0], [0], [1], [0, 0, 1, 1], [], []>} : vector<16x256xbf16>, vector<256x128xbf16>, vector<16x128xf32> -> vector<16x128xf32>
    %3 = arith.truncf %2 : vector<16x128xf32> to vector<16x128xbf16>
    %c0_3 = arith.constant 0 : index
    %c0_4 = arith.constant 0 : index
    %4 = vector.load %arg3[%c0_3, %c0_4] : memref<16x128xbf16, #tpu.memory_space<vmem>>, vector<16x128xbf16>
    tpu.vector_store %arg3[%c0_3, %c0_4], %3 {strides = array<i32>} : memref<16x128xbf16, #tpu.memory_space<vmem>>, vector<16x128xbf16>,
    return
  }
  func.func @transform_0(%arg0: i32) -> (i32, i32) {
    %c0_i32 = arith.constant 0 : i32
    %c0_i32_0 = arith.constant 0 : i32
    return %arg0, %c0_i32 : i32, i32
  }
  func.func @transform_1(%arg0: i32) -> (i32, i32) {
    %c0_i32 = arith.constant 0 : i32
    %c0_i32_0 = arith.constant 0 : i32
    %c0_i32_1 = arith.constant 0 : i32
    return %c0_i32, %c0_i32_0 : i32, i32
  }
  func.func @transform_2(%arg0: i32) -> (i32, i32) {
    %c0_i32 = arith.constant 0 : i32
    %c0_i32_0 = arith.constant 0 : i32
    return %arg0, %c0_i32 : i32, i32
  }
}

module attributes {stable_mosaic.version = 11 : i64} {
  func.func @_pos_ln_kernel(%arg0: i32, %arg1: memref<1x24x128xbf16, #tpu.memory_space<vmem>>, %arg2: memref<24x128xf32, #tpu.memory_space<vmem>>, %arg3: memref<1x128xf32, #tpu.memory_space<vmem>>, %arg4: memref<1x128xf32, #tpu.memory_space<vmem>>, %arg5: memref<1x24x128xf32, #tpu.memory_space<vmem>>) attributes {dimension_semantics = [#tpu.dimension_semantics<parallel>], iteration_bounds = array<i64: 2>, scalar_prefetch = 0 : i64, scratch_operands = 0 : i64, tpu.core_type = #tpu.core_type<tc>, window_params = [{transform_indices = @transform_0, window_bounds = array<i64: 1, 24, 128>}, {pipeline_mode = #tpu.pipeline_mode<synchronous>, transform_indices = @transform_1, window_bounds = array<i64: 24, 128>}, {pipeline_mode = #tpu.pipeline_mode<synchronous>, transform_indices = @transform_2, window_bounds = array<i64: 1, 128>}, {pipeline_mode = #tpu.pipeline_mode<synchronous>, transform_indices = @transform_3, window_bounds = array<i64: 1, 128>}, {transform_indices = @transform_4, window_bounds = array<i64: 1, 24, 128>}]} {
    %c0 = arith.constant 0 : index
    %c0_0 = arith.constant 0 : index
    %c0_1 = arith.constant 0 : index
    %0 = vector.load %arg1[%c0, %c0_0, %c0_1] : memref<1x24x128xbf16, #tpu.memory_space<vmem>>, vector<1x24x128xbf16>
    %1 = vector.shape_cast %0 : vector<1x24x128xbf16> to vector<24x128xbf16>
    %2 = arith.extf %1 : vector<24x128xbf16> to vector<24x128xf32>
    %c0_2 = arith.constant 0 : index
    %c0_3 = arith.constant 0 : index
    %3 = vector.load %arg2[%c0_2, %c0_3] : memref<24x128xf32, #tpu.memory_space<vmem>>, vector<24x128xf32>
    %4 = arith.addf %2, %3 : vector<24x128xf32>
    %c0_4 = arith.constant 0 : index
    %c0_5 = arith.constant 0 : index
    %5 = vector.load %arg3[%c0_4, %c0_5] : memref<1x128xf32, #tpu.memory_space<vmem>>, vector<1x128xf32>
    %c0_6 = arith.constant 0 : index
    %c0_7 = arith.constant 0 : index
    %6 = vector.load %arg4[%c0_6, %c0_7] : memref<1x128xf32, #tpu.memory_space<vmem>>, vector<1x128xf32>
    %cst = arith.constant dense<0.000000e+00> : vector<24xf32>
    %7 = vector.multi_reduction <add>, %4, %cst [1] : vector<24x128xf32> to vector<24xf32>
    %8 = vector.shape_cast %7 : vector<24xf32> to vector<24x1xf32>
    %cst_8 = arith.constant 1.280000e+02 : f32
    %9 = vector.broadcast %cst_8 : f32 to vector<24x1xf32>
    %10 = arith.divf %8, %9 : vector<24x1xf32>
    %11 = vector.broadcast %10 : vector<24x1xf32> to vector<24x128xf32>
    %12 = arith.subf %4, %11 : vector<24x128xf32>
    %13 = arith.mulf %12, %12 : vector<24x128xf32>
    %cst_9 = arith.constant dense<0.000000e+00> : vector<24xf32>
    %14 = vector.multi_reduction <add>, %13, %cst_9 [1] : vector<24x128xf32> to vector<24xf32>
    %15 = vector.shape_cast %14 : vector<24xf32> to vector<24x1xf32>
    %cst_10 = arith.constant 1.280000e+02 : f32
    %16 = vector.broadcast %cst_10 : f32 to vector<24x1xf32>
    %17 = arith.divf %15, %16 : vector<24x1xf32>
    %18 = vector.broadcast %10 : vector<24x1xf32> to vector<24x128xf32>
    %19 = arith.subf %4, %18 : vector<24x128xf32>
    %cst_11 = arith.constant 9.99999974E-6 : f32
    %20 = vector.broadcast %cst_11 : f32 to vector<24x1xf32>
    %21 = arith.addf %17, %20 : vector<24x1xf32>
    %22 = math.rsqrt %21 : vector<24x1xf32>
    %23 = vector.broadcast %22 : vector<24x1xf32> to vector<24x128xf32>
    %24 = arith.mulf %19, %23 : vector<24x128xf32>
    %25 = vector.broadcast %5 : vector<1x128xf32> to vector<24x128xf32>
    %26 = arith.mulf %24, %25 : vector<24x128xf32>
    %27 = vector.broadcast %6 : vector<1x128xf32> to vector<24x128xf32>
    %28 = arith.addf %26, %27 : vector<24x128xf32>
    %c0_12 = arith.constant 0 : index
    %c0_13 = arith.constant 0 : index
    %c0_14 = arith.constant 0 : index
    %29 = vector.load %arg5[%c0_12, %c0_13, %c0_14] : memref<1x24x128xf32, #tpu.memory_space<vmem>>, vector<1x24x128xf32>
    %30 = vector.shape_cast %29 : vector<1x24x128xf32> to vector<24x128xf32>
    %31 = vector.shape_cast %28 : vector<24x128xf32> to vector<1x24x128xf32>
    tpu.vector_store %arg5[%c0_12, %c0_13, %c0_14], %31 {strides = array<i32>} : memref<1x24x128xf32, #tpu.memory_space<vmem>>, vector<1x24x128xf32>,
    return
  }
  func.func @transform_0(%arg0: i32) -> (i32, i32, i32) {
    %c0_i32 = arith.constant 0 : i32
    %c0_i32_0 = arith.constant 0 : i32
    %c0_i32_1 = arith.constant 0 : i32
    return %arg0, %c0_i32, %c0_i32_0 : i32, i32, i32
  }
  func.func @transform_1(%arg0: i32) -> (i32, i32) {
    %c0_i32 = arith.constant 0 : i32
    %c0_i32_0 = arith.constant 0 : i32
    %c0_i32_1 = arith.constant 0 : i32
    return %c0_i32, %c0_i32_0 : i32, i32
  }
  func.func @transform_2(%arg0: i32) -> (i32, i32) {
    %c0_i32 = arith.constant 0 : i32
    %c0_i32_0 = arith.constant 0 : i32
    %c0_i32_1 = arith.constant 0 : i32
    return %c0_i32, %c0_i32_0 : i32, i32
  }
  func.func @transform_3(%arg0: i32) -> (i32, i32) {
    %c0_i32 = arith.constant 0 : i32
    %c0_i32_0 = arith.constant 0 : i32
    %c0_i32_1 = arith.constant 0 : i32
    return %c0_i32, %c0_i32_0 : i32, i32
  }
  func.func @transform_4(%arg0: i32) -> (i32, i32, i32) {
    %c0_i32 = arith.constant 0 : i32
    %c0_i32_0 = arith.constant 0 : i32
    %c0_i32_1 = arith.constant 0 : i32
    return %arg0, %c0_i32, %c0_i32_0 : i32, i32, i32
  }
}

module attributes {stable_mosaic.version = 11 : i64} {
  func.func @_attn_block_kernel(%arg0: i32, %arg1: memref<1x24x384xbf16, #tpu.memory_space<vmem>>, %arg2: memref<128x128xbf16, #tpu.memory_space<vmem>>, %arg3: memref<1x128xf32, #tpu.memory_space<vmem>>, %arg4: memref<1x24x128xf32, #tpu.memory_space<vmem>>, %arg5: memref<1x24x128xf32, #tpu.memory_space<vmem>>) attributes {dimension_semantics = [#tpu.dimension_semantics<parallel>], iteration_bounds = array<i64: 2>, scalar_prefetch = 0 : i64, scratch_operands = 0 : i64, tpu.core_type = #tpu.core_type<tc>, window_params = [{transform_indices = @transform_0, window_bounds = array<i64: 1, 24, 384>}, {pipeline_mode = #tpu.pipeline_mode<synchronous>, transform_indices = @transform_1, window_bounds = array<i64: 128, 128>}, {pipeline_mode = #tpu.pipeline_mode<synchronous>, transform_indices = @transform_2, window_bounds = array<i64: 1, 128>}, {transform_indices = @transform_3, window_bounds = array<i64: 1, 24, 128>}, {transform_indices = @transform_4, window_bounds = array<i64: 1, 24, 128>}]} {
    %c0 = arith.constant 0 : index
    %c0_0 = arith.constant 0 : index
    %c0_1 = arith.constant 0 : index
    %0 = vector.load %arg1[%c0, %c0_0, %c0_1] : memref<1x24x384xbf16, #tpu.memory_space<vmem>>, vector<1x24x384xbf16>
    %1 = vector.shape_cast %0 : vector<1x24x384xbf16> to vector<24x384xbf16>
    %2 = vector.extract_strided_slice %1 {offsets = [0, 0], sizes = [24, 32], strides = [1, 1]} : vector<24x384xbf16> to vector<24x32xbf16>
    %3 = vector.extract_strided_slice %1 {offsets = [0, 128], sizes = [24, 32], strides = [1, 1]} : vector<24x384xbf16> to vector<24x32xbf16>
    %4 = vector.extract_strided_slice %1 {offsets = [0, 256], sizes = [24, 32], strides = [1, 1]} : vector<24x384xbf16> to vector<24x32xbf16>
    %cst = arith.constant dense<0.000000e+00> : vector<24x24xf32>
    %5 = tpu.matmul %2, %3, %cst {dimension_numbers = #tpu.dot_dimension_numbers<[1], [1], [0], [0], [0, 0, 1, 0], [], []>} : vector<24x32xbf16>, vector<24x32xbf16>, vector<24x24xf32> -> vector<24x24xf32>
    %cst_2 = arith.constant 0.176776692 : f32
    %6 = vector.broadcast %cst_2 : f32 to vector<24x24xf32>
    %7 = arith.mulf %5, %6 : vector<24x24xf32>
    %8 = tpu.iota {dimensions = array<i32: 1>} : vector<24x24xi32>
    %c17_i32 = arith.constant 17 : i32
    %9 = vector.broadcast %c17_i32 : i32 to vector<24x24xi32>
    %10 = arith.cmpi slt, %8, %9 : vector<24x24xi32>
    %cst_3 = arith.constant -1.000000e+30 : f32
    %11 = vector.broadcast %cst_3 : f32 to vector<24x24xf32>
    %12 = arith.select %10, %7, %11 : vector<24x24xi1>, vector<24x24xf32>
    %cst_4 = arith.constant dense<0xFF800000> : vector<24xf32>
    %13 = vector.multi_reduction <maximumf>, %12, %cst_4 [1] : vector<24x24xf32> to vector<24xf32>
    %14 = vector.shape_cast %13 : vector<24xf32> to vector<24x1xf32>
    %15 = vector.broadcast %14 : vector<24x1xf32> to vector<24x24xf32>
    %16 = arith.subf %12, %15 : vector<24x24xf32>
    %17 = math.exp %16 : vector<24x24xf32>
    %cst_5 = arith.constant dense<0.000000e+00> : vector<24xf32>
    %18 = vector.multi_reduction <add>, %17, %cst_5 [1] : vector<24x24xf32> to vector<24xf32>
    %19 = vector.shape_cast %18 : vector<24xf32> to vector<24x1xf32>
    %20 = tpu.reciprocal %19 {approx = true} : vector<24x1xf32> -> vector<24x1xf32>
    %21 = vector.broadcast %20 : vector<24x1xf32> to vector<24x24xf32>
    %22 = arith.mulf %17, %21 : vector<24x24xf32>
    %23 = arith.truncf %22 : vector<24x24xf32> to vector<24x24xbf16>
    %cst_6 = arith.constant dense<0.000000e+00> : vector<24x32xf32>
    %24 = tpu.matmul %23, %4, %cst_6 {dimension_numbers = #tpu.dot_dimension_numbers<[1], [0], [0], [1], [0, 0, 1, 1], [], []>} : vector<24x24xbf16>, vector<24x32xbf16>, vector<24x32xf32> -> vector<24x32xf32>
    %25 = vector.extract_strided_slice %1 {offsets = [0, 32], sizes = [24, 32], strides = [1, 1]} : vector<24x384xbf16> to vector<24x32xbf16>
    %26 = vector.extract_strided_slice %1 {offsets = [0, 160], sizes = [24, 32], strides = [1, 1]} : vector<24x384xbf16> to vector<24x32xbf16>
    %27 = vector.extract_strided_slice %1 {offsets = [0, 288], sizes = [24, 32], strides = [1, 1]} : vector<24x384xbf16> to vector<24x32xbf16>
    %cst_7 = arith.constant dense<0.000000e+00> : vector<24x24xf32>
    %28 = tpu.matmul %25, %26, %cst_7 {dimension_numbers = #tpu.dot_dimension_numbers<[1], [1], [0], [0], [0, 0, 1, 0], [], []>} : vector<24x32xbf16>, vector<24x32xbf16>, vector<24x24xf32> -> vector<24x24xf32>
    %cst_8 = arith.constant 0.176776692 : f32
    %29 = vector.broadcast %cst_8 : f32 to vector<24x24xf32>
    %30 = arith.mulf %28, %29 : vector<24x24xf32>
    %31 = tpu.iota {dimensions = array<i32: 1>} : vector<24x24xi32>
    %c17_i32_9 = arith.constant 17 : i32
    %32 = vector.broadcast %c17_i32_9 : i32 to vector<24x24xi32>
    %33 = arith.cmpi slt, %31, %32 : vector<24x24xi32>
    %cst_10 = arith.constant -1.000000e+30 : f32
    %34 = vector.broadcast %cst_10 : f32 to vector<24x24xf32>
    %35 = arith.select %33, %30, %34 : vector<24x24xi1>, vector<24x24xf32>
    %cst_11 = arith.constant dense<0xFF800000> : vector<24xf32>
    %36 = vector.multi_reduction <maximumf>, %35, %cst_11 [1] : vector<24x24xf32> to vector<24xf32>
    %37 = vector.shape_cast %36 : vector<24xf32> to vector<24x1xf32>
    %38 = vector.broadcast %37 : vector<24x1xf32> to vector<24x24xf32>
    %39 = arith.subf %35, %38 : vector<24x24xf32>
    %40 = math.exp %39 : vector<24x24xf32>
    %cst_12 = arith.constant dense<0.000000e+00> : vector<24xf32>
    %41 = vector.multi_reduction <add>, %40, %cst_12 [1] : vector<24x24xf32> to vector<24xf32>
    %42 = vector.shape_cast %41 : vector<24xf32> to vector<24x1xf32>
    %43 = tpu.reciprocal %42 {approx = true} : vector<24x1xf32> -> vector<24x1xf32>
    %44 = vector.broadcast %43 : vector<24x1xf32> to vector<24x24xf32>
    %45 = arith.mulf %40, %44 : vector<24x24xf32>
    %46 = arith.truncf %45 : vector<24x24xf32> to vector<24x24xbf16>
    %cst_13 = arith.constant dense<0.000000e+00> : vector<24x32xf32>
    %47 = tpu.matmul %46, %27, %cst_13 {dimension_numbers = #tpu.dot_dimension_numbers<[1], [0], [0], [1], [0, 0, 1, 1], [], []>} : vector<24x24xbf16>, vector<24x32xbf16>, vector<24x32xf32> -> vector<24x32xf32>
    %48 = vector.extract_strided_slice %1 {offsets = [0, 64], sizes = [24, 32], strides = [1, 1]} : vector<24x384xbf16> to vector<24x32xbf16>
    %49 = vector.extract_strided_slice %1 {offsets = [0, 192], sizes = [24, 32], strides = [1, 1]} : vector<24x384xbf16> to vector<24x32xbf16>
    %50 = vector.extract_strided_slice %1 {offsets = [0, 320], sizes = [24, 32], strides = [1, 1]} : vector<24x384xbf16> to vector<24x32xbf16>
    %cst_14 = arith.constant dense<0.000000e+00> : vector<24x24xf32>
    %51 = tpu.matmul %48, %49, %cst_14 {dimension_numbers = #tpu.dot_dimension_numbers<[1], [1], [0], [0], [0, 0, 1, 0], [], []>} : vector<24x32xbf16>, vector<24x32xbf16>, vector<24x24xf32> -> vector<24x24xf32>
    %cst_15 = arith.constant 0.176776692 : f32
    %52 = vector.broadcast %cst_15 : f32 to vector<24x24xf32>
    %53 = arith.mulf %51, %52 : vector<24x24xf32>
    %54 = tpu.iota {dimensions = array<i32: 1>} : vector<24x24xi32>
    %c17_i32_16 = arith.constant 17 : i32
    %55 = vector.broadcast %c17_i32_16 : i32 to vector<24x24xi32>
    %56 = arith.cmpi slt, %54, %55 : vector<24x24xi32>
    %cst_17 = arith.constant -1.000000e+30 : f32
    %57 = vector.broadcast %cst_17 : f32 to vector<24x24xf32>
    %58 = arith.select %56, %53, %57 : vector<24x24xi1>, vector<24x24xf32>
    %cst_18 = arith.constant dense<0xFF800000> : vector<24xf32>
    %59 = vector.multi_reduction <maximumf>, %58, %cst_18 [1] : vector<24x24xf32> to vector<24xf32>
    %60 = vector.shape_cast %59 : vector<24xf32> to vector<24x1xf32>
    %61 = vector.broadcast %60 : vector<24x1xf32> to vector<24x24xf32>
    %62 = arith.subf %58, %61 : vector<24x24xf32>
    %63 = math.exp %62 : vector<24x24xf32>
    %cst_19 = arith.constant dense<0.000000e+00> : vector<24xf32>
    %64 = vector.multi_reduction <add>, %63, %cst_19 [1] : vector<24x24xf32> to vector<24xf32>
    %65 = vector.shape_cast %64 : vector<24xf32> to vector<24x1xf32>
    %66 = tpu.reciprocal %65 {approx = true} : vector<24x1xf32> -> vector<24x1xf32>
    %67 = vector.broadcast %66 : vector<24x1xf32> to vector<24x24xf32>
    %68 = arith.mulf %63, %67 : vector<24x24xf32>
    %69 = arith.truncf %68 : vector<24x24xf32> to vector<24x24xbf16>
    %cst_20 = arith.constant dense<0.000000e+00> : vector<24x32xf32>
    %70 = tpu.matmul %69, %50, %cst_20 {dimension_numbers = #tpu.dot_dimension_numbers<[1], [0], [0], [1], [0, 0, 1, 1], [], []>} : vector<24x24xbf16>, vector<24x32xbf16>, vector<24x32xf32> -> vector<24x32xf32>
    %71 = vector.extract_strided_slice %1 {offsets = [0, 96], sizes = [24, 32], strides = [1, 1]} : vector<24x384xbf16> to vector<24x32xbf16>
    %72 = vector.extract_strided_slice %1 {offsets = [0, 224], sizes = [24, 32], strides = [1, 1]} : vector<24x384xbf16> to vector<24x32xbf16>
    %73 = vector.extract_strided_slice %1 {offsets = [0, 352], sizes = [24, 32], strides = [1, 1]} : vector<24x384xbf16> to vector<24x32xbf16>
    %cst_21 = arith.constant dense<0.000000e+00> : vector<24x24xf32>
    %74 = tpu.matmul %71, %72, %cst_21 {dimension_numbers = #tpu.dot_dimension_numbers<[1], [1], [0], [0], [0, 0, 1, 0], [], []>} : vector<24x32xbf16>, vector<24x32xbf16>, vector<24x24xf32> -> vector<24x24xf32>
    %cst_22 = arith.constant 0.176776692 : f32
    %75 = vector.broadcast %cst_22 : f32 to vector<24x24xf32>
    %76 = arith.mulf %74, %75 : vector<24x24xf32>
    %77 = tpu.iota {dimensions = array<i32: 1>} : vector<24x24xi32>
    %c17_i32_23 = arith.constant 17 : i32
    %78 = vector.broadcast %c17_i32_23 : i32 to vector<24x24xi32>
    %79 = arith.cmpi slt, %77, %78 : vector<24x24xi32>
    %cst_24 = arith.constant -1.000000e+30 : f32
    %80 = vector.broadcast %cst_24 : f32 to vector<24x24xf32>
    %81 = arith.select %79, %76, %80 : vector<24x24xi1>, vector<24x24xf32>
    %cst_25 = arith.constant dense<0xFF800000> : vector<24xf32>
    %82 = vector.multi_reduction <maximumf>, %81, %cst_25 [1] : vector<24x24xf32> to vector<24xf32>
    %83 = vector.shape_cast %82 : vector<24xf32> to vector<24x1xf32>
    %84 = vector.broadcast %83 : vector<24x1xf32> to vector<24x24xf32>
    %85 = arith.subf %81, %84 : vector<24x24xf32>
    %86 = math.exp %85 : vector<24x24xf32>
    %cst_26 = arith.constant dense<0.000000e+00> : vector<24xf32>
    %87 = vector.multi_reduction <add>, %86, %cst_26 [1] : vector<24x24xf32> to vector<24xf32>
    %88 = vector.shape_cast %87 : vector<24xf32> to vector<24x1xf32>
    %89 = tpu.reciprocal %88 {approx = true} : vector<24x1xf32> -> vector<24x1xf32>
    %90 = vector.broadcast %89 : vector<24x1xf32> to vector<24x24xf32>
    %91 = arith.mulf %86, %90 : vector<24x24xf32>
    %92 = arith.truncf %91 : vector<24x24xf32> to vector<24x24xbf16>
    %cst_27 = arith.constant dense<0.000000e+00> : vector<24x32xf32>
    %93 = tpu.matmul %92, %73, %cst_27 {dimension_numbers = #tpu.dot_dimension_numbers<[1], [0], [0], [1], [0, 0, 1, 1], [], []>} : vector<24x24xbf16>, vector<24x32xbf16>, vector<24x32xf32> -> vector<24x32xf32>
    %94 = tpu.concatenate %24, %47, %70, %93 in 1 : vector<24x32xf32>, vector<24x32xf32>, vector<24x32xf32>, vector<24x32xf32> -> vector<24x128xf32>
    %95 = arith.truncf %94 : vector<24x128xf32> to vector<24x128xbf16>
    %c0_28 = arith.constant 0 : index
    %c0_29 = arith.constant 0 : index
    %96 = vector.load %arg2[%c0_28, %c0_29] : memref<128x128xbf16, #tpu.memory_space<vmem>>, vector<128x128xbf16>
    %cst_30 = arith.constant dense<0.000000e+00> : vector<24x128xf32>
    %97 = tpu.matmul %95, %96, %cst_30 {dimension_numbers = #tpu.dot_dimension_numbers<[1], [0], [0], [1], [0, 0, 1, 1], [], []>} : vector<24x128xbf16>, vector<128x128xbf16>, vector<24x128xf32> -> vector<24x128xf32>
    %c0_31 = arith.constant 0 : index
    %c0_32 = arith.constant 0 : index
    %98 = vector.load %arg3[%c0_31, %c0_32] : memref<1x128xf32, #tpu.memory_space<vmem>>, vector<1x128xf32>
    %99 = vector.broadcast %98 : vector<1x128xf32> to vector<24x128xf32>
    %100 = arith.addf %97, %99 : vector<24x128xf32>
    %c0_33 = arith.constant 0 : index
    %c0_34 = arith.constant 0 : index
    %c0_35 = arith.constant 0 : index
    %101 = vector.load %arg4[%c0_33, %c0_34, %c0_35] : memref<1x24x128xf32, #tpu.memory_space<vmem>>, vector<1x24x128xf32>
    %102 = vector.shape_cast %101 : vector<1x24x128xf32> to vector<24x128xf32>
    %103 = arith.addf %100, %102 : vector<24x128xf32>
    %c0_36 = arith.constant 0 : index
    %c0_37 = arith.constant 0 : index
    %c0_38 = arith.constant 0 : index
    %104 = vector.load %arg5[%c0_36, %c0_37, %c0_38] : memref<1x24x128xf32, #tpu.memory_space<vmem>>, vector<1x24x128xf32>
    %105 = vector.shape_cast %104 : vector<1x24x128xf32> to vector<24x128xf32>
    %106 = vector.shape_cast %103 : vector<24x128xf32> to vector<1x24x128xf32>
    tpu.vector_store %arg5[%c0_36, %c0_37, %c0_38], %106 {strides = array<i32>} : memref<1x24x128xf32, #tpu.memory_space<vmem>>, vector<1x24x128xf32>,
    return
  }
  func.func @transform_0(%arg0: i32) -> (i32, i32, i32) {
    %c0_i32 = arith.constant 0 : i32
    %c0_i32_0 = arith.constant 0 : i32
    %c0_i32_1 = arith.constant 0 : i32
    return %arg0, %c0_i32, %c0_i32_0 : i32, i32, i32
  }
  func.func @transform_1(%arg0: i32) -> (i32, i32) {
    %c0_i32 = arith.constant 0 : i32
    %c0_i32_0 = arith.constant 0 : i32
    %c0_i32_1 = arith.constant 0 : i32
    return %c0_i32, %c0_i32_0 : i32, i32
  }
  func.func @transform_2(%arg0: i32) -> (i32, i32) {
    %c0_i32 = arith.constant 0 : i32
    %c0_i32_0 = arith.constant 0 : i32
    %c0_i32_1 = arith.constant 0 : i32
    return %c0_i32, %c0_i32_0 : i32, i32
  }
  func.func @transform_3(%arg0: i32) -> (i32, i32, i32) {
    %c0_i32 = arith.constant 0 : i32
    %c0_i32_0 = arith.constant 0 : i32
    %c0_i32_1 = arith.constant 0 : i32
    return %arg0, %c0_i32, %c0_i32_0 : i32, i32, i32
  }
  func.func @transform_4(%arg0: i32) -> (i32, i32, i32) {
    %c0_i32 = arith.constant 0 : i32
    %c0_i32_0 = arith.constant 0 : i32
    %c0_i32_1 = arith.constant 0 : i32
    return %arg0, %c0_i32, %c0_i32_0 : i32, i32, i32
  }
}

module attributes {stable_mosaic.version = 11 : i64} {
  func.func @_ln_qkv_kernel(%arg0: i32, %arg1: memref<24x128xf32, #tpu.memory_space<vmem>>, %arg2: memref<1x128xf32, #tpu.memory_space<vmem>>, %arg3: memref<1x128xf32, #tpu.memory_space<vmem>>, %arg4: memref<128x384xbf16, #tpu.memory_space<vmem>>, %arg5: memref<1x384xf32, #tpu.memory_space<vmem>>, %arg6: memref<24x384xbf16, #tpu.memory_space<vmem>>) attributes {dimension_semantics = [#tpu.dimension_semantics<parallel>], iteration_bounds = array<i64: 2>, scalar_prefetch = 0 : i64, scratch_operands = 0 : i64, tpu.core_type = #tpu.core_type<tc>, window_params = [{transform_indices = @transform_0, window_bounds = array<i64: 24, 128>}, {pipeline_mode = #tpu.pipeline_mode<synchronous>, transform_indices = @transform_1, window_bounds = array<i64: 1, 128>}, {pipeline_mode = #tpu.pipeline_mode<synchronous>, transform_indices = @transform_2, window_bounds = array<i64: 1, 128>}, {pipeline_mode = #tpu.pipeline_mode<synchronous>, transform_indices = @transform_3, window_bounds = array<i64: 128, 384>}, {pipeline_mode = #tpu.pipeline_mode<synchronous>, transform_indices = @transform_4, window_bounds = array<i64: 1, 384>}, {transform_indices = @transform_5, window_bounds = array<i64: 24, 384>}]} {
    %c0 = arith.constant 0 : index
    %c0_0 = arith.constant 0 : index
    %0 = vector.load %arg1[%c0, %c0_0] : memref<24x128xf32, #tpu.memory_space<vmem>>, vector<24x128xf32>
    %c0_1 = arith.constant 0 : index
    %c0_2 = arith.constant 0 : index
    %1 = vector.load %arg2[%c0_1, %c0_2] : memref<1x128xf32, #tpu.memory_space<vmem>>, vector<1x128xf32>
    %c0_3 = arith.constant 0 : index
    %c0_4 = arith.constant 0 : index
    %2 = vector.load %arg3[%c0_3, %c0_4] : memref<1x128xf32, #tpu.memory_space<vmem>>, vector<1x128xf32>
    %cst = arith.constant dense<0.000000e+00> : vector<24xf32>
    %3 = vector.multi_reduction <add>, %0, %cst [1] : vector<24x128xf32> to vector<24xf32>
    %4 = vector.shape_cast %3 : vector<24xf32> to vector<24x1xf32>
    %cst_5 = arith.constant 1.280000e+02 : f32
    %5 = vector.broadcast %cst_5 : f32 to vector<24x1xf32>
    %6 = arith.divf %4, %5 : vector<24x1xf32>
    %7 = vector.broadcast %6 : vector<24x1xf32> to vector<24x128xf32>
    %8 = arith.subf %0, %7 : vector<24x128xf32>
    %9 = arith.mulf %8, %8 : vector<24x128xf32>
    %cst_6 = arith.constant dense<0.000000e+00> : vector<24xf32>
    %10 = vector.multi_reduction <add>, %9, %cst_6 [1] : vector<24x128xf32> to vector<24xf32>
    %11 = vector.shape_cast %10 : vector<24xf32> to vector<24x1xf32>
    %cst_7 = arith.constant 1.280000e+02 : f32
    %12 = vector.broadcast %cst_7 : f32 to vector<24x1xf32>
    %13 = arith.divf %11, %12 : vector<24x1xf32>
    %14 = vector.broadcast %6 : vector<24x1xf32> to vector<24x128xf32>
    %15 = arith.subf %0, %14 : vector<24x128xf32>
    %cst_8 = arith.constant 9.99999974E-6 : f32
    %16 = vector.broadcast %cst_8 : f32 to vector<24x1xf32>
    %17 = arith.addf %13, %16 : vector<24x1xf32>
    %18 = math.rsqrt %17 : vector<24x1xf32>
    %19 = vector.broadcast %18 : vector<24x1xf32> to vector<24x128xf32>
    %20 = arith.mulf %15, %19 : vector<24x128xf32>
    %21 = vector.broadcast %1 : vector<1x128xf32> to vector<24x128xf32>
    %22 = arith.mulf %20, %21 : vector<24x128xf32>
    %23 = vector.broadcast %2 : vector<1x128xf32> to vector<24x128xf32>
    %24 = arith.addf %22, %23 : vector<24x128xf32>
    %25 = arith.truncf %24 : vector<24x128xf32> to vector<24x128xbf16>
    %c0_9 = arith.constant 0 : index
    %c0_10 = arith.constant 0 : index
    %26 = vector.load %arg4[%c0_9, %c0_10] : memref<128x384xbf16, #tpu.memory_space<vmem>>, vector<128x384xbf16>
    %cst_11 = arith.constant dense<0.000000e+00> : vector<24x384xf32>
    %27 = tpu.matmul %25, %26, %cst_11 {dimension_numbers = #tpu.dot_dimension_numbers<[1], [0], [0], [1], [0, 0, 1, 1], [], []>} : vector<24x128xbf16>, vector<128x384xbf16>, vector<24x384xf32> -> vector<24x384xf32>
    %c0_12 = arith.constant 0 : index
    %c0_13 = arith.constant 0 : index
    %28 = vector.load %arg5[%c0_12, %c0_13] : memref<1x384xf32, #tpu.memory_space<vmem>>, vector<1x384xf32>
    %29 = vector.broadcast %28 : vector<1x384xf32> to vector<24x384xf32>
    %30 = arith.addf %27, %29 : vector<24x384xf32>
    %31 = arith.truncf %30 : vector<24x384xf32> to vector<24x384xbf16>
    %c0_14 = arith.constant 0 : index
    %c0_15 = arith.constant 0 : index
    %32 = vector.load %arg6[%c0_14, %c0_15] : memref<24x384xbf16, #tpu.memory_space<vmem>>, vector<24x384xbf16>
    tpu.vector_store %arg6[%c0_14, %c0_15], %31 {strides = array<i32>} : memref<24x384xbf16, #tpu.memory_space<vmem>>, vector<24x384xbf16>,
    return
  }
  func.func @transform_0(%arg0: i32) -> (i32, i32) {
    %c0_i32 = arith.constant 0 : i32
    %c0_i32_0 = arith.constant 0 : i32
    return %arg0, %c0_i32 : i32, i32
  }
  func.func @transform_1(%arg0: i32) -> (i32, i32) {
    %c0_i32 = arith.constant 0 : i32
    %c0_i32_0 = arith.constant 0 : i32
    %c0_i32_1 = arith.constant 0 : i32
    return %c0_i32, %c0_i32_0 : i32, i32
  }
  func.func @transform_2(%arg0: i32) -> (i32, i32) {
    %c0_i32 = arith.constant 0 : i32
    %c0_i32_0 = arith.constant 0 : i32
    %c0_i32_1 = arith.constant 0 : i32
    return %c0_i32, %c0_i32_0 : i32, i32
  }
  func.func @transform_3(%arg0: i32) -> (i32, i32) {
    %c0_i32 = arith.constant 0 : i32
    %c0_i32_0 = arith.constant 0 : i32
    %c0_i32_1 = arith.constant 0 : i32
    return %c0_i32, %c0_i32_0 : i32, i32
  }
  func.func @transform_4(%arg0: i32) -> (i32, i32) {
    %c0_i32 = arith.constant 0 : i32
    %c0_i32_0 = arith.constant 0 : i32
    %c0_i32_1 = arith.constant 0 : i32
    return %c0_i32, %c0_i32_0 : i32, i32
  }
  func.func @transform_5(%arg0: i32) -> (i32, i32) {
    %c0_i32 = arith.constant 0 : i32
    %c0_i32_0 = arith.constant 0 : i32
    return %arg0, %c0_i32 : i32, i32
  }
}

module attributes {stable_mosaic.version = 11 : i64} {
  func.func @_mlp_block_kernel(%arg0: i32, %arg1: memref<24x128xf32, #tpu.memory_space<vmem>>, %arg2: memref<1x128xf32, #tpu.memory_space<vmem>>, %arg3: memref<1x128xf32, #tpu.memory_space<vmem>>, %arg4: memref<128x512xbf16, #tpu.memory_space<vmem>>, %arg5: memref<1x512xf32, #tpu.memory_space<vmem>>, %arg6: memref<512x128xbf16, #tpu.memory_space<vmem>>, %arg7: memref<1x128xf32, #tpu.memory_space<vmem>>, %arg8: memref<24x128xf32, #tpu.memory_space<vmem>>) attributes {dimension_semantics = [#tpu.dimension_semantics<parallel>], iteration_bounds = array<i64: 2>, scalar_prefetch = 0 : i64, scratch_operands = 0 : i64, tpu.core_type = #tpu.core_type<tc>, window_params = [{transform_indices = @transform_0, window_bounds = array<i64: 24, 128>}, {pipeline_mode = #tpu.pipeline_mode<synchronous>, transform_indices = @transform_1, window_bounds = array<i64: 1, 128>}, {pipeline_mode = #tpu.pipeline_mode<synchronous>, transform_indices = @transform_2, window_bounds = array<i64: 1, 128>}, {pipeline_mode = #tpu.pipeline_mode<synchronous>, transform_indices = @transform_3, window_bounds = array<i64: 128, 512>}, {pipeline_mode = #tpu.pipeline_mode<synchronous>, transform_indices = @transform_4, window_bounds = array<i64: 1, 512>}, {pipeline_mode = #tpu.pipeline_mode<synchronous>, transform_indices = @transform_5, window_bounds = array<i64: 512, 128>}, {pipeline_mode = #tpu.pipeline_mode<synchronous>, transform_indices = @transform_6, window_bounds = array<i64: 1, 128>}, {transform_indices = @transform_7, window_bounds = array<i64: 24, 128>}]} {
    %c0 = arith.constant 0 : index
    %c0_0 = arith.constant 0 : index
    %0 = vector.load %arg1[%c0, %c0_0] : memref<24x128xf32, #tpu.memory_space<vmem>>, vector<24x128xf32>
    %c0_1 = arith.constant 0 : index
    %c0_2 = arith.constant 0 : index
    %1 = vector.load %arg2[%c0_1, %c0_2] : memref<1x128xf32, #tpu.memory_space<vmem>>, vector<1x128xf32>
    %c0_3 = arith.constant 0 : index
    %c0_4 = arith.constant 0 : index
    %2 = vector.load %arg3[%c0_3, %c0_4] : memref<1x128xf32, #tpu.memory_space<vmem>>, vector<1x128xf32>
    %cst = arith.constant dense<0.000000e+00> : vector<24xf32>
    %3 = vector.multi_reduction <add>, %0, %cst [1] : vector<24x128xf32> to vector<24xf32>
    %4 = vector.shape_cast %3 : vector<24xf32> to vector<24x1xf32>
    %cst_5 = arith.constant 1.280000e+02 : f32
    %5 = vector.broadcast %cst_5 : f32 to vector<24x1xf32>
    %6 = arith.divf %4, %5 : vector<24x1xf32>
    %7 = vector.broadcast %6 : vector<24x1xf32> to vector<24x128xf32>
    %8 = arith.subf %0, %7 : vector<24x128xf32>
    %9 = arith.mulf %8, %8 : vector<24x128xf32>
    %cst_6 = arith.constant dense<0.000000e+00> : vector<24xf32>
    %10 = vector.multi_reduction <add>, %9, %cst_6 [1] : vector<24x128xf32> to vector<24xf32>
    %11 = vector.shape_cast %10 : vector<24xf32> to vector<24x1xf32>
    %cst_7 = arith.constant 1.280000e+02 : f32
    %12 = vector.broadcast %cst_7 : f32 to vector<24x1xf32>
    %13 = arith.divf %11, %12 : vector<24x1xf32>
    %14 = vector.broadcast %6 : vector<24x1xf32> to vector<24x128xf32>
    %15 = arith.subf %0, %14 : vector<24x128xf32>
    %cst_8 = arith.constant 9.99999974E-6 : f32
    %16 = vector.broadcast %cst_8 : f32 to vector<24x1xf32>
    %17 = arith.addf %13, %16 : vector<24x1xf32>
    %18 = math.rsqrt %17 : vector<24x1xf32>
    %19 = vector.broadcast %18 : vector<24x1xf32> to vector<24x128xf32>
    %20 = arith.mulf %15, %19 : vector<24x128xf32>
    %21 = vector.broadcast %1 : vector<1x128xf32> to vector<24x128xf32>
    %22 = arith.mulf %20, %21 : vector<24x128xf32>
    %23 = vector.broadcast %2 : vector<1x128xf32> to vector<24x128xf32>
    %24 = arith.addf %22, %23 : vector<24x128xf32>
    %25 = arith.truncf %24 : vector<24x128xf32> to vector<24x128xbf16>
    %c0_9 = arith.constant 0 : index
    %c0_10 = arith.constant 0 : index
    %26 = vector.load %arg4[%c0_9, %c0_10] : memref<128x512xbf16, #tpu.memory_space<vmem>>, vector<128x512xbf16>
    %cst_11 = arith.constant dense<0.000000e+00> : vector<24x512xf32>
    %27 = tpu.matmul %25, %26, %cst_11 {dimension_numbers = #tpu.dot_dimension_numbers<[1], [0], [0], [1], [0, 0, 1, 1], [], []>} : vector<24x128xbf16>, vector<128x512xbf16>, vector<24x512xf32> -> vector<24x512xf32>
    %c0_12 = arith.constant 0 : index
    %c0_13 = arith.constant 0 : index
    %28 = vector.load %arg5[%c0_12, %c0_13] : memref<1x512xf32, #tpu.memory_space<vmem>>, vector<1x512xf32>
    %29 = vector.broadcast %28 : vector<1x512xf32> to vector<24x512xf32>
    %30 = arith.addf %27, %29 : vector<24x512xf32>
    %cst_14 = arith.constant 1.702000e+00 : f32
    %31 = vector.broadcast %cst_14 : f32 to vector<24x512xf32>
    %32 = arith.mulf %31, %30 : vector<24x512xf32>
    %33 = arith.negf %32 : vector<24x512xf32>
    %34 = math.exp %33 : vector<24x512xf32>
    %cst_15 = arith.constant 1.000000e+00 : f32
    %35 = vector.broadcast %cst_15 : f32 to vector<24x512xf32>
    %36 = arith.addf %35, %34 : vector<24x512xf32>
    %37 = arith.divf %35, %36 : vector<24x512xf32>
    %38 = arith.mulf %30, %37 : vector<24x512xf32>
    %39 = arith.truncf %38 : vector<24x512xf32> to vector<24x512xbf16>
    %c0_16 = arith.constant 0 : index
    %c0_17 = arith.constant 0 : index
    %40 = vector.load %arg6[%c0_16, %c0_17] : memref<512x128xbf16, #tpu.memory_space<vmem>>, vector<512x128xbf16>
    %cst_18 = arith.constant dense<0.000000e+00> : vector<24x128xf32>
    %41 = tpu.matmul %39, %40, %cst_18 {dimension_numbers = #tpu.dot_dimension_numbers<[1], [0], [0], [1], [0, 0, 1, 1], [], []>} : vector<24x512xbf16>, vector<512x128xbf16>, vector<24x128xf32> -> vector<24x128xf32>
    %c0_19 = arith.constant 0 : index
    %c0_20 = arith.constant 0 : index
    %42 = vector.load %arg7[%c0_19, %c0_20] : memref<1x128xf32, #tpu.memory_space<vmem>>, vector<1x128xf32>
    %43 = vector.broadcast %42 : vector<1x128xf32> to vector<24x128xf32>
    %44 = arith.addf %41, %43 : vector<24x128xf32>
    %45 = arith.addf %0, %44 : vector<24x128xf32>
    %c0_21 = arith.constant 0 : index
    %c0_22 = arith.constant 0 : index
    %46 = vector.load %arg8[%c0_21, %c0_22] : memref<24x128xf32, #tpu.memory_space<vmem>>, vector<24x128xf32>
    tpu.vector_store %arg8[%c0_21, %c0_22], %45 {strides = array<i32>} : memref<24x128xf32, #tpu.memory_space<vmem>>, vector<24x128xf32>,
    return
  }
  func.func @transform_0(%arg0: i32) -> (i32, i32) {
    %c0_i32 = arith.constant 0 : i32
    %c0_i32_0 = arith.constant 0 : i32
    return %arg0, %c0_i32 : i32, i32
  }
  func.func @transform_1(%arg0: i32) -> (i32, i32) {
    %c0_i32 = arith.constant 0 : i32
    %c0_i32_0 = arith.constant 0 : i32
    %c0_i32_1 = arith.constant 0 : i32
    return %c0_i32, %c0_i32_0 : i32, i32
  }
  func.func @transform_2(%arg0: i32) -> (i32, i32) {
    %c0_i32 = arith.constant 0 : i32
    %c0_i32_0 = arith.constant 0 : i32
    %c0_i32_1 = arith.constant 0 : i32
    return %c0_i32, %c0_i32_0 : i32, i32
  }
  func.func @transform_3(%arg0: i32) -> (i32, i32) {
    %c0_i32 = arith.constant 0 : i32
    %c0_i32_0 = arith.constant 0 : i32
    %c0_i32_1 = arith.constant 0 : i32
    return %c0_i32, %c0_i32_0 : i32, i32
  }
  func.func @transform_4(%arg0: i32) -> (i32, i32) {
    %c0_i32 = arith.constant 0 : i32
    %c0_i32_0 = arith.constant 0 : i32
    %c0_i32_1 = arith.constant 0 : i32
    return %c0_i32, %c0_i32_0 : i32, i32
  }
  func.func @transform_5(%arg0: i32) -> (i32, i32) {
    %c0_i32 = arith.constant 0 : i32
    %c0_i32_0 = arith.constant 0 : i32
    %c0_i32_1 = arith.constant 0 : i32
    return %c0_i32, %c0_i32_0 : i32, i32
  }
  func.func @transform_6(%arg0: i32) -> (i32, i32) {
    %c0_i32 = arith.constant 0 : i32
    %c0_i32_0 = arith.constant 0 : i32
    %c0_i32_1 = arith.constant 0 : i32
    return %c0_i32, %c0_i32_0 : i32, i32
  }
  func.func @transform_7(%arg0: i32) -> (i32, i32) {
    %c0_i32 = arith.constant 0 : i32
    %c0_i32_0 = arith.constant 0 : i32
    return %arg0, %c0_i32 : i32, i32
  }
}

module attributes {stable_mosaic.version = 11 : i64} {
  func.func @_head_kernel(%arg0: i32, %arg1: memref<2x128xf32, #tpu.memory_space<vmem>>, %arg2: memref<1x128xf32, #tpu.memory_space<vmem>>, %arg3: memref<1x128xf32, #tpu.memory_space<vmem>>, %arg4: memref<128x128xbf16, #tpu.memory_space<vmem>>, %arg5: memref<2x128xf32, #tpu.memory_space<vmem>>) attributes {dimension_semantics = [#tpu.dimension_semantics<parallel>], iteration_bounds = array<i64: 1>, scalar_prefetch = 0 : i64, scratch_operands = 0 : i64, tpu.core_type = #tpu.core_type<tc>, window_params = [{pipeline_mode = #tpu.pipeline_mode<synchronous>, transform_indices = @transform_0, window_bounds = array<i64: 2, 128>}, {pipeline_mode = #tpu.pipeline_mode<synchronous>, transform_indices = @transform_1, window_bounds = array<i64: 1, 128>}, {pipeline_mode = #tpu.pipeline_mode<synchronous>, transform_indices = @transform_2, window_bounds = array<i64: 1, 128>}, {pipeline_mode = #tpu.pipeline_mode<synchronous>, transform_indices = @transform_3, window_bounds = array<i64: 128, 128>}, {pipeline_mode = #tpu.pipeline_mode<synchronous>, transform_indices = @transform_4, window_bounds = array<i64: 2, 128>}]} {
    %c0 = arith.constant 0 : index
    %c0_0 = arith.constant 0 : index
    %0 = vector.load %arg1[%c0, %c0_0] : memref<2x128xf32, #tpu.memory_space<vmem>>, vector<2x128xf32>
    %c0_1 = arith.constant 0 : index
    %c0_2 = arith.constant 0 : index
    %1 = vector.load %arg2[%c0_1, %c0_2] : memref<1x128xf32, #tpu.memory_space<vmem>>, vector<1x128xf32>
    %c0_3 = arith.constant 0 : index
    %c0_4 = arith.constant 0 : index
    %2 = vector.load %arg3[%c0_3, %c0_4] : memref<1x128xf32, #tpu.memory_space<vmem>>, vector<1x128xf32>
    %cst = arith.constant dense<0.000000e+00> : vector<2xf32>
    %3 = vector.multi_reduction <add>, %0, %cst [1] : vector<2x128xf32> to vector<2xf32>
    %4 = vector.shape_cast %3 : vector<2xf32> to vector<2x1xf32>
    %cst_5 = arith.constant 1.280000e+02 : f32
    %5 = vector.broadcast %cst_5 : f32 to vector<2x1xf32>
    %6 = arith.divf %4, %5 : vector<2x1xf32>
    %7 = vector.broadcast %6 : vector<2x1xf32> to vector<2x128xf32>
    %8 = arith.subf %0, %7 : vector<2x128xf32>
    %9 = arith.mulf %8, %8 : vector<2x128xf32>
    %cst_6 = arith.constant dense<0.000000e+00> : vector<2xf32>
    %10 = vector.multi_reduction <add>, %9, %cst_6 [1] : vector<2x128xf32> to vector<2xf32>
    %11 = vector.shape_cast %10 : vector<2xf32> to vector<2x1xf32>
    %cst_7 = arith.constant 1.280000e+02 : f32
    %12 = vector.broadcast %cst_7 : f32 to vector<2x1xf32>
    %13 = arith.divf %11, %12 : vector<2x1xf32>
    %14 = vector.broadcast %6 : vector<2x1xf32> to vector<2x128xf32>
    %15 = arith.subf %0, %14 : vector<2x128xf32>
    %cst_8 = arith.constant 9.99999974E-6 : f32
    %16 = vector.broadcast %cst_8 : f32 to vector<2x1xf32>
    %17 = arith.addf %13, %16 : vector<2x1xf32>
    %18 = math.rsqrt %17 : vector<2x1xf32>
    %19 = vector.broadcast %18 : vector<2x1xf32> to vector<2x128xf32>
    %20 = arith.mulf %15, %19 : vector<2x128xf32>
    %21 = vector.broadcast %1 : vector<1x128xf32> to vector<2x128xf32>
    %22 = arith.mulf %20, %21 : vector<2x128xf32>
    %23 = vector.broadcast %2 : vector<1x128xf32> to vector<2x128xf32>
    %24 = arith.addf %22, %23 : vector<2x128xf32>
    %25 = arith.truncf %24 : vector<2x128xf32> to vector<2x128xbf16>
    %c0_9 = arith.constant 0 : index
    %c0_10 = arith.constant 0 : index
    %26 = vector.load %arg4[%c0_9, %c0_10] : memref<128x128xbf16, #tpu.memory_space<vmem>>, vector<128x128xbf16>
    %cst_11 = arith.constant dense<0.000000e+00> : vector<2x128xf32>
    %27 = tpu.matmul %25, %26, %cst_11 {dimension_numbers = #tpu.dot_dimension_numbers<[1], [0], [0], [1], [0, 0, 1, 1], [], []>} : vector<2x128xbf16>, vector<128x128xbf16>, vector<2x128xf32> -> vector<2x128xf32>
    %c0_12 = arith.constant 0 : index
    %c0_13 = arith.constant 0 : index
    %28 = vector.load %arg5[%c0_12, %c0_13] : memref<2x128xf32, #tpu.memory_space<vmem>>, vector<2x128xf32>
    tpu.vector_store %arg5[%c0_12, %c0_13], %27 {strides = array<i32>} : memref<2x128xf32, #tpu.memory_space<vmem>>, vector<2x128xf32>,
    return
  }
  func.func @transform_0(%arg0: i32) -> (i32, i32) {
    %c0_i32 = arith.constant 0 : i32
    %c0_i32_0 = arith.constant 0 : i32
    %c0_i32_1 = arith.constant 0 : i32
    return %c0_i32, %c0_i32_0 : i32, i32
  }
  func.func @transform_1(%arg0: i32) -> (i32, i32) {
    %c0_i32 = arith.constant 0 : i32
    %c0_i32_0 = arith.constant 0 : i32
    %c0_i32_1 = arith.constant 0 : i32
    return %c0_i32, %c0_i32_0 : i32, i32
  }
  func.func @transform_2(%arg0: i32) -> (i32, i32) {
    %c0_i32 = arith.constant 0 : i32
    %c0_i32_0 = arith.constant 0 : i32
    %c0_i32_1 = arith.constant 0 : i32
    return %c0_i32, %c0_i32_0 : i32, i32
  }
  func.func @transform_3(%arg0: i32) -> (i32, i32) {
    %c0_i32 = arith.constant 0 : i32
    %c0_i32_0 = arith.constant 0 : i32
    %c0_i32_1 = arith.constant 0 : i32
    return %c0_i32, %c0_i32_0 : i32, i32
  }
  func.func @transform_4(%arg0: i32) -> (i32, i32) {
    %c0_i32 = arith.constant 0 : i32
    %c0_i32_0 = arith.constant 0 : i32
    %c0_i32_1 = arith.constant 0 : i32
    return %c0_i32, %c0_i32_0 : i32, i32
  }
}

</mosaic_0001>

<llo_original>
// kernel: tpu_custom_call.1
$region0: #{tpu_custom_call.1}
  #allocation0 [shape = 'u32[]', space=smem, size = 0x4, offset = 0x4, fixed_abs, tag = 'smem constant byte address 0x4 - core index']
  #allocation1 [shape = 'u32[144,128]{1,0:T(1,128)}', space=vmem, size = 0x12000, scoped, tag = 'internal scratch']
  %s0 = inlined_call_operand.hbm [shape: f32[16,128], index: 0, kind: input, shape index: {}]
  %s1 = inlined_call_operand.hbm [shape: f32[8,128], index: 1, kind: input, shape index: {}]
  %s2 = inlined_call_operand.hbm [shape: f32[16,128], index: 2, kind: output, shape index: {}]
  %s3 = sld [smem:[#allocation0]]
  $region49: #{tpu_custom_call.1} parent=0
    _
  %s5 = ssub.s32 1, %s3
  %s6 = scalar_select 0, %s5, %s3
  $region1: #{tpu_custom_call.1} parent=0
    #allocation2 [shape = 'u8[8192]{0}', space=vmem, size = 0x2000, scoped, tag = 'input window, operand 0']
    #allocation3 [shape = 's32[2]{0}', space=sflag, size = 0x8, scoped, tag = 'scoped memory for tpu_custom_call.1']
    #allocation4 [shape = 's32[2]{0}', space=sflag, size = 0x8, scoped, tag = 'scoped memory for tpu_custom_call.1']
    #allocation5 [shape = 'u8[4096]{0}', space=vmem, size = 0x1000, scoped, tag = 'input window, operand 1, single buffered']
    #allocation6 [shape = 's32[1]{0}', space=sflag, size = 0x4, scoped, tag = 'scoped memory for tpu_custom_call.1']
    #allocation7 [shape = 'u8[8192]{0}', space=vmem, size = 0x2000, scoped, tag = 'output window, operand 0']
    %7 = vsyncpa [#allocation3], 0
    %s8 = scalar_lea.sflag [#allocation3], 1
    %9 = vsyncpa %s8, 0
    %10 = vsyncpa [#allocation6], 0
    %11 = vsyncpa [#allocation4], 0
    %s12 = scalar_lea.sflag [#allocation4], 1
    %13 = vsyncpa %s12, 0
    loop: start=0, step=1, limit=4
    $region2: #{tpu_custom_call.1} parent=1 // loop_pre_header
      _
    $region3: #{tpu_custom_call.1} parent=1 // loop_header
      %s15 = sphi 0, %s19
      %p16 = scmp.ge.s32.totalorder %s15, 4
      %s25 = sphi 0, %s27
      %s28 = sphi 0, %s25
      %s29 = sphi 0, %s28
      %s45 = sphi 0, %s29
      %s49 = sphi 0, %s49
      %s51 = sphi 0, %s49
      %s52 = sphi 0, %s51
      %s66 = sphi 0, %s52
      %s72 = sphi 0, %s74
      %s75 = sphi 0, %s72
      %s76 = sphi 0, %s75
      %s92 = sphi 0, %s76
    $region4: #{tpu_custom_call.1} parent=1 // loop_header_branch
      %18 = sbr.rel (%p16) target = $region8
    $region5: #{tpu_custom_call.1} parent=1 // loop_body
      %s20 = ssub.s32 %s15, 1
      %s21 = ssub.s32 %s15, 2
      %s22 = sadd.s32 %s15, 1
      %s23 = ssub.s32 %s15, %s22
      %p24 = scmp.eq.s32.totalorder %s23, 0
      %s26 = sadd.s32 %s25, 1
      %s27 = scalar_select %p24, %s25, %s26
      %p30 = pneg %p24
      %p31 = scmp.eq.s32.totalorder %s15, 1
      %p32 = por %p30, %p31
      %p33 = scmp.ne.s32.totalorder %s25, %s28
      %p34 = scmp.eq.s32.totalorder %s15, 0
      %p35 = por %p33, %p34
      %p36 = scmp.ne.s32.totalorder %s25, %s28
      %p37 = scmp.eq.s32.totalorder %s20, 1
      %p38 = por %p36, %p37
      %p39 = scmp.ne.s32.totalorder %s28, %s29
      %p40 = scmp.eq.s32.totalorder %s20, 0
      %p41 = por %p39, %p40
      %p42 = scmp.ne.s32.totalorder %s28, %s29
      %p43 = scmp.eq.s32.totalorder %s21, 1
      %p44 = por %p42, %p43
      %p46 = scmp.ne.s32.totalorder %s29, %s45
      %p47 = scmp.eq.s32.totalorder %s21, 0
      %p48 = por %p46, %p47
      %s50 = sadd.s32 %s49, 1
      %p53 = scmp.eq.s32.totalorder %s15, 1
      %p54 = scmp.ne.s32.totalorder %s49, %s51
      %p55 = scmp.eq.s32.totalorder %s15, 0
      %p56 = por %p54, %p55
      %p57 = scmp.ne.s32.totalorder %s49, %s51
      %p58 = scmp.eq.s32.totalorder %s20, 1
      %p59 = por %p57, %p58
      %p60 = scmp.ne.s32.totalorder %s51, %s52
      %p61 = scmp.eq.s32.totalorder %s20, 0
      %p62 = por %p60, %p61
      %p63 = scmp.ne.s32.totalorder %s51, %s52
      %p64 = scmp.eq.s32.totalorder %s21, 1
      %p65 = por %p63, %p64
      %p67 = scmp.ne.s32.totalorder %s52, %s66
      %p68 = scmp.eq.s32.totalorder %s21, 0
      %p69 = por %p67, %p68
      %s70 = ssub.s32 %s15, %s22
      %p71 = scmp.eq.s32.totalorder %s70, 0
      %s73 = sadd.s32 %s72, 1
      %s74 = scalar_select %p71, %s72, %s73
      %p77 = pneg %p71
      %p78 = scmp.eq.s32.totalorder %s15, 1
      %p79 = por %p77, %p78
      %p80 = scmp.ne.s32.totalorder %s72, %s75
      %p81 = scmp.eq.s32.totalorder %s15, 0
      %p82 = por %p80, %p81
      %p83 = scmp.ne.s32.totalorder %s72, %s75
      %p84 = scmp.eq.s32.totalorder %s20, 1
      %p85 = por %p83, %p84
      %p86 = scmp.ne.s32.totalorder %s75, %s76
      %p87 = scmp.eq.s32.totalorder %s20, 0
      %p88 = por %p86, %p87
      %p89 = scmp.ne.s32.totalorder %s75, %s76
      %p90 = scmp.eq.s32.totalorder %s21, 1
      %p91 = por %p89, %p90
      %p93 = scmp.ne.s32.totalorder %s76, %s92
      %p94 = scmp.eq.s32.totalorder %s21, 0
      %p95 = por %p93, %p94
      %p96 = scmp.le.s32.totalorder 1, %s15
      %p97 = scmp.lt.s32.totalorder %s15, 3
      %p98 = pnand %p96, %p97
      %p99 = pneg %p98
      // Predicated region
      $region9: #{tpu_custom_call.1} parent=5 // pred_check
        _
      $region10: #{tpu_custom_call.1} parent=5 // pred_check_branch
        %101 = sbr.rel (%p98) target = $region12
      $region11: #{tpu_custom_call.1} parent=5 // pred_region
        %s102 = ssub.s32 %s15, 1
        // Predicated region
        $region13: #{tpu_custom_call.1} parent=11 // pred_check
          %p103 = pneg %p62
        $region14: #{tpu_custom_call.1} parent=11 // pred_check_branch
          %105 = sbr.rel (%p103) target = $region16
        $region15: #{tpu_custom_call.1} parent=11 // pred_region
          %s107 = ssub.s32 128, 128
          %108 = vsyncadd [#allocation6], %s107
          %s110 = sshll.u32 [#allocation5], 4
          %s111 = int_to_ptr.vmem [resolvable:$true] %s110
          %113 = dma.hbm_to_vmem [thread:$0]  %s1, 128, %s111, [#allocation6]
        $region16: #{tpu_custom_call.1} parent=11 // pred_fallthru
          _
      $region12: #{tpu_custom_call.1} parent=5 // pred_fallthru
        _
      %p114 = scmp.lt.s32.totalorder %s15, 2
      // Predicated region
      $region17: #{tpu_custom_call.1} parent=5 // pred_check
        %p115 = pneg %p114
      $region18: #{tpu_custom_call.1} parent=5 // pred_check_branch
        %117 = sbr.rel (%p115) target = $region20
      $region19: #{tpu_custom_call.1} parent=5 // pred_region
        // Predicated region
        $region21: #{tpu_custom_call.1} parent=19 // pred_check
          %p118 = pneg %p35
        $region22: #{tpu_custom_call.1} parent=19 // pred_check_branch
          %120 = sbr.rel (%p118) target = $region24
        $region23: #{tpu_custom_call.1} parent=19 // pred_region
          %s121 = sand.u32 %s25, 1
          %s122 = scalar_lea.sflag [#allocation3], %s121
          %s123 = sand.u32 %s25, 1
          %s124 = smul.addr %s123, 8
          %s125 = scalar_lea.vmem [#allocation2], %s124
          %s127 = ssub.s32 128, 128
          %128 = vsyncadd %s122, %s127
          %s129 = smul.addr %s15, 128
          %s130 = scalar_lea.hbm %s0, %s129
          %s132 = sshll.u32 %s125, 4
          %s133 = int_to_ptr.vmem [resolvable:$true] %s132
          %135 = dma.hbm_to_vmem [thread:$0]  %s130, 128, %s133, %s122
        $region24: #{tpu_custom_call.1} parent=19 // pred_fallthru
          _
      $region20: #{tpu_custom_call.1} parent=5 // pred_fallthru
        _
      %p136 = scmp.le.s32.totalorder 1, %s15
      %p137 = scmp.lt.s32.totalorder %s15, 3
      %p138 = pnand %p136, %p137
      %p139 = pneg %p138
      // Predicated region
      $region25: #{tpu_custom_call.1} parent=5 // pred_check
        _
      $region26: #{tpu_custom_call.1} parent=5 // pred_check_branch
        %141 = sbr.rel (%p138) target = $region28
      $region27: #{tpu_custom_call.1} parent=5 // pred_region
        %s142 = ssub.s32 %s15, 1
        %s143 = sand.u32 %s28, 1
        %s144 = scalar_lea.sflag [#allocation3], %s143
        %s145 = sand.u32 %s28, 1
        %s146 = smul.addr %s145, 8
        %s147 = scalar_lea.vmem [#allocation2], %s146
        // Predicated region
        $region29: #{tpu_custom_call.1} parent=27 // pred_check
          %p148 = pneg %p41
        $region30: #{tpu_custom_call.1} parent=27 // pred_check_branch
          %150 = sbr.rel (%p148) target = $region32
        $region31: #{tpu_custom_call.1} parent=27 // pred_region
          %151 = dma.done %s144, 128
        $region32: #{tpu_custom_call.1} parent=27 // pred_fallthru
          _
        // Predicated region
        $region33: #{tpu_custom_call.1} parent=27 // pred_check
          %p152 = pneg %p62
        $region34: #{tpu_custom_call.1} parent=27 // pred_check_branch
          %154 = sbr.rel (%p152) target = $region36
        $region35: #{tpu_custom_call.1} parent=27 // pred_region
          %155 = dma.done [#allocation6], 128
        $region36: #{tpu_custom_call.1} parent=27 // pred_fallthru
          _
        %s156 = sand.u32 %s28, 1
        %s157 = scalar_lea.sflag [#allocation3], %s156
        %s158 = sand.u32 %s28, 1
        %s159 = smul.addr %s158, 8
        %s160 = scalar_lea.vmem [#allocation2], %s159
        %p161 = pneg %p41
        %p162 = pneg %p38
        %p163 = pneg %p62
        %p164 = pneg %p59
        %p165 = pneg %p88
        %p166 = pneg %p85
        %s167 = sand.u32 %s75, 1
        %s168 = scalar_lea.sflag [#allocation4], %s167
        %s169 = sand.u32 %s75, 1
        %s170 = smul.addr %s169, 8
        %s171 = scalar_lea.vmem [#allocation7], %s170
        %v172 = vld [vmem:[%s147] sm:$0xff]
        %v173 = vld [vmem:[#allocation5] sm:$0xff]
        %v174 = vadd.f32 %v172, %v173
        %175 = vst [vmem:[%s171] sm:$0xff] %v174
        %s176 = sand.u32 %s75, 1
        %s177 = scalar_lea.sflag [#allocation4], %s176
        %s178 = sand.u32 %s75, 1
        %s179 = smul.addr %s178, 8
        %s180 = scalar_lea.vmem [#allocation7], %s179
        // Predicated region
        $region37: #{tpu_custom_call.1} parent=27 // pred_check
          %p181 = pneg %p85
        $region38: #{tpu_custom_call.1} parent=27 // pred_check_branch
          %183 = sbr.rel (%p181) target = $region40
        $region39: #{tpu_custom_call.1} parent=27 // pred_region
          %s185 = ssub.s32 128, 128
          %186 = vsyncadd %s177, %s185
          %s187 = smul.addr %s20, 128
          %s188 = scalar_lea.hbm %s2, %s187
          %s190 = sshll.u32 %s180, 4
          %s191 = int_to_ptr.vmem [resolvable:$true] %s190
          %193 = dma.vmem_to_hbm [thread:$0]  %s191, 128, %s188, %s177
        $region40: #{tpu_custom_call.1} parent=27 // pred_fallthru
          _
      $region28: #{tpu_custom_call.1} parent=5 // pred_fallthru
        _
      %p194 = scmp.le.s32.totalorder 2, %s15
      // Predicated region
      $region41: #{tpu_custom_call.1} parent=5 // pred_check
        %p195 = pneg %p194
      $region42: #{tpu_custom_call.1} parent=5 // pred_check_branch
        %197 = sbr.rel (%p195) target = $region44
      $region43: #{tpu_custom_call.1} parent=5 // pred_region
        %s198 = ssub.s32 %s15, 2
        // Predicated region
        $region45: #{tpu_custom_call.1} parent=43 // pred_check
          %p199 = pneg %p91
        $region46: #{tpu_custom_call.1} parent=43 // pred_check_branch
          %201 = sbr.rel (%p199) target = $region48
        $region47: #{tpu_custom_call.1} parent=43 // pred_region
          %s202 = sand.u32 %s76, 1
          %s203 = scalar_lea.sflag [#allocation4], %s202
          %s204 = sand.u32 %s76, 1
          %s205 = smul.addr %s204, 8
          %s206 = scalar_lea.vmem [#allocation7], %s205
          %207 = dma.done %s203, 128
        $region48: #{tpu_custom_call.1} parent=43 // pred_fallthru
          _
      $region44: #{tpu_custom_call.1} parent=5 // pred_fallthru
        _
    $region6: #{tpu_custom_call.1} parent=1 // loop_footer
      %s19 = sadd.s32 1, %s15
    $region7: #{tpu_custom_call.1} parent=1 // loop_footer_branch
      %14 = sbr.rel target = $region3
    $region8: #{tpu_custom_call.1} parent=1 // loop_exit
      _
    %208 = vsyncpa [#allocation3], 1
    %s209 = scalar_lea.sflag [#allocation3], 1
    %210 = vsyncpa %s209, 1
    %211 = vsyncpa [#allocation6], 1
    %212 = vsyncpa [#allocation4], 1
    %s213 = scalar_lea.sflag [#allocation4], 1
    %214 = vsyncpa %s213, 1

// kernel: visual_transformer_forward.10
$region0: #{visual_transformer_forward.10}
  #allocation0 [shape = 'u32[]', space=smem, size = 0x4, offset = 0x4, fixed_abs, tag = 'smem constant byte address 0x4 - core index']
  #allocation1 [shape = 'u32[144,128]{1,0:T(1,128)}', space=vmem, size = 0x12000, scoped, tag = 'internal scratch']
  %s0 = inlined_call_operand.vmem [shape: bf16[2,24,128], index: 0, kind: input, shape index: {}]
  %s1 = inlined_call_operand.vmem [shape: f32[24,128], index: 1, kind: input, shape index: {}]
  %s2 = inlined_call_operand.vmem [shape: f32[1,128], index: 2, kind: input, shape index: {}]
  %s3 = inlined_call_operand.vmem [shape: f32[1,128], index: 3, kind: input, shape index: {}]
  %s4 = inlined_call_operand.vmem [shape: f32[2,24,128], index: 4, kind: output, shape index: {}]
  %s5 = sld [smem:[#allocation0]]
  $region49: #{visual_transformer_forward.10} parent=0
    _
  %s7 = ssub.s32 1, %s5
  %s8 = scalar_select 0, %s7, %s5
  loop: start=0, step=1, limit=4
  $region2: #{visual_transformer_forward.10} parent=0 // loop_pre_header
    _
  $region3: #{visual_transformer_forward.10} parent=0 // loop_header
    %s10 = sphi 0, %s14
    %p11 = scmp.ge.s32.totalorder %s10, 4
    %s20 = sphi 0, %s22
    %s23 = sphi 0, %s20
    %s24 = sphi 0, %s23
    %s40 = sphi 0, %s24
    %s44 = sphi 0, %s44
    %s46 = sphi 0, %s44
    %s47 = sphi 0, %s46
    %s61 = sphi 0, %s47
    %s65 = sphi 0, %s65
    %s67 = sphi 0, %s65
    %s68 = sphi 0, %s67
    %s82 = sphi 0, %s68
    %s86 = sphi 0, %s86
    %s88 = sphi 0, %s86
    %s89 = sphi 0, %s88
    %s103 = sphi 0, %s89
    %s109 = sphi 0, %s111
    %s112 = sphi 0, %s109
    %s113 = sphi 0, %s112
    %s129 = sphi 0, %s113
  $region4: #{visual_transformer_forward.10} parent=0 // loop_header_branch
    %13 = sbr.rel (%p11) target = $region8
  $region5: #{visual_transformer_forward.10} parent=0 // loop_body
    %s15 = ssub.s32 %s10, 1
    %s16 = ssub.s32 %s10, 2
    %s17 = sadd.s32 %s10, 1
    %s18 = ssub.s32 %s10, %s17
    %p19 = scmp.eq.s32.totalorder %s18, 0
    %s21 = sadd.s32 %s20, 1
    %s22 = scalar_select %p19, %s20, %s21
    %p25 = pneg %p19
    %p26 = scmp.eq.s32.totalorder %s10, 1
    %p27 = por %p25, %p26
    %p28 = scmp.ne.s32.totalorder %s20, %s23
    %p29 = scmp.eq.s32.totalorder %s10, 0
    %p30 = por %p28, %p29
    %p31 = scmp.ne.s32.totalorder %s20, %s23
    %p32 = scmp.eq.s32.totalorder %s15, 1
    %p33 = por %p31, %p32
    %p34 = scmp.ne.s32.totalorder %s23, %s24
    %p35 = scmp.eq.s32.totalorder %s15, 0
    %p36 = por %p34, %p35
    %p37 = scmp.ne.s32.totalorder %s23, %s24
    %p38 = scmp.eq.s32.totalorder %s16, 1
    %p39 = por %p37, %p38
    %p41 = scmp.ne.s32.totalorder %s24, %s40
    %p42 = scmp.eq.s32.totalorder %s16, 0
    %p43 = por %p41, %p42
    %s45 = sadd.s32 %s44, 1
    %p48 = scmp.eq.s32.totalorder %s10, 1
    %p49 = scmp.ne.s32.totalorder %s44, %s46
    %p50 = scmp.eq.s32.totalorder %s10, 0
    %p51 = por %p49, %p50
    %p52 = scmp.ne.s32.totalorder %s44, %s46
    %p53 = scmp.eq.s32.totalorder %s15, 1
    %p54 = por %p52, %p53
    %p55 = scmp.ne.s32.totalorder %s46, %s47
    %p56 = scmp.eq.s32.totalorder %s15, 0
    %p57 = por %p55, %p56
    %p58 = scmp.ne.s32.totalorder %s46, %s47
    %p59 = scmp.eq.s32.totalorder %s16, 1
    %p60 = por %p58, %p59
    %p62 = scmp.ne.s32.totalorder %s47, %s61
    %p63 = scmp.eq.s32.totalorder %s16, 0
    %p64 = por %p62, %p63
    %s66 = sadd.s32 %s65, 1
    %p69 = scmp.eq.s32.totalorder %s10, 1
    %p70 = scmp.ne.s32.totalorder %s65, %s67
    %p71 = scmp.eq.s32.totalorder %s10, 0
    %p72 = por %p70, %p71
    %p73 = scmp.ne.s32.totalorder %s65, %s67
    %p74 = scmp.eq.s32.totalorder %s15, 1
    %p75 = por %p73, %p74
    %p76 = scmp.ne.s32.totalorder %s67, %s68
    %p77 = scmp.eq.s32.totalorder %s15, 0
    %p78 = por %p76, %p77
    %p79 = scmp.ne.s32.totalorder %s67, %s68
    %p80 = scmp.eq.s32.totalorder %s16, 1
    %p81 = por %p79, %p80
    %p83 = scmp.ne.s32.totalorder %s68, %s82
    %p84 = scmp.eq.s32.totalorder %s16, 0
    %p85 = por %p83, %p84
    %s87 = sadd.s32 %s86, 1
    %p90 = scmp.eq.s32.totalorder %s10, 1
    %p91 = scmp.ne.s32.totalorder %s86, %s88
    %p92 = scmp.eq.s32.totalorder %s10, 0
    %p93 = por %p91, %p92
    %p94 = scmp.ne.s32.totalorder %s86, %s88
    %p95 = scmp.eq.s32.totalorder %s15, 1
    %p96 = por %p94, %p95
    %p97 = scmp.ne.s32.totalorder %s88, %s89
    %p98 = scmp.eq.s32.totalorder %s15, 0
    %p99 = por %p97, %p98
    %p100 = scmp.ne.s32.totalorder %s88, %s89
    %p101 = scmp.eq.s32.totalorder %s16, 1
    %p102 = por %p100, %p101
    %p104 = scmp.ne.s32.totalorder %s89, %s103
    %p105 = scmp.eq.s32.totalorder %s16, 0
    %p106 = por %p104, %p105
    %s107 = ssub.s32 %s10, %s17
    %p108 = scmp.eq.s32.totalorder %s107, 0
    %s110 = sadd.s32 %s109, 1
    %s111 = scalar_select %p108, %s109, %s110
    %p114 = pneg %p108
    %p115 = scmp.eq.s32.totalorder %s10, 1
    %p116 = por %p114, %p115
    %p117 = scmp.ne.s32.totalorder %s109, %s112
    %p118 = scmp.eq.s32.totalorder %s10, 0
    %p119 = por %p117, %p118
    %p120 = scmp.ne.s32.totalorder %s109, %s112
    %p121 = scmp.eq.s32.totalorder %s15, 1
    %p122 = por %p120, %p121
    %p123 = scmp.ne.s32.totalorder %s112, %s113
    %p124 = scmp.eq.s32.totalorder %s15, 0
    %p125 = por %p123, %p124
    %p126 = scmp.ne.s32.totalorder %s112, %s113
    %p127 = scmp.eq.s32.totalorder %s16, 1
    %p128 = por %p126, %p127
    %p130 = scmp.ne.s32.totalorder %s113, %s129
    %p131 = scmp.eq.s32.totalorder %s16, 0
    %p132 = por %p130, %p131
    %p133 = scmp.le.s32.totalorder 1, %s10
    %p134 = scmp.lt.s32.totalorder %s10, 3
    %p135 = pnand %p133, %p134
    %p136 = pneg %p135
    // Predicated region
    $region9: #{visual_transformer_forward.10} parent=5 // pred_check
      _
    $region10: #{visual_transformer_forward.10} parent=5 // pred_check_branch
      %138 = sbr.rel (%p135) target = $region12
    $region11: #{visual_transformer_forward.10} parent=5 // pred_region
      %s139 = ssub.s32 %s10, 1
      // Predicated region
      $region13: #{visual_transformer_forward.10} parent=11 // pred_check
        %p140 = pneg %p57
      $region14: #{visual_transformer_forward.10} parent=11 // pred_check_branch
        %142 = sbr.rel (%p140) target = $region16
      $region15: #{visual_transformer_forward.10} parent=11 // pred_region
        _
      $region16: #{visual_transformer_forward.10} parent=11 // pred_fallthru
        _
      // Predicated region
      $region17: #{visual_transformer_forward.10} parent=11 // pred_check
        %p143 = pneg %p78
      $region18: #{visual_transformer_forward.10} parent=11 // pred_check_branch
        %145 = sbr.rel (%p143) target = $region20
      $region19: #{visual_transformer_forward.10} parent=11 // pred_region
        _
      $region20: #{visual_transformer_forward.10} parent=11 // pred_fallthru
        _
      // Predicated region
      $region21: #{visual_transformer_forward.10} parent=11 // pred_check
        %p146 = pneg %p99
      $region22: #{visual_transformer_forward.10} parent=11 // pred_check_branch
        %148 = sbr.rel (%p146) target = $region24
      $region23: #{visual_transformer_forward.10} parent=11 // pred_region
        _
      $region24: #{visual_transformer_forward.10} parent=11 // pred_fallthru
        _
    $region12: #{visual_transformer_forward.10} parent=5 // pred_fallthru
      _
    %p149 = scmp.lt.s32.totalorder %s10, 2
    // Predicated region
    $region25: #{visual_transformer_forward.10} parent=5 // pred_check
      %p150 = pneg %p149
    $region26: #{visual_transformer_forward.10} parent=5 // pred_check_branch
      %152 = sbr.rel (%p150) target = $region28
    $region27: #{visual_transformer_forward.10} parent=5 // pred_region
      // Predicated region
      $region29: #{visual_transformer_forward.10} parent=27 // pred_check
        %p153 = pneg %p30
      $region30: #{visual_transformer_forward.10} parent=27 // pred_check_branch
        %155 = sbr.rel (%p153) target = $region32
      $region31: #{visual_transformer_forward.10} parent=27 // pred_region
        %p156 = scmp.lt.s32.totalorder %s10, 1
        %s157 = scalar_select %p156, %s10, 1
        %s158 = smul.addr %s157, 3
        %s159 = smul.addr %s158, 4
        %s160 = scalar_lea.vmem %s0, %s159
      $region32: #{visual_transformer_forward.10} parent=27 // pred_fallthru
        _
    $region28: #{visual_transformer_forward.10} parent=5 // pred_fallthru
      _
    %p161 = scmp.le.s32.totalorder 1, %s10
    %p162 = scmp.lt.s32.totalorder %s10, 3
    %p163 = pnand %p161, %p162
    %p164 = pneg %p163
    // Predicated region
    $region33: #{visual_transformer_forward.10} parent=5 // pred_check
      _
    $region34: #{visual_transformer_forward.10} parent=5 // pred_check_branch
      %166 = sbr.rel (%p163) target = $region36
    $region35: #{visual_transformer_forward.10} parent=5 // pred_region
      %s167 = ssub.s32 %s10, 1
      %p168 = scmp.lt.s32.totalorder %s15, 1
      %s169 = scalar_select %p168, %s15, 1
      %s170 = smul.addr %s169, 3
      %s171 = smul.addr %s170, 4
      %s172 = scalar_lea.vmem %s0, %s171
      %p173 = pneg %p36
      %p174 = pneg %p33
      %p175 = pneg %p57
      %p176 = pneg %p54
      %p177 = pneg %p78
      %p178 = pneg %p75
      %p179 = pneg %p99
      %p180 = pneg %p96
      %p181 = pneg %p125
      %p182 = pneg %p122
      %p183 = scmp.lt.s32.totalorder %s15, 1
      %s184 = scalar_select %p183, %s15, 1
      %s185 = smul.addr %s184, 3
      %s186 = smul.addr %s185, 8
      %s187 = scalar_lea.vmem %s4, %s186
      %p188 = scmp.lt.s32.totalorder %s15, 1
      %s189 = scalar_select %p188, %s15, 1
      %s190 = smul.addr %s189, 3
      %s191 = smul.addr %s190, 4
      %s192 = scalar_lea.vmem %s0, %s191
      %p193 = scmp.lt.s32.totalorder %s15, 1
      %s194 = scalar_select %p193, %s15, 1
      %s195 = smul.addr %s194, 3
      %s196 = smul.addr %s195, 8
      %s197 = scalar_lea.vmem %s4, %s196
      %v198 = vld [vmem:[%s192] sm:$0xf]
      %v199 = vld [vmem:[%s192 + $0x4] sm:$0xf]
      %v200 = vld [vmem:[%s192 + $0x8] sm:$0xf]
      %v201 = vunpack.c.l.bf16 %v198
      %v202 = vunpack.c.l.bf16 %v199
      %v203 = vunpack.c.l.bf16 %v200
      %v204 = vld [vmem:[%s1] sm:$0xff]
      %v205 = vld [vmem:[%s1 + $0x8] sm:$0xff]
      %v206 = vld [vmem:[%s1 + $0x10] sm:$0xff]
      %v207 = vadd.f32 %v201, %v204
      %v208 = vadd.f32 %v202, %v205
      %v209 = vadd.f32 %v203, %v206
      %v210 = vld [vmem:[%s2] sm:$0x1]
      %v211 = vld [vmem:[%s3] sm:$0x1]
      %212 = vadd.xlane.f32.xlu0 %v207
      %v213 = vpop.xlane.xlu0 %212
      %214 = vadd.xlane.f32.xlu0 %v208
      %v215 = vpop.xlane.xlu0 %214
      %216 = vadd.xlane.f32.xlu0 %v209
      %v217 = vpop.xlane.xlu0 %216
      %v218 = vrcp.pop 128.0
      %v219 = vmul.f32 %v213, %v218
      %v220 = vmul.f32 %v215, %v218
      %v221 = vmul.f32 %v217, %v218
      %v222 = vsub.f32 %v207, %v219
      %v223 = vsub.f32 %v208, %v220
      %v224 = vsub.f32 %v209, %v221
      %v225 = vmul.f32 %v222, %v222
      %v226 = vmul.f32 %v223, %v223
      %v227 = vmul.f32 %v224, %v224
      %228 = vadd.xlane.f32.xlu0 %v225
      %v229 = vpop.xlane.xlu0 %228
      %230 = vadd.xlane.f32.xlu0 %v226
      %v231 = vpop.xlane.xlu0 %230
      %232 = vadd.xlane.f32.xlu0 %v227
      %v233 = vpop.xlane.xlu0 %232
      %v234 = vmul.f32 %v229, %v218
      %v235 = vmul.f32 %v231, %v218
      %v236 = vmul.f32 %v233, %v218
      %v237 = vadd.f32 %v234, 1e-05
      %v238 = vadd.f32 %v235, 1e-05
      %v239 = vadd.f32 %v236, 1e-05
      %v240 = vrsqrt.pop %v237
      %v241 = vrsqrt.pop %v238
      %v242 = vrsqrt.pop %v239
      %v243 = vmul.f32 %v222, %v240
      %v244 = vmul.f32 %v223, %v241
      %v245 = vmul.f32 %v224, %v242
      %v247 = vlaneseq
      %v248 = vshrl.u32 %v247, 7
      %v249 = vsub.s32 0, %v248
      %v250 = vrot.slane %v210, %v249
      %v252 = vmul.f32 %v243, %v250
      %v253 = vmul.f32 %v244, %v250
      %v254 = vmul.f32 %v245, %v250
      %v256 = vlaneseq
      %v257 = vshrl.u32 %v256, 7
      %v258 = vsub.s32 0, %v257
      %v259 = vrot.slane %v211, %v258
      %v261 = vadd.f32 %v252, %v259
      %v262 = vadd.f32 %v253, %v259
      %v263 = vadd.f32 %v254, %v259
      %264 = vst [vmem:[%s197] sm:$0xff] %v261
      %265 = vst [vmem:[%s197 + $0x8] sm:$0xff] %v262
      %266 = vst [vmem:[%s197 + $0x10] sm:$0xff] %v263
      %p267 = scmp.lt.s32.totalorder %s15, 1
      %s268 = scalar_select %p267, %s15, 1
      %s269 = smul.addr %s268, 3
      %s270 = smul.addr %s269, 8
      %s271 = scalar_lea.vmem %s4, %s270
      // Predicated region
      $region37: #{visual_transformer_forward.10} parent=35 // pred_check
        %p272 = pneg %p122
      $region38: #{visual_transformer_forward.10} parent=35 // pred_check_branch
        %274 = sbr.rel (%p272) target = $region40
      $region39: #{visual_transformer_forward.10} parent=35 // pred_region
        _
      $region40: #{visual_transformer_forward.10} parent=35 // pred_fallthru
        _
    $region36: #{visual_transformer_forward.10} parent=5 // pred_fallthru
      _
    %p275 = scmp.le.s32.totalorder 2, %s10
    // Predicated region
    $region41: #{visual_transformer_forward.10} parent=5 // pred_check
      %p276 = pneg %p275
    $region42: #{visual_transformer_forward.10} parent=5 // pred_check_branch
      %278 = sbr.rel (%p276) target = $region44
    $region43: #{visual_transformer_forward.10} parent=5 // pred_region
      %s279 = ssub.s32 %s10, 2
      // Predicated region
      $region45: #{visual_transformer_forward.10} parent=43 // pred_check
        %p280 = pneg %p128
      $region46: #{visual_transformer_forward.10} parent=43 // pred_check_branch
        %282 = sbr.rel (%p280) target = $region48
      $region47: #{visual_transformer_forward.10} parent=43 // pred_region
        %p283 = scmp.lt.s32.totalorder %s16, 1
        %s284 = scalar_select %p283, %s16, 1
        %s285 = smul.addr %s284, 3
        %s286 = smul.addr %s285, 8
        %s287 = scalar_lea.vmem %s4, %s286
      $region48: #{visual_transformer_forward.10} parent=43 // pred_fallthru
        _
    $region44: #{visual_transformer_forward.10} parent=5 // pred_fallthru
      _
  $region6: #{visual_transformer_forward.10} parent=0 // loop_footer
    %s14 = sadd.s32 1, %s10
  $region7: #{visual_transformer_forward.10} parent=0 // loop_footer_branch
    %9 = sbr.rel target = $region3
  $region8: #{visual_transformer_forward.10} parent=0 // loop_exit
    _

// kernel: visual_transformer_forward.9
$region0: #{visual_transformer_forward.9}
  #allocation0 [shape = 'u32[]', space=smem, size = 0x4, offset = 0x4, fixed_abs, tag = 'smem constant byte address 0x4 - core index']
  #allocation1 [shape = 'u32[144,128]{1,0:T(1,128)}', space=vmem, size = 0x12000, scoped, tag = 'internal scratch']
  %s0 = inlined_call_operand.vmem [shape: bf16[32,256], index: 0, kind: input, shape index: {}]
  %s1 = inlined_call_operand.vmem [shape: bf16[256,128], index: 1, kind: input, shape index: {}]
  %s2 = inlined_call_operand.vmem [shape: bf16[32,128], index: 2, kind: output, shape index: {}]
  %s3 = sld [smem:[#allocation0]]
  $region41: #{visual_transformer_forward.9} parent=0
    _
  %s5 = ssub.s32 1, %s3
  %s6 = scalar_select 0, %s5, %s3
  loop: start=0, step=1, limit=4
  $region2: #{visual_transformer_forward.9} parent=0 // loop_pre_header
    _
  $region3: #{visual_transformer_forward.9} parent=0 // loop_header
    %s8 = sphi 0, %s12
    %p9 = scmp.ge.s32.totalorder %s8, 4
    %s18 = sphi 0, %s20
    %s21 = sphi 0, %s18
    %s22 = sphi 0, %s21
    %s38 = sphi 0, %s22
    %s42 = sphi 0, %s42
    %s44 = sphi 0, %s42
    %s45 = sphi 0, %s44
    %s59 = sphi 0, %s45
    %s65 = sphi 0, %s67
    %s68 = sphi 0, %s65
    %s69 = sphi 0, %s68
    %s85 = sphi 0, %s69
  $region4: #{visual_transformer_forward.9} parent=0 // loop_header_branch
    %11 = sbr.rel (%p9) target = $region8
  $region5: #{visual_transformer_forward.9} parent=0 // loop_body
    %s13 = ssub.s32 %s8, 1
    %s14 = ssub.s32 %s8, 2
    %s15 = sadd.s32 %s8, 1
    %s16 = ssub.s32 %s8, %s15
    %p17 = scmp.eq.s32.totalorder %s16, 0
    %s19 = sadd.s32 %s18, 1
    %s20 = scalar_select %p17, %s18, %s19
    %p23 = pneg %p17
    %p24 = scmp.eq.s32.totalorder %s8, 1
    %p25 = por %p23, %p24
    %p26 = scmp.ne.s32.totalorder %s18, %s21
    %p27 = scmp.eq.s32.totalorder %s8, 0
    %p28 = por %p26, %p27
    %p29 = scmp.ne.s32.totalorder %s18, %s21
    %p30 = scmp.eq.s32.totalorder %s13, 1
    %p31 = por %p29, %p30
    %p32 = scmp.ne.s32.totalorder %s21, %s22
    %p33 = scmp.eq.s32.totalorder %s13, 0
    %p34 = por %p32, %p33
    %p35 = scmp.ne.s32.totalorder %s21, %s22
    %p36 = scmp.eq.s32.totalorder %s14, 1
    %p37 = por %p35, %p36
    %p39 = scmp.ne.s32.totalorder %s22, %s38
    %p40 = scmp.eq.s32.totalorder %s14, 0
    %p41 = por %p39, %p40
    %s43 = sadd.s32 %s42, 1
    %p46 = scmp.eq.s32.totalorder %s8, 1
    %p47 = scmp.ne.s32.totalorder %s42, %s44
    %p48 = scmp.eq.s32.totalorder %s8, 0
    %p49 = por %p47, %p48
    %p50 = scmp.ne.s32.totalorder %s42, %s44
    %p51 = scmp.eq.s32.totalorder %s13, 1
    %p52 = por %p50, %p51
    %p53 = scmp.ne.s32.totalorder %s44, %s45
    %p54 = scmp.eq.s32.totalorder %s13, 0
    %p55 = por %p53, %p54
    %p56 = scmp.ne.s32.totalorder %s44, %s45
    %p57 = scmp.eq.s32.totalorder %s14, 1
    %p58 = por %p56, %p57
    %p60 = scmp.ne.s32.totalorder %s45, %s59
    %p61 = scmp.eq.s32.totalorder %s14, 0
    %p62 = por %p60, %p61
    %s63 = ssub.s32 %s8, %s15
    %p64 = scmp.eq.s32.totalorder %s63, 0
    %s66 = sadd.s32 %s65, 1
    %s67 = scalar_select %p64, %s65, %s66
    %p70 = pneg %p64
    %p71 = scmp.eq.s32.totalorder %s8, 1
    %p72 = por %p70, %p71
    %p73 = scmp.ne.s32.totalorder %s65, %s68
    %p74 = scmp.eq.s32.totalorder %s8, 0
    %p75 = por %p73, %p74
    %p76 = scmp.ne.s32.totalorder %s65, %s68
    %p77 = scmp.eq.s32.totalorder %s13, 1
    %p78 = por %p76, %p77
    %p79 = scmp.ne.s32.totalorder %s68, %s69
    %p80 = scmp.eq.s32.totalorder %s13, 0
    %p81 = por %p79, %p80
    %p82 = scmp.ne.s32.totalorder %s68, %s69
    %p83 = scmp.eq.s32.totalorder %s14, 1
    %p84 = por %p82, %p83
    %p86 = scmp.ne.s32.totalorder %s69, %s85
    %p87 = scmp.eq.s32.totalorder %s14, 0
    %p88 = por %p86, %p87
    %p89 = scmp.le.s32.totalorder 1, %s8
    %p90 = scmp.lt.s32.totalorder %s8, 3
    %p91 = pnand %p89, %p90
    %p92 = pneg %p91
    // Predicated region
    $region9: #{visual_transformer_forward.9} parent=5 // pred_check
      _
    $region10: #{visual_transformer_forward.9} parent=5 // pred_check_branch
      %94 = sbr.rel (%p91) target = $region12
    $region11: #{visual_transformer_forward.9} parent=5 // pred_region
      %s95 = ssub.s32 %s8, 1
      // Predicated region
      $region13: #{visual_transformer_forward.9} parent=11 // pred_check
        %p96 = pneg %p55
      $region14: #{visual_transformer_forward.9} parent=11 // pred_check_branch
        %98 = sbr.rel (%p96) target = $region16
      $region15: #{visual_transformer_forward.9} parent=11 // pred_region
        _
      $region16: #{visual_transformer_forward.9} parent=11 // pred_fallthru
        _
    $region12: #{visual_transformer_forward.9} parent=5 // pred_fallthru
      _
    %p99 = scmp.lt.s32.totalorder %s8, 2
    // Predicated region
    $region17: #{visual_transformer_forward.9} parent=5 // pred_check
      %p100 = pneg %p99
    $region18: #{visual_transformer_forward.9} parent=5 // pred_check_branch
      %102 = sbr.rel (%p100) target = $region20
    $region19: #{visual_transformer_forward.9} parent=5 // pred_region
      // Predicated region
      $region21: #{visual_transformer_forward.9} parent=19 // pred_check
        %p103 = pneg %p28
      $region22: #{visual_transformer_forward.9} parent=19 // pred_check_branch
        %105 = sbr.rel (%p103) target = $region24
      $region23: #{visual_transformer_forward.9} parent=19 // pred_region
        %s106 = smul.u32 2, %s8
        %p107 = scmp.lt.s32.totalorder %s106, 3
        %s108 = scalar_select %p107, %s106, 3
        %s109 = smul.addr %s108, 2
        %s110 = smul.addr %s109, 4
        %s111 = scalar_lea.vmem %s0, %s110
        %s112 = smul.u32 2, %s8
      $region24: #{visual_transformer_forward.9} parent=19 // pred_fallthru
        _
    $region20: #{visual_transformer_forward.9} parent=5 // pred_fallthru
      _
    %p113 = scmp.le.s32.totalorder 1, %s8
    %p114 = scmp.lt.s32.totalorder %s8, 3
    %p115 = pnand %p113, %p114
    %p116 = pneg %p115
    // Predicated region
    $region25: #{visual_transformer_forward.9} parent=5 // pred_check
      _
    $region26: #{visual_transformer_forward.9} parent=5 // pred_check_branch
      %118 = sbr.rel (%p115) target = $region28
    $region27: #{visual_transformer_forward.9} parent=5 // pred_region
      %s119 = ssub.s32 %s8, 1
      %s120 = smul.u32 2, %s13
      %p121 = scmp.lt.s32.totalorder %s120, 3
      %s122 = scalar_select %p121, %s120, 3
      %s123 = smul.addr %s122, 2
      %s124 = smul.addr %s123, 4
      %s125 = scalar_lea.vmem %s0, %s124
      %p126 = pneg %p34
      %p127 = pneg %p31
      %p128 = pneg %p55
      %p129 = pneg %p52
      %p130 = pneg %p81
      %p131 = pneg %p78
      %s132 = smul.u32 2, %s13
      %p133 = scmp.lt.s32.totalorder %s132, 3
      %s134 = scalar_select %p133, %s132, 3
      %s135 = smul.addr %s134, 4
      %s136 = scalar_lea.vmem %s2, %s135
      %s137 = smul.u32 2, %s13
      %p138 = scmp.lt.s32.totalorder %s137, 3
      %s139 = scalar_select %p138, %s137, 3
      %s140 = smul.addr %s139, 2
      %s141 = smul.addr %s140, 4
      %s142 = scalar_lea.vmem %s0, %s141
      %s143 = smul.u32 2, %s13
      %s144 = smul.u32 2, %s13
      %p145 = scmp.lt.s32.totalorder %s144, 3
      %s146 = scalar_select %p145, %s144, 3
      %s147 = smul.addr %s146, 4
      %s148 = scalar_lea.vmem %s2, %s147
      %s149 = smul.u32 2, %s13
      %v151 = vld [vmem:[%s142] sm:$0xff]
      %v152 = vld [vmem:[%s142 + $0x8] sm:$0xff]
      %v153 = vld [vmem:[%s1] sm:$0xf]
      %v154 = vld [vmem:[%s1 + $0x4] sm:$0xf]
      %v155 = vld [vmem:[%s1 + $0x8] sm:$0xf]
      %v156 = vld [vmem:[%s1 + $0xc] sm:$0xf]
      %v157 = vld [vmem:[%s1 + $0x10] sm:$0xf]
      %v158 = vld [vmem:[%s1 + $0x14] sm:$0xf]
      %v159 = vld [vmem:[%s1 + $0x18] sm:$0xf]
      %v160 = vld [vmem:[%s1 + $0x1c] sm:$0xf]
      %v161 = vld [vmem:[%s1 + $0x20] sm:$0xf]
      %v162 = vld [vmem:[%s1 + $0x24] sm:$0xf]
      %v163 = vld [vmem:[%s1 + $0x28] sm:$0xf]
      %v164 = vld [vmem:[%s1 + $0x2c] sm:$0xf]
      %v165 = vld [vmem:[%s1 + $0x30] sm:$0xf]
      %v166 = vld [vmem:[%s1 + $0x34] sm:$0xf]
      %v167 = vld [vmem:[%s1 + $0x38] sm:$0xf]
      %v168 = vld [vmem:[%s1 + $0x3c] sm:$0xf]
      %v169 = vld [vmem:[%s1 + $0x40] sm:$0xf]
      %v170 = vld [vmem:[%s1 + $0x44] sm:$0xf]
      %v171 = vld [vmem:[%s1 + $0x48] sm:$0xf]
      %v172 = vld [vmem:[%s1 + $0x4c] sm:$0xf]
      %v173 = vld [vmem:[%s1 + $0x50] sm:$0xf]
      %v174 = vld [vmem:[%s1 + $0x54] sm:$0xf]
      %v175 = vld [vmem:[%s1 + $0x58] sm:$0xf]
      %v176 = vld [vmem:[%s1 + $0x5c] sm:$0xf]
      %v177 = vld [vmem:[%s1 + $0x60] sm:$0xf]
      %v178 = vld [vmem:[%s1 + $0x64] sm:$0xf]
      %v179 = vld [vmem:[%s1 + $0x68] sm:$0xf]
      %v180 = vld [vmem:[%s1 + $0x6c] sm:$0xf]
      %v181 = vld [vmem:[%s1 + $0x70] sm:$0xf]
      %v182 = vld [vmem:[%s1 + $0x74] sm:$0xf]
      %v183 = vld [vmem:[%s1 + $0x78] sm:$0xf]
      %v184 = vld [vmem:[%s1 + $0x7c] sm:$0xf]
      %v187 = vunpack.c.l.b16 %v151
      %v188 = vunpack.c.h.b16 %v151
      %v189 = vunpack.c.l.b16 %v152
      %v190 = vunpack.c.h.b16 %v152
      %v191 = vpack.c.b16 %v189, %v187
      %v192 = vpack.c.b16 %v190, %v188
      %v227 = vunpack.c.l.b16 %v153
      %v228 = vunpack.c.l.b16 %v154
      %v229 = vunpack.c.l.b16 %v155
      %v230 = vunpack.c.l.b16 %v156
      %v231 = vunpack.c.l.b16 %v157
      %v232 = vunpack.c.l.b16 %v158
      %v233 = vunpack.c.l.b16 %v159
      %v234 = vunpack.c.l.b16 %v160
      %v235 = vunpack.c.l.b16 %v161
      %v236 = vunpack.c.l.b16 %v162
      %v237 = vunpack.c.l.b16 %v163
      %v238 = vunpack.c.l.b16 %v164
      %v239 = vunpack.c.l.b16 %v165
      %v240 = vunpack.c.l.b16 %v166
      %v241 = vunpack.c.l.b16 %v167
      %v242 = vunpack.c.l.b16 %v168
      %v243 = vunpack.c.l.b16 %v169
      %v244 = vunpack.c.l.b16 %v170
      %v245 = vunpack.c.l.b16 %v171
      %v246 = vunpack.c.l.b16 %v172
      %v247 = vunpack.c.l.b16 %v173
      %v248 = vunpack.c.l.b16 %v174
      %v249 = vunpack.c.l.b16 %v175
      %v250 = vunpack.c.l.b16 %v176
      %v251 = vunpack.c.l.b16 %v177
      %v252 = vunpack.c.l.b16 %v178
      %v253 = vunpack.c.l.b16 %v179
      %v254 = vunpack.c.l.b16 %v180
      %v255 = vunpack.c.l.b16 %v181
      %v256 = vunpack.c.l.b16 %v182
      %v257 = vunpack.c.l.b16 %v183
      %v258 = vunpack.c.l.b16 %v184
      %v259 = vpack.c.b16 %v228, %v227
      %v260 = vpack.c.b16 %v230, %v229
      %v261 = vpack.c.b16 %v232, %v231
      %v262 = vpack.c.b16 %v234, %v233
      %v263 = vpack.c.b16 %v236, %v235
      %v264 = vpack.c.b16 %v238, %v237
      %v265 = vpack.c.b16 %v240, %v239
      %v266 = vpack.c.b16 %v242, %v241
      %v267 = vpack.c.b16 %v244, %v243
      %v268 = vpack.c.b16 %v246, %v245
      %v269 = vpack.c.b16 %v248, %v247
      %v270 = vpack.c.b16 %v250, %v249
      %v271 = vpack.c.b16 %v252, %v251
      %v272 = vpack.c.b16 %v254, %v253
      %v273 = vpack.c.b16 %v256, %v255
      %v274 = vpack.c.b16 %v258, %v257
      %291 = vmatprep.subr.bf16.mxu0 0
      %292 = vmatpush1.bf16.msra.mxu0 %v266
      %293 = vmatprep.subr.bf16.mxu0 0
      %294 = vmatpush1.bf16.msra.mxu0 %v265
      %295 = vmatprep.subr.bf16.mxu0 0
      %296 = vmatpush1.bf16.msra.mxu0 %v264
      %297 = vmatprep.subr.bf16.mxu0 0
      %298 = vmatpush1.bf16.msra.mxu0 %v263
      %299 = vmatprep.subr.bf16.mxu0 0
      %300 = vmatpush1.bf16.msra.mxu0 %v262
      %301 = vmatprep.subr.bf16.mxu0 0
      %302 = vmatpush1.bf16.msra.mxu0 %v261
      %303 = vmatprep.subr.bf16.mxu0 0
      %304 = vmatpush1.bf16.msra.mxu0 %v260
      %305 = vmatprep.subr.bf16.mxu0 0
      %306 = vmatpush1.bf16.msra.mxu0 %v259
      %307 = vmatprep.subr.bf16.mxu0 0
      %308 = vmatpush2.bf16.msra.mxu0 %v274
      %309 = vmatprep.subr.bf16.mxu0 0
      %310 = vmatpush2.bf16.msra.mxu0 %v273
      %311 = vmatprep.subr.bf16.mxu0 0
      %312 = vmatpush2.bf16.msra.mxu0 %v272
      %313 = vmatprep.subr.bf16.mxu0 0
      %314 = vmatpush2.bf16.msra.mxu0 %v271
      %315 = vmatprep.subr.bf16.mxu0 0
      %316 = vmatpush2.bf16.msra.mxu0 %v270
      %317 = vmatprep.subr.bf16.mxu0 0
      %318 = vmatpush2.bf16.msra.mxu0 %v269
      %319 = vmatprep.subr.bf16.mxu0 0
      %320 = vmatpush2.bf16.msra.mxu0 %v268
      %321 = vmatprep.subr.bf16.mxu0 0
      %322 = vmatpush2.bf16.msra.mxu0 %v267
      %323 = vmatprep.mubr.bf16.mxu0 %v192
      %324 = vmatmul.mubr.bf16.gmra.mxu0 %v191
      %v325 = vpop.f32.mrf.mxu0
      %v326 = vadd.f32 0.0, %v325
      %v327 = vpop.f32.mrf.mxu0
      %v328 = vpop.f32.mrf.mxu0
      %v329 = vadd.f32 0.0, %v328
      %v330 = vpop.f32.mrf.mxu0
      %331 = vdwg.mxu0
      %v332 = vpack.c.bf16 %v329, %v326
      %v334 = vunpack.c.l.b16 %v332
      %v335 = vunpack.c.h.b16 %v332
      %v336 = vpack.c.b16 %v334, %v334
      %v337 = vpack.c.b16 %v335, %v335
      %340 = vst [vmem:[%s148] sm:$0xf] %v336
      %341 = vst [vmem:[%s148 + $0x4] sm:$0xf] %v337
      %s342 = smul.u32 2, %s13
      %p343 = scmp.lt.s32.totalorder %s342, 3
      %s344 = scalar_select %p343, %s342, 3
      %s345 = smul.addr %s344, 4
      %s346 = scalar_lea.vmem %s2, %s345
      // Predicated region
      $region29: #{visual_transformer_forward.9} parent=27 // pred_check
        %p347 = pneg %p78
      $region30: #{visual_transformer_forward.9} parent=27 // pred_check_branch
        %349 = sbr.rel (%p347) target = $region32
      $region31: #{visual_transformer_forward.9} parent=27 // pred_region
        %s350 = smul.u32 2, %s13
      $region32: #{visual_transformer_forward.9} parent=27 // pred_fallthru
        _
    $region28: #{visual_transformer_forward.9} parent=5 // pred_fallthru
      _
    %p351 = scmp.le.s32.totalorder 2, %s8
    // Predicated region
    $region33: #{visual_transformer_forward.9} parent=5 // pred_check
      %p352 = pneg %p351
    $region34: #{visual_transformer_forward.9} parent=5 // pred_check_branch
      %354 = sbr.rel (%p352) target = $region36
    $region35: #{visual_transformer_forward.9} parent=5 // pred_region
      %s355 = ssub.s32 %s8, 2
      // Predicated region
      $region37: #{visual_transformer_forward.9} parent=35 // pred_check
        %p356 = pneg %p84
      $region38: #{visual_transformer_forward.9} parent=35 // pred_check_branch
        %358 = sbr.rel (%p356) target = $region40
      $region39: #{visual_transformer_forward.9} parent=35 // pred_region
        %s359 = smul.u32 2, %s14
        %p360 = scmp.lt.s32.totalorder %s359, 3
        %s361 = scalar_select %p360, %s359, 3
        %s362 = smul.addr %s361, 4
        %s363 = scalar_lea.vmem %s2, %s362
      $region40: #{visual_transformer_forward.9} parent=35 // pred_fallthru
        _
    $region36: #{visual_transformer_forward.9} parent=5 // pred_fallthru
      _
  $region6: #{visual_transformer_forward.9} parent=0 // loop_footer
    %s12 = sadd.s32 1, %s8
  $region7: #{visual_transformer_forward.9} parent=0 // loop_footer_branch
    %7 = sbr.rel target = $region3
  $region8: #{visual_transformer_forward.9} parent=0 // loop_exit
    _

// kernel: visual_transformer_forward.11
$region0: #{visual_transformer_forward.11}
  #allocation0 [shape = 'u32[]', space=smem, size = 0x4, offset = 0x4, fixed_abs, tag = 'smem constant byte address 0x4 - core index']
  #allocation1 [shape = 'u32[144,128]{1,0:T(1,128)}', space=vmem, size = 0x12000, scoped, tag = 'internal scratch']
  %s0 = inlined_call_operand.vmem [shape: f32[48,128], index: 0, kind: input, shape index: {}]
  %s1 = inlined_call_operand.vmem [shape: f32[1,128], index: 1, kind: input, shape index: {}]
  %s2 = inlined_call_operand.vmem [shape: f32[1,128], index: 2, kind: input, shape index: {}]
  %s3 = inlined_call_operand.vmem [shape: bf16[128,384], index: 3, kind: input, shape index: {}]
  %s4 = inlined_call_operand.vmem [shape: f32[1,384], index: 4, kind: input, shape index: {}]
  %s5 = inlined_call_operand.vmem [shape: bf16[48,384], index: 5, kind: output, shape index: {}]
  %s6 = sld [smem:[#allocation0]]
  $region53: #{visual_transformer_forward.11} parent=0
    _
  %s8 = ssub.s32 1, %s6
  %s9 = scalar_select 0, %s8, %s6
  loop: start=0, step=1, limit=4
  $region2: #{visual_transformer_forward.11} parent=0 // loop_pre_header
    _
  $region3: #{visual_transformer_forward.11} parent=0 // loop_header
    %s11 = sphi 0, %s15
    %p12 = scmp.ge.s32.totalorder %s11, 4
    %s21 = sphi 0, %s23
    %s24 = sphi 0, %s21
    %s25 = sphi 0, %s24
    %s41 = sphi 0, %s25
    %s45 = sphi 0, %s45
    %s47 = sphi 0, %s45
    %s48 = sphi 0, %s47
    %s62 = sphi 0, %s48
    %s66 = sphi 0, %s66
    %s68 = sphi 0, %s66
    %s69 = sphi 0, %s68
    %s83 = sphi 0, %s69
    %s87 = sphi 0, %s87
    %s89 = sphi 0, %s87
    %s90 = sphi 0, %s89
    %s104 = sphi 0, %s90
    %s108 = sphi 0, %s108
    %s110 = sphi 0, %s108
    %s111 = sphi 0, %s110
    %s125 = sphi 0, %s111
    %s131 = sphi 0, %s133
    %s134 = sphi 0, %s131
    %s135 = sphi 0, %s134
    %s151 = sphi 0, %s135
  $region4: #{visual_transformer_forward.11} parent=0 // loop_header_branch
    %14 = sbr.rel (%p12) target = $region8
  $region5: #{visual_transformer_forward.11} parent=0 // loop_body
    %s16 = ssub.s32 %s11, 1
    %s17 = ssub.s32 %s11, 2
    %s18 = sadd.s32 %s11, 1
    %s19 = ssub.s32 %s11, %s18
    %p20 = scmp.eq.s32.totalorder %s19, 0
    %s22 = sadd.s32 %s21, 1
    %s23 = scalar_select %p20, %s21, %s22
    %p26 = pneg %p20
    %p27 = scmp.eq.s32.totalorder %s11, 1
    %p28 = por %p26, %p27
    %p29 = scmp.ne.s32.totalorder %s21, %s24
    %p30 = scmp.eq.s32.totalorder %s11, 0
    %p31 = por %p29, %p30
    %p32 = scmp.ne.s32.totalorder %s21, %s24
    %p33 = scmp.eq.s32.totalorder %s16, 1
    %p34 = por %p32, %p33
    %p35 = scmp.ne.s32.totalorder %s24, %s25
    %p36 = scmp.eq.s32.totalorder %s16, 0
    %p37 = por %p35, %p36
    %p38 = scmp.ne.s32.totalorder %s24, %s25
    %p39 = scmp.eq.s32.totalorder %s17, 1
    %p40 = por %p38, %p39
    %p42 = scmp.ne.s32.totalorder %s25, %s41
    %p43 = scmp.eq.s32.totalorder %s17, 0
    %p44 = por %p42, %p43
    %s46 = sadd.s32 %s45, 1
    %p49 = scmp.eq.s32.totalorder %s11, 1
    %p50 = scmp.ne.s32.totalorder %s45, %s47
    %p51 = scmp.eq.s32.totalorder %s11, 0
    %p52 = por %p50, %p51
    %p53 = scmp.ne.s32.totalorder %s45, %s47
    %p54 = scmp.eq.s32.totalorder %s16, 1
    %p55 = por %p53, %p54
    %p56 = scmp.ne.s32.totalorder %s47, %s48
    %p57 = scmp.eq.s32.totalorder %s16, 0
    %p58 = por %p56, %p57
    %p59 = scmp.ne.s32.totalorder %s47, %s48
    %p60 = scmp.eq.s32.totalorder %s17, 1
    %p61 = por %p59, %p60
    %p63 = scmp.ne.s32.totalorder %s48, %s62
    %p64 = scmp.eq.s32.totalorder %s17, 0
    %p65 = por %p63, %p64
    %s67 = sadd.s32 %s66, 1
    %p70 = scmp.eq.s32.totalorder %s11, 1
    %p71 = scmp.ne.s32.totalorder %s66, %s68
    %p72 = scmp.eq.s32.totalorder %s11, 0
    %p73 = por %p71, %p72
    %p74 = scmp.ne.s32.totalorder %s66, %s68
    %p75 = scmp.eq.s32.totalorder %s16, 1
    %p76 = por %p74, %p75
    %p77 = scmp.ne.s32.totalorder %s68, %s69
    %p78 = scmp.eq.s32.totalorder %s16, 0
    %p79 = por %p77, %p78
    %p80 = scmp.ne.s32.totalorder %s68, %s69
    %p81 = scmp.eq.s32.totalorder %s17, 1
    %p82 = por %p80, %p81
    %p84 = scmp.ne.s32.totalorder %s69, %s83
    %p85 = scmp.eq.s32.totalorder %s17, 0
    %p86 = por %p84, %p85
    %s88 = sadd.s32 %s87, 1
    %p91 = scmp.eq.s32.totalorder %s11, 1
    %p92 = scmp.ne.s32.totalorder %s87, %s89
    %p93 = scmp.eq.s32.totalorder %s11, 0
    %p94 = por %p92, %p93
    %p95 = scmp.ne.s32.totalorder %s87, %s89
    %p96 = scmp.eq.s32.totalorder %s16, 1
    %p97 = por %p95, %p96
    %p98 = scmp.ne.s32.totalorder %s89, %s90
    %p99 = scmp.eq.s32.totalorder %s16, 0
    %p100 = por %p98, %p99
    %p101 = scmp.ne.s32.totalorder %s89, %s90
    %p102 = scmp.eq.s32.totalorder %s17, 1
    %p103 = por %p101, %p102
    %p105 = scmp.ne.s32.totalorder %s90, %s104
    %p106 = scmp.eq.s32.totalorder %s17, 0
    %p107 = por %p105, %p106
    %s109 = sadd.s32 %s108, 1
    %p112 = scmp.eq.s32.totalorder %s11, 1
    %p113 = scmp.ne.s32.totalorder %s108, %s110
    %p114 = scmp.eq.s32.totalorder %s11, 0
    %p115 = por %p113, %p114
    %p116 = scmp.ne.s32.totalorder %s108, %s110
    %p117 = scmp.eq.s32.totalorder %s16, 1
    %p118 = por %p116, %p117
    %p119 = scmp.ne.s32.totalorder %s110, %s111
    %p120 = scmp.eq.s32.totalorder %s16, 0
    %p121 = por %p119, %p120
    %p122 = scmp.ne.s32.totalorder %s110, %s111
    %p123 = scmp.eq.s32.totalorder %s17, 1
    %p124 = por %p122, %p123
    %p126 = scmp.ne.s32.totalorder %s111, %s125
    %p127 = scmp.eq.s32.totalorder %s17, 0
    %p128 = por %p126, %p127
    %s129 = ssub.s32 %s11, %s18
    %p130 = scmp.eq.s32.totalorder %s129, 0
    %s132 = sadd.s32 %s131, 1
    %s133 = scalar_select %p130, %s131, %s132
    %p136 = pneg %p130
    %p137 = scmp.eq.s32.totalorder %s11, 1
    %p138 = por %p136, %p137
    %p139 = scmp.ne.s32.totalorder %s131, %s134
    %p140 = scmp.eq.s32.totalorder %s11, 0
    %p141 = por %p139, %p140
    %p142 = scmp.ne.s32.totalorder %s131, %s134
    %p143 = scmp.eq.s32.totalorder %s16, 1
    %p144 = por %p142, %p143
    %p145 = scmp.ne.s32.totalorder %s134, %s135
    %p146 = scmp.eq.s32.totalorder %s16, 0
    %p147 = por %p145, %p146
    %p148 = scmp.ne.s32.totalorder %s134, %s135
    %p149 = scmp.eq.s32.totalorder %s17, 1
    %p150 = por %p148, %p149
    %p152 = scmp.ne.s32.totalorder %s135, %s151
    %p153 = scmp.eq.s32.totalorder %s17, 0
    %p154 = por %p152, %p153
    %p155 = scmp.le.s32.totalorder 1, %s11
    %p156 = scmp.lt.s32.totalorder %s11, 3
    %p157 = pnand %p155, %p156
    %p158 = pneg %p157
    // Predicated region
    $region9: #{visual_transformer_forward.11} parent=5 // pred_check
      _
    $region10: #{visual_transformer_forward.11} parent=5 // pred_check_branch
      %160 = sbr.rel (%p157) target = $region12
    $region11: #{visual_transformer_forward.11} parent=5 // pred_region
      %s161 = ssub.s32 %s11, 1
      // Predicated region
      $region13: #{visual_transformer_forward.11} parent=11 // pred_check
        %p162 = pneg %p58
      $region14: #{visual_transformer_forward.11} parent=11 // pred_check_branch
        %164 = sbr.rel (%p162) target = $region16
      $region15: #{visual_transformer_forward.11} parent=11 // pred_region
        _
      $region16: #{visual_transformer_forward.11} parent=11 // pred_fallthru
        _
      // Predicated region
      $region17: #{visual_transformer_forward.11} parent=11 // pred_check
        %p165 = pneg %p79
      $region18: #{visual_transformer_forward.11} parent=11 // pred_check_branch
        %167 = sbr.rel (%p165) target = $region20
      $region19: #{visual_transformer_forward.11} parent=11 // pred_region
        _
      $region20: #{visual_transformer_forward.11} parent=11 // pred_fallthru
        _
      // Predicated region
      $region21: #{visual_transformer_forward.11} parent=11 // pred_check
        %p168 = pneg %p100
      $region22: #{visual_transformer_forward.11} parent=11 // pred_check_branch
        %170 = sbr.rel (%p168) target = $region24
      $region23: #{visual_transformer_forward.11} parent=11 // pred_region
        _
      $region24: #{visual_transformer_forward.11} parent=11 // pred_fallthru
        _
      // Predicated region
      $region25: #{visual_transformer_forward.11} parent=11 // pred_check
        %p171 = pneg %p121
      $region26: #{visual_transformer_forward.11} parent=11 // pred_check_branch
        %173 = sbr.rel (%p171) target = $region28
      $region27: #{visual_transformer_forward.11} parent=11 // pred_region
        _
      $region28: #{visual_transformer_forward.11} parent=11 // pred_fallthru
        _
    $region12: #{visual_transformer_forward.11} parent=5 // pred_fallthru
      _
    %p174 = scmp.lt.s32.totalorder %s11, 2
    // Predicated region
    $region29: #{visual_transformer_forward.11} parent=5 // pred_check
      %p175 = pneg %p174
    $region30: #{visual_transformer_forward.11} parent=5 // pred_check_branch
      %177 = sbr.rel (%p175) target = $region32
    $region31: #{visual_transformer_forward.11} parent=5 // pred_region
      // Predicated region
      $region33: #{visual_transformer_forward.11} parent=31 // pred_check
        %p178 = pneg %p31
      $region34: #{visual_transformer_forward.11} parent=31 // pred_check_branch
        %180 = sbr.rel (%p178) target = $region36
      $region35: #{visual_transformer_forward.11} parent=31 // pred_region
        %s181 = smul.u32 3, %s11
        %p182 = scmp.lt.s32.totalorder %s181, 5
        %s183 = scalar_select %p182, %s181, 5
        %s184 = smul.addr %s183, 8
        %s185 = scalar_lea.vmem %s0, %s184
        %s186 = smul.u32 3, %s11
      $region36: #{visual_transformer_forward.11} parent=31 // pred_fallthru
        _
    $region32: #{visual_transformer_forward.11} parent=5 // pred_fallthru
      _
    %p187 = scmp.le.s32.totalorder 1, %s11
    %p188 = scmp.lt.s32.totalorder %s11, 3
    %p189 = pnand %p187, %p188
    %p190 = pneg %p189
    // Predicated region
    $region37: #{visual_transformer_forward.11} parent=5 // pred_check
      _
    $region38: #{visual_transformer_forward.11} parent=5 // pred_check_branch
      %192 = sbr.rel (%p189) target = $region40
    $region39: #{visual_transformer_forward.11} parent=5 // pred_region
      %s193 = ssub.s32 %s11, 1
      %s194 = smul.u32 3, %s16
      %p195 = scmp.lt.s32.totalorder %s194, 5
      %s196 = scalar_select %p195, %s194, 5
      %s197 = smul.addr %s196, 8
      %s198 = scalar_lea.vmem %s0, %s197
      %p199 = pneg %p37
      %p200 = pneg %p34
      %p201 = pneg %p58
      %p202 = pneg %p55
      %p203 = pneg %p79
      %p204 = pneg %p76
      %p205 = pneg %p100
      %p206 = pneg %p97
      %p207 = pneg %p121
      %p208 = pneg %p118
      %p209 = pneg %p147
      %p210 = pneg %p144
      %s211 = smul.u32 3, %s16
      %p212 = scmp.lt.s32.totalorder %s211, 5
      %s213 = scalar_select %p212, %s211, 5
      %s214 = smul.addr %s213, 3
      %s215 = smul.addr %s214, 4
      %s216 = scalar_lea.vmem %s5, %s215
      %s217 = smul.u32 3, %s16
      %p218 = scmp.lt.s32.totalorder %s217, 5
      %s219 = scalar_select %p218, %s217, 5
      %s220 = smul.addr %s219, 8
      %s221 = scalar_lea.vmem %s0, %s220
      %s222 = smul.u32 3, %s16
      %s223 = smul.u32 3, %s16
      %p224 = scmp.lt.s32.totalorder %s223, 5
      %s225 = scalar_select %p224, %s223, 5
      %s226 = smul.addr %s225, 3
      %s227 = smul.addr %s226, 4
      %s228 = scalar_lea.vmem %s5, %s227
      %s229 = smul.u32 3, %s16
      %v231 = vld [vmem:[%s221] sm:$0xff]
      %v232 = vld [vmem:[%s221 + $0x8] sm:$0xff]
      %v233 = vld [vmem:[%s221 + $0x10] sm:$0xff]
      %v234 = vld [vmem:[%s1] sm:$0x1]
      %v235 = vld [vmem:[%s2] sm:$0x1]
      %236 = vadd.xlane.f32.xlu0 %v231
      %v237 = vpop.xlane.xlu0 %236
      %238 = vadd.xlane.f32.xlu0 %v232
      %v239 = vpop.xlane.xlu0 %238
      %240 = vadd.xlane.f32.xlu0 %v233
      %v241 = vpop.xlane.xlu0 %240
      %v242 = vrcp.pop 128.0
      %v243 = vmul.f32 %v237, %v242
      %v244 = vmul.f32 %v239, %v242
      %v245 = vmul.f32 %v241, %v242
      %v246 = vsub.f32 %v231, %v243
      %v247 = vsub.f32 %v232, %v244
      %v248 = vsub.f32 %v233, %v245
      %v249 = vmul.f32 %v246, %v246
      %v250 = vmul.f32 %v247, %v247
      %v251 = vmul.f32 %v248, %v248
      %252 = vadd.xlane.f32.xlu0 %v249
      %v253 = vpop.xlane.xlu0 %252
      %254 = vadd.xlane.f32.xlu0 %v250
      %v255 = vpop.xlane.xlu0 %254
      %256 = vadd.xlane.f32.xlu0 %v251
      %v257 = vpop.xlane.xlu0 %256
      %v258 = vmul.f32 %v253, %v242
      %v259 = vmul.f32 %v255, %v242
      %v260 = vmul.f32 %v257, %v242
      %v261 = vadd.f32 %v258, 1e-05
      %v262 = vadd.f32 %v259, 1e-05
      %v263 = vadd.f32 %v260, 1e-05
      %v264 = vrsqrt.pop %v261
      %v265 = vrsqrt.pop %v262
      %v266 = vrsqrt.pop %v263
      %v267 = vmul.f32 %v246, %v264
      %v268 = vmul.f32 %v247, %v265
      %v269 = vmul.f32 %v248, %v266
      %v271 = vlaneseq
      %v272 = vshrl.u32 %v271, 7
      %v273 = vsub.s32 0, %v272
      %v274 = vrot.slane %v234, %v273
      %v276 = vmul.f32 %v267, %v274
      %v277 = vmul.f32 %v268, %v274
      %v278 = vmul.f32 %v269, %v274
      %v280 = vlaneseq
      %v281 = vshrl.u32 %v280, 7
      %v282 = vsub.s32 0, %v281
      %v283 = vrot.slane %v235, %v282
      %v285 = vadd.f32 %v276, %v283
      %v286 = vadd.f32 %v277, %v283
      %v287 = vadd.f32 %v278, %v283
      %v288 = vpack.c.bf16 %v286, %v285
      %v289 = vpack.c.bf16 %v287, %v287
      %v290 = vld [vmem:[%s3] sm:$0xff]
      %v291 = vld [vmem:[%s3 + $0x8] sm:$0xf]
      %v292 = vld [vmem:[%s3 + $0xc] sm:$0xff]
      %v293 = vld [vmem:[%s3 + $0x14] sm:$0xf]
      %v294 = vld [vmem:[%s3 + $0x18] sm:$0xff]
      %v295 = vld [vmem:[%s3 + $0x20] sm:$0xf]
      %v296 = vld [vmem:[%s3 + $0x24] sm:$0xff]
      %v297 = vld [vmem:[%s3 + $0x2c] sm:$0xf]
      %v298 = vld [vmem:[%s3 + $0x30] sm:$0xff]
      %v299 = vld [vmem:[%s3 + $0x38] sm:$0xf]
      %v300 = vld [vmem:[%s3 + $0x3c] sm:$0xff]
      %v301 = vld [vmem:[%s3 + $0x44] sm:$0xf]
      %v302 = vld [vmem:[%s3 + $0x48] sm:$0xff]
      %v303 = vld [vmem:[%s3 + $0x50] sm:$0xf]
      %v304 = vld [vmem:[%s3 + $0x54] sm:$0xff]
      %v305 = vld [vmem:[%s3 + $0x5c] sm:$0xf]
      %v306 = vld [vmem:[%s3 + $0x60] sm:$0xff]
      %v307 = vld [vmem:[%s3 + $0x68] sm:$0xf]
      %v308 = vld [vmem:[%s3 + $0x6c] sm:$0xff]
      %v309 = vld [vmem:[%s3 + $0x74] sm:$0xf]
      %v310 = vld [vmem:[%s3 + $0x78] sm:$0xff]
      %v311 = vld [vmem:[%s3 + $0x80] sm:$0xf]
      %v312 = vld [vmem:[%s3 + $0x84] sm:$0xff]
      %v313 = vld [vmem:[%s3 + $0x8c] sm:$0xf]
      %v314 = vld [vmem:[%s3 + $0x90] sm:$0xff]
      %v315 = vld [vmem:[%s3 + $0x98] sm:$0xf]
      %v316 = vld [vmem:[%s3 + $0x9c] sm:$0xff]
      %v317 = vld [vmem:[%s3 + $0xa4] sm:$0xf]
      %v318 = vld [vmem:[%s3 + $0xa8] sm:$0xff]
      %v319 = vld [vmem:[%s3 + $0xb0] sm:$0xf]
      %v320 = vld [vmem:[%s3 + $0xb4] sm:$0xff]
      %v321 = vld [vmem:[%s3 + $0xbc] sm:$0xf]
      %v322 = vld [vmem:[%s4] sm:$0x7]
      %v324 = vlaneseq
      %v325 = vshrl.u32 %v324, 7
      %v326 = vsub.s32 0, %v325
      %v327 = vrot.slane %v322, %v326
      %v328 = vlaneseq
      %v329 = vshrl.u32 %v328, 7
      %v330 = vsub.s32 1, %v329
      %v331 = vrot.slane %v322, %v330
      %v332 = vlaneseq
      %v333 = vshrl.u32 %v332, 7
      %v334 = vsub.s32 2, %v333
      %v335 = vrot.slane %v322, %v334
      %v371 = vunpack.c.l.b16 %v290
      %v372 = vunpack.c.h.b16 %v290
      %v373 = vunpack.c.l.b16 %v291
      %v374 = vunpack.c.l.b16 %v292
      %v375 = vunpack.c.h.b16 %v292
      %v376 = vunpack.c.l.b16 %v293
      %v377 = vunpack.c.l.b16 %v294
      %v378 = vunpack.c.h.b16 %v294
      %v379 = vunpack.c.l.b16 %v295
      %v380 = vunpack.c.l.b16 %v296
      %v381 = vunpack.c.h.b16 %v296
      %v382 = vunpack.c.l.b16 %v297
      %v383 = vunpack.c.l.b16 %v298
      %v384 = vunpack.c.h.b16 %v298
      %v385 = vunpack.c.l.b16 %v299
      %v386 = vunpack.c.l.b16 %v300
      %v387 = vunpack.c.h.b16 %v300
      %v388 = vunpack.c.l.b16 %v301
      %v389 = vunpack.c.l.b16 %v302
      %v390 = vunpack.c.h.b16 %v302
      %v391 = vunpack.c.l.b16 %v303
      %v392 = vunpack.c.l.b16 %v304
      %v393 = vunpack.c.h.b16 %v304
      %v394 = vunpack.c.l.b16 %v305
      %v395 = vunpack.c.l.b16 %v306
      %v396 = vunpack.c.h.b16 %v306
      %v397 = vunpack.c.l.b16 %v307
      %v398 = vunpack.c.l.b16 %v308
      %v399 = vunpack.c.h.b16 %v308
      %v400 = vunpack.c.l.b16 %v309
      %v401 = vunpack.c.l.b16 %v310
      %v402 = vunpack.c.h.b16 %v310
      %v403 = vunpack.c.l.b16 %v311
      %v404 = vunpack.c.l.b16 %v312
      %v405 = vunpack.c.h.b16 %v312
      %v406 = vunpack.c.l.b16 %v313
      %v407 = vunpack.c.l.b16 %v314
      %v408 = vunpack.c.h.b16 %v314
      %v409 = vunpack.c.l.b16 %v315
      %v410 = vunpack.c.l.b16 %v316
      %v411 = vunpack.c.h.b16 %v316
      %v412 = vunpack.c.l.b16 %v317
      %v413 = vunpack.c.l.b16 %v318
      %v414 = vunpack.c.h.b16 %v318
      %v415 = vunpack.c.l.b16 %v319
      %v416 = vunpack.c.l.b16 %v320
      %v417 = vunpack.c.h.b16 %v320
      %v418 = vunpack.c.l.b16 %v321
      %v419 = vpack.c.b16 %v374, %v371
      %v420 = vpack.c.b16 %v375, %v372
      %v421 = vpack.c.b16 %v376, %v373
      %v422 = vpack.c.b16 %v380, %v377
      %v423 = vpack.c.b16 %v381, %v378
      %v424 = vpack.c.b16 %v382, %v379
      %v425 = vpack.c.b16 %v386, %v383
      %v426 = vpack.c.b16 %v387, %v384
      %v427 = vpack.c.b16 %v388, %v385
      %v428 = vpack.c.b16 %v392, %v389
      %v429 = vpack.c.b16 %v393, %v390
      %v430 = vpack.c.b16 %v394, %v391
      %v431 = vpack.c.b16 %v398, %v395
      %v432 = vpack.c.b16 %v399, %v396
      %v433 = vpack.c.b16 %v400, %v397
      %v434 = vpack.c.b16 %v404, %v401
      %v435 = vpack.c.b16 %v405, %v402
      %v436 = vpack.c.b16 %v406, %v403
      %v437 = vpack.c.b16 %v410, %v407
      %v438 = vpack.c.b16 %v411, %v408
      %v439 = vpack.c.b16 %v412, %v409
      %v440 = vpack.c.b16 %v416, %v413
      %v441 = vpack.c.b16 %v417, %v414
      %v442 = vpack.c.b16 %v418, %v415
      %467 = vmatprep.subr.bf16.mxu0 %v441
      %468 = vmatpush1.bf16.msra.mxu0 %v440
      %469 = vmatprep.subr.bf16.mxu0 %v438
      %470 = vmatpush1.bf16.msra.mxu0 %v437
      %471 = vmatprep.subr.bf16.mxu0 %v435
      %472 = vmatpush1.bf16.msra.mxu0 %v434
      %473 = vmatprep.subr.bf16.mxu0 %v432
      %474 = vmatpush1.bf16.msra.mxu0 %v431
      %475 = vmatprep.subr.bf16.mxu0 %v429
      %476 = vmatpush1.bf16.msra.mxu0 %v428
      %477 = vmatprep.subr.bf16.mxu0 %v426
      %478 = vmatpush1.bf16.msra.mxu0 %v425
      %479 = vmatprep.subr.bf16.mxu0 %v423
      %480 = vmatpush1.bf16.msra.mxu0 %v422
      %481 = vmatprep.subr.bf16.mxu0 %v420
      %482 = vmatpush1.bf16.msra.mxu0 %v419
      %483 = vmatprep.subr.bf16.mxu0 0
      %484 = vmatpush2.bf16.msra.mxu0 0
      %485 = vmatprep.subr.bf16.mxu0 0
      %486 = vmatpush2.bf16.msra.mxu0 0
      %487 = vmatprep.subr.bf16.mxu0 0
      %488 = vmatpush2.bf16.msra.mxu0 0
      %489 = vmatprep.subr.bf16.mxu0 0
      %490 = vmatpush2.bf16.msra.mxu0 0
      %491 = vmatprep.subr.bf16.mxu0 0
      %492 = vmatpush2.bf16.msra.mxu0 0
      %493 = vmatprep.subr.bf16.mxu0 0
      %494 = vmatpush2.bf16.msra.mxu0 0
      %495 = vmatprep.subr.bf16.mxu0 0
      %496 = vmatpush2.bf16.msra.mxu0 0
      %497 = vmatprep.subr.bf16.mxu0 0
      %498 = vmatpush2.bf16.msra.mxu0 0
      %499 = vmatprep.mubr.bf16.mxu0 0
      %500 = vmatmul.mubr.bf16.gmra.mxu0 %v288
      %v501 = vpop.f32.mrf.mxu0
      %v502 = vadd.f32 %v327, %v501
      %v503 = vpop.f32.mrf.mxu0
      %v504 = vadd.f32 %v331, %v503
      %v505 = vpop.f32.mrf.mxu0
      %v506 = vadd.f32 %v327, %v505
      %v507 = vpop.f32.mrf.mxu0
      %v508 = vadd.f32 %v331, %v507
      %509 = vmatprep.mubr.bf16.mxu0 0
      %510 = vmatmul.mubr.bf16.gmra.mxu0 %v289
      %v511 = vpop.f32.mrf.mxu0
      %v512 = vadd.f32 %v327, %v511
      %v513 = vpop.f32.mrf.mxu0
      %v514 = vadd.f32 %v331, %v513
      %v515 = vpop.f32.mrf.mxu0
      %v516 = vpop.f32.mrf.mxu0
      %517 = vdwg.mxu0
      %518 = vmatprep.subr.bf16.mxu0 0
      %519 = vmatpush1.bf16.msra.mxu0 %v442
      %520 = vmatprep.subr.bf16.mxu0 0
      %521 = vmatpush1.bf16.msra.mxu0 %v439
      %522 = vmatprep.subr.bf16.mxu0 0
      %523 = vmatpush1.bf16.msra.mxu0 %v436
      %524 = vmatprep.subr.bf16.mxu0 0
      %525 = vmatpush1.bf16.msra.mxu0 %v433
      %526 = vmatprep.subr.bf16.mxu0 0
      %527 = vmatpush1.bf16.msra.mxu0 %v430
      %528 = vmatprep.subr.bf16.mxu0 0
      %529 = vmatpush1.bf16.msra.mxu0 %v427
      %530 = vmatprep.subr.bf16.mxu0 0
      %531 = vmatpush1.bf16.msra.mxu0 %v424
      %532 = vmatprep.subr.bf16.mxu0 0
      %533 = vmatpush1.bf16.msra.mxu0 %v421
      %534 = vmatprep.subr.bf16.mxu0 0
      %535 = vmatpush2.bf16.msra.mxu0 0
      %536 = vmatprep.subr.bf16.mxu0 0
      %537 = vmatpush2.bf16.msra.mxu0 0
      %538 = vmatprep.subr.bf16.mxu0 0
      %539 = vmatpush2.bf16.msra.mxu0 0
      %540 = vmatprep.subr.bf16.mxu0 0
      %541 = vmatpush2.bf16.msra.mxu0 0
      %542 = vmatprep.subr.bf16.mxu0 0
      %543 = vmatpush2.bf16.msra.mxu0 0
      %544 = vmatprep.subr.bf16.mxu0 0
      %545 = vmatpush2.bf16.msra.mxu0 0
      %546 = vmatprep.subr.bf16.mxu0 0
      %547 = vmatpush2.bf16.msra.mxu0 0
      %548 = vmatprep.subr.bf16.mxu0 0
      %549 = vmatpush2.bf16.msra.mxu0 0
      %550 = vmatprep.mubr.bf16.mxu0 0
      %551 = vmatmul.mubr.bf16.gmra.mxu0 %v288
      %v552 = vpop.f32.mrf.mxu0
      %v553 = vadd.f32 %v335, %v552
      %v554 = vpop.f32.mrf.mxu0
      %v555 = vpop.f32.mrf.mxu0
      %v556 = vadd.f32 %v335, %v555
      %v557 = vpop.f32.mrf.mxu0
      %558 = vmatprep.mubr.bf16.mxu0 0
      %559 = vmatmul.mubr.bf16.gmra.mxu0 %v289
      %v560 = vpop.f32.mrf.mxu0
      %v561 = vadd.f32 %v335, %v560
      %v562 = vpop.f32.mrf.mxu0
      %v563 = vpop.f32.mrf.mxu0
      %v564 = vpop.f32.mrf.mxu0
      %565 = vdwg.mxu0
      %v566 = vpack.c.bf16 %v506, %v502
      %v567 = vpack.c.bf16 %v508, %v504
      %v568 = vpack.c.bf16 %v556, %v553
      %v569 = vpack.c.bf16 %v512, %v512
      %v570 = vpack.c.bf16 %v514, %v514
      %v571 = vpack.c.bf16 %v561, %v561
      %v578 = vunpack.c.l.b16 %v566
      %v579 = vunpack.c.l.b16 %v567
      %v580 = vunpack.c.l.b16 %v568
      %v581 = vunpack.c.h.b16 %v566
      %v582 = vunpack.c.h.b16 %v567
      %v583 = vunpack.c.h.b16 %v568
      %v584 = vunpack.c.l.b16 %v569
      %v585 = vunpack.c.l.b16 %v570
      %v586 = vunpack.c.l.b16 %v571
      %v587 = vpack.c.b16 %v579, %v578
      %v588 = vpack.c.b16 %v580, %v580
      %v589 = vpack.c.b16 %v582, %v581
      %v590 = vpack.c.b16 %v583, %v583
      %v591 = vpack.c.b16 %v585, %v584
      %v592 = vpack.c.b16 %v586, %v586
      %599 = vst [vmem:[%s228] sm:$0xff] %v587
      %600 = vst [vmem:[%s228 + $0x8] sm:$0xf] %v588
      %601 = vst [vmem:[%s228 + $0xc] sm:$0xff] %v589
      %602 = vst [vmem:[%s228 + $0x14] sm:$0xf] %v590
      %603 = vst [vmem:[%s228 + $0x18] sm:$0xff] %v591
      %604 = vst [vmem:[%s228 + $0x20] sm:$0xf] %v592
      %s605 = smul.u32 3, %s16
      %p606 = scmp.lt.s32.totalorder %s605, 5
      %s607 = scalar_select %p606, %s605, 5
      %s608 = smul.addr %s607, 3
      %s609 = smul.addr %s608, 4
      %s610 = scalar_lea.vmem %s5, %s609
      // Predicated region
      $region41: #{visual_transformer_forward.11} parent=39 // pred_check
        %p611 = pneg %p144
      $region42: #{visual_transformer_forward.11} parent=39 // pred_check_branch
        %613 = sbr.rel (%p611) target = $region44
      $region43: #{visual_transformer_forward.11} parent=39 // pred_region
        %s614 = smul.u32 3, %s16
      $region44: #{visual_transformer_forward.11} parent=39 // pred_fallthru
        _
    $region40: #{visual_transformer_forward.11} parent=5 // pred_fallthru
      _
    %p615 = scmp.le.s32.totalorder 2, %s11
    // Predicated region
    $region45: #{visual_transformer_forward.11} parent=5 // pred_check
      %p616 = pneg %p615
    $region46: #{visual_transformer_forward.11} parent=5 // pred_check_branch
      %618 = sbr.rel (%p616) target = $region48
    $region47: #{visual_transformer_forward.11} parent=5 // pred_region
      %s619 = ssub.s32 %s11, 2
      // Predicated region
      $region49: #{visual_transformer_forward.11} parent=47 // pred_check
        %p620 = pneg %p150
      $region50: #{visual_transformer_forward.11} parent=47 // pred_check_branch
        %622 = sbr.rel (%p620) target = $region52
      $region51: #{visual_transformer_forward.11} parent=47 // pred_region
        %s623 = smul.u32 3, %s17
        %p624 = scmp.lt.s32.totalorder %s623, 5
        %s625 = scalar_select %p624, %s623, 5
        %s626 = smul.addr %s625, 3
        %s627 = smul.addr %s626, 4
        %s628 = scalar_lea.vmem %s5, %s627
      $region52: #{visual_transformer_forward.11} parent=47 // pred_fallthru
        _
    $region48: #{visual_transformer_forward.11} parent=5 // pred_fallthru
      _
  $region6: #{visual_transformer_forward.11} parent=0 // loop_footer
    %s15 = sadd.s32 1, %s11
  $region7: #{visual_transformer_forward.11} parent=0 // loop_footer_branch
    %10 = sbr.rel target = $region3
  $region8: #{visual_transformer_forward.11} parent=0 // loop_exit
    _

// kernel: visual_transformer_forward.12
$region0: #{visual_transformer_forward.12}
  #allocation0 [shape = 'u32[]', space=smem, size = 0x4, offset = 0x4, fixed_abs, tag = 'smem constant byte address 0x4 - core index']
  #allocation1 [shape = 'u32[144,128]{1,0:T(1,128)}', space=vmem, size = 0x12000, scoped, tag = 'internal scratch']
  %s0 = inlined_call_operand.vmem [shape: bf16[2,24,384], index: 0, kind: input, shape index: {}]
  %s1 = inlined_call_operand.vmem [shape: bf16[128,128], index: 1, kind: input, shape index: {}]
  %s2 = inlined_call_operand.vmem [shape: f32[1,128], index: 2, kind: input, shape index: {}]
  %s3 = inlined_call_operand.vmem [shape: f32[2,24,128], index: 3, kind: input, shape index: {}]
  %s4 = inlined_call_operand.vmem [shape: f32[2,24,128], index: 4, kind: output, shape index: {}]
  %s5 = sld [smem:[#allocation0]]
  $region49: #{visual_transformer_forward.12} parent=0
    _
  %s7 = ssub.s32 1, %s5
  %s8 = scalar_select 0, %s7, %s5
  loop: start=0, step=1, limit=4
  $region2: #{visual_transformer_forward.12} parent=0 // loop_pre_header
    _
  $region3: #{visual_transformer_forward.12} parent=0 // loop_header
    %s10 = sphi 0, %s14
    %p11 = scmp.ge.s32.totalorder %s10, 4
    %s20 = sphi 0, %s22
    %s23 = sphi 0, %s20
    %s24 = sphi 0, %s23
    %s40 = sphi 0, %s24
    %s44 = sphi 0, %s44
    %s46 = sphi 0, %s44
    %s47 = sphi 0, %s46
    %s61 = sphi 0, %s47
    %s65 = sphi 0, %s65
    %s67 = sphi 0, %s65
    %s68 = sphi 0, %s67
    %s82 = sphi 0, %s68
    %s88 = sphi 0, %s90
    %s91 = sphi 0, %s88
    %s92 = sphi 0, %s91
    %s108 = sphi 0, %s92
    %s114 = sphi 0, %s116
    %s117 = sphi 0, %s114
    %s118 = sphi 0, %s117
    %s134 = sphi 0, %s118
  $region4: #{visual_transformer_forward.12} parent=0 // loop_header_branch
    %13 = sbr.rel (%p11) target = $region8
  $region5: #{visual_transformer_forward.12} parent=0 // loop_body
    %s15 = ssub.s32 %s10, 1
    %s16 = ssub.s32 %s10, 2
    %s17 = sadd.s32 %s10, 1
    %s18 = ssub.s32 %s10, %s17
    %p19 = scmp.eq.s32.totalorder %s18, 0
    %s21 = sadd.s32 %s20, 1
    %s22 = scalar_select %p19, %s20, %s21
    %p25 = pneg %p19
    %p26 = scmp.eq.s32.totalorder %s10, 1
    %p27 = por %p25, %p26
    %p28 = scmp.ne.s32.totalorder %s20, %s23
    %p29 = scmp.eq.s32.totalorder %s10, 0
    %p30 = por %p28, %p29
    %p31 = scmp.ne.s32.totalorder %s20, %s23
    %p32 = scmp.eq.s32.totalorder %s15, 1
    %p33 = por %p31, %p32
    %p34 = scmp.ne.s32.totalorder %s23, %s24
    %p35 = scmp.eq.s32.totalorder %s15, 0
    %p36 = por %p34, %p35
    %p37 = scmp.ne.s32.totalorder %s23, %s24
    %p38 = scmp.eq.s32.totalorder %s16, 1
    %p39 = por %p37, %p38
    %p41 = scmp.ne.s32.totalorder %s24, %s40
    %p42 = scmp.eq.s32.totalorder %s16, 0
    %p43 = por %p41, %p42
    %s45 = sadd.s32 %s44, 1
    %p48 = scmp.eq.s32.totalorder %s10, 1
    %p49 = scmp.ne.s32.totalorder %s44, %s46
    %p50 = scmp.eq.s32.totalorder %s10, 0
    %p51 = por %p49, %p50
    %p52 = scmp.ne.s32.totalorder %s44, %s46
    %p53 = scmp.eq.s32.totalorder %s15, 1
    %p54 = por %p52, %p53
    %p55 = scmp.ne.s32.totalorder %s46, %s47
    %p56 = scmp.eq.s32.totalorder %s15, 0
    %p57 = por %p55, %p56
    %p58 = scmp.ne.s32.totalorder %s46, %s47
    %p59 = scmp.eq.s32.totalorder %s16, 1
    %p60 = por %p58, %p59
    %p62 = scmp.ne.s32.totalorder %s47, %s61
    %p63 = scmp.eq.s32.totalorder %s16, 0
    %p64 = por %p62, %p63
    %s66 = sadd.s32 %s65, 1
    %p69 = scmp.eq.s32.totalorder %s10, 1
    %p70 = scmp.ne.s32.totalorder %s65, %s67
    %p71 = scmp.eq.s32.totalorder %s10, 0
    %p72 = por %p70, %p71
    %p73 = scmp.ne.s32.totalorder %s65, %s67
    %p74 = scmp.eq.s32.totalorder %s15, 1
    %p75 = por %p73, %p74
    %p76 = scmp.ne.s32.totalorder %s67, %s68
    %p77 = scmp.eq.s32.totalorder %s15, 0
    %p78 = por %p76, %p77
    %p79 = scmp.ne.s32.totalorder %s67, %s68
    %p80 = scmp.eq.s32.totalorder %s16, 1
    %p81 = por %p79, %p80
    %p83 = scmp.ne.s32.totalorder %s68, %s82
    %p84 = scmp.eq.s32.totalorder %s16, 0
    %p85 = por %p83, %p84
    %s86 = ssub.s32 %s10, %s17
    %p87 = scmp.eq.s32.totalorder %s86, 0
    %s89 = sadd.s32 %s88, 1
    %s90 = scalar_select %p87, %s88, %s89
    %p93 = pneg %p87
    %p94 = scmp.eq.s32.totalorder %s10, 1
    %p95 = por %p93, %p94
    %p96 = scmp.ne.s32.totalorder %s88, %s91
    %p97 = scmp.eq.s32.totalorder %s10, 0
    %p98 = por %p96, %p97
    %p99 = scmp.ne.s32.totalorder %s88, %s91
    %p100 = scmp.eq.s32.totalorder %s15, 1
    %p101 = por %p99, %p100
    %p102 = scmp.ne.s32.totalorder %s91, %s92
    %p103 = scmp.eq.s32.totalorder %s15, 0
    %p104 = por %p102, %p103
    %p105 = scmp.ne.s32.totalorder %s91, %s92
    %p106 = scmp.eq.s32.totalorder %s16, 1
    %p107 = por %p105, %p106
    %p109 = scmp.ne.s32.totalorder %s92, %s108
    %p110 = scmp.eq.s32.totalorder %s16, 0
    %p111 = por %p109, %p110
    %s112 = ssub.s32 %s10, %s17
    %p113 = scmp.eq.s32.totalorder %s112, 0
    %s115 = sadd.s32 %s114, 1
    %s116 = scalar_select %p113, %s114, %s115
    %p119 = pneg %p113
    %p120 = scmp.eq.s32.totalorder %s10, 1
    %p121 = por %p119, %p120
    %p122 = scmp.ne.s32.totalorder %s114, %s117
    %p123 = scmp.eq.s32.totalorder %s10, 0
    %p124 = por %p122, %p123
    %p125 = scmp.ne.s32.totalorder %s114, %s117
    %p126 = scmp.eq.s32.totalorder %s15, 1
    %p127 = por %p125, %p126
    %p128 = scmp.ne.s32.totalorder %s117, %s118
    %p129 = scmp.eq.s32.totalorder %s15, 0
    %p130 = por %p128, %p129
    %p131 = scmp.ne.s32.totalorder %s117, %s118
    %p132 = scmp.eq.s32.totalorder %s16, 1
    %p133 = por %p131, %p132
    %p135 = scmp.ne.s32.totalorder %s118, %s134
    %p136 = scmp.eq.s32.totalorder %s16, 0
    %p137 = por %p135, %p136
    %p138 = scmp.le.s32.totalorder 1, %s10
    %p139 = scmp.lt.s32.totalorder %s10, 3
    %p140 = pnand %p138, %p139
    %p141 = pneg %p140
    // Predicated region
    $region9: #{visual_transformer_forward.12} parent=5 // pred_check
      _
    $region10: #{visual_transformer_forward.12} parent=5 // pred_check_branch
      %143 = sbr.rel (%p140) target = $region12
    $region11: #{visual_transformer_forward.12} parent=5 // pred_region
      %s144 = ssub.s32 %s10, 1
      // Predicated region
      $region13: #{visual_transformer_forward.12} parent=11 // pred_check
        %p145 = pneg %p57
      $region14: #{visual_transformer_forward.12} parent=11 // pred_check_branch
        %147 = sbr.rel (%p145) target = $region16
      $region15: #{visual_transformer_forward.12} parent=11 // pred_region
        _
      $region16: #{visual_transformer_forward.12} parent=11 // pred_fallthru
        _
      // Predicated region
      $region17: #{visual_transformer_forward.12} parent=11 // pred_check
        %p148 = pneg %p78
      $region18: #{visual_transformer_forward.12} parent=11 // pred_check_branch
        %150 = sbr.rel (%p148) target = $region20
      $region19: #{visual_transformer_forward.12} parent=11 // pred_region
        _
      $region20: #{visual_transformer_forward.12} parent=11 // pred_fallthru
        _
    $region12: #{visual_transformer_forward.12} parent=5 // pred_fallthru
      _
    %p151 = scmp.lt.s32.totalorder %s10, 2
    // Predicated region
    $region21: #{visual_transformer_forward.12} parent=5 // pred_check
      %p152 = pneg %p151
    $region22: #{visual_transformer_forward.12} parent=5 // pred_check_branch
      %154 = sbr.rel (%p152) target = $region24
    $region23: #{visual_transformer_forward.12} parent=5 // pred_region
      // Predicated region
      $region25: #{visual_transformer_forward.12} parent=23 // pred_check
        %p155 = pneg %p30
      $region26: #{visual_transformer_forward.12} parent=23 // pred_check_branch
        %157 = sbr.rel (%p155) target = $region28
      $region27: #{visual_transformer_forward.12} parent=23 // pred_region
        %p158 = scmp.lt.s32.totalorder %s10, 1
        %s159 = scalar_select %p158, %s10, 1
        %s160 = smul.addr %s159, 9
        %s161 = smul.addr %s160, 4
        %s162 = scalar_lea.vmem %s0, %s161
      $region28: #{visual_transformer_forward.12} parent=23 // pred_fallthru
        _
      // Predicated region
      $region29: #{visual_transformer_forward.12} parent=23 // pred_check
        %p163 = pneg %p98
      $region30: #{visual_transformer_forward.12} parent=23 // pred_check_branch
        %165 = sbr.rel (%p163) target = $region32
      $region31: #{visual_transformer_forward.12} parent=23 // pred_region
        %p166 = scmp.lt.s32.totalorder %s10, 1
        %s167 = scalar_select %p166, %s10, 1
        %s168 = smul.addr %s167, 3
        %s169 = smul.addr %s168, 8
        %s170 = scalar_lea.vmem %s3, %s169
      $region32: #{visual_transformer_forward.12} parent=23 // pred_fallthru
        _
    $region24: #{visual_transformer_forward.12} parent=5 // pred_fallthru
      _
    %p171 = scmp.le.s32.totalorder 1, %s10
    %p172 = scmp.lt.s32.totalorder %s10, 3
    %p173 = pnand %p171, %p172
    %p174 = pneg %p173
    // Predicated region
    $region33: #{visual_transformer_forward.12} parent=5 // pred_check
      _
    $region34: #{visual_transformer_forward.12} parent=5 // pred_check_branch
      %176 = sbr.rel (%p173) target = $region36
    $region35: #{visual_transformer_forward.12} parent=5 // pred_region
      %s177 = ssub.s32 %s10, 1
      %p178 = scmp.lt.s32.totalorder %s15, 1
      %s179 = scalar_select %p178, %s15, 1
      %s180 = smul.addr %s179, 9
      %s181 = smul.addr %s180, 4
      %s182 = scalar_lea.vmem %s0, %s181
      %p183 = pneg %p36
      %p184 = pneg %p33
      %p185 = pneg %p57
      %p186 = pneg %p54
      %p187 = pneg %p78
      %p188 = pneg %p75
      %p189 = scmp.lt.s32.totalorder %s15, 1
      %s190 = scalar_select %p189, %s15, 1
      %s191 = smul.addr %s190, 3
      %s192 = smul.addr %s191, 8
      %s193 = scalar_lea.vmem %s3, %s192
      %p194 = pneg %p104
      %p195 = pneg %p101
      %p196 = pneg %p130
      %p197 = pneg %p127
      %p198 = scmp.lt.s32.totalorder %s15, 1
      %s199 = scalar_select %p198, %s15, 1
      %s200 = smul.addr %s199, 3
      %s201 = smul.addr %s200, 8
      %s202 = scalar_lea.vmem %s4, %s201
      %p203 = scmp.lt.s32.totalorder %s15, 1
      %s204 = scalar_select %p203, %s15, 1
      %s205 = smul.addr %s204, 9
      %s206 = smul.addr %s205, 4
      %s207 = scalar_lea.vmem %s0, %s206
      %p208 = scmp.lt.s32.totalorder %s15, 1
      %s209 = scalar_select %p208, %s15, 1
      %s210 = smul.addr %s209, 3
      %s211 = smul.addr %s210, 8
      %s212 = scalar_lea.vmem %s3, %s211
      %p213 = scmp.lt.s32.totalorder %s15, 1
      %s214 = scalar_select %p213, %s15, 1
      %s215 = smul.addr %s214, 3
      %s216 = smul.addr %s215, 8
      %s217 = scalar_lea.vmem %s4, %s216
      %v219 = vld [vmem:[%s207] sm:$0xff]
      %v220 = vld [vmem:[%s207 + $0x8] sm:$0xf]
      %v221 = vld [vmem:[%s207 + $0xc] sm:$0xff]
      %v222 = vld [vmem:[%s207 + $0x14] sm:$0xf]
      %v223 = vld [vmem:[%s207 + $0x18] sm:$0xff]
      %v224 = vld [vmem:[%s207 + $0x20] sm:$0xf]
      %v228 = vunpack.c.l.b16 %v219
      %v229 = vunpack.c.l.b16 %v221
      %v230 = vunpack.c.l.b16 %v223
      %v231 = vpack.c.b16 %v229, %v228
      %v232 = vpack.c.b16 %v230, %v230
      %v233 = vunpack.c.h.b16 %v219
      %v234 = vunpack.c.h.b16 %v221
      %v235 = vunpack.c.h.b16 %v223
      %v236 = vpack.c.b16 %v234, %v233
      %v237 = vpack.c.b16 %v235, %v235
      %vm238 = vcmask 261120
      %v240 = vsel %vm238, %v231, 0
      %v243 = vsel %vm238, %v232, 0
      %v246 = vsel %vm238, %v236, 0
      %v249 = vsel %vm238, %v237, 0
      %251 = vmatprep.subr.bf16.mxu0 0
      %252 = vmatpush1.bf16.xpose.msra.mxu0 0
      %253 = vmatprep.subr.bf16.mxu0 0
      %254 = vmatpush1.bf16.xpose.msra.mxu0 0
      %255 = vmatprep.subr.bf16.mxu0 0
      %256 = vmatpush1.bf16.xpose.msra.mxu0 0
      %257 = vmatprep.subr.bf16.mxu0 0
      %258 = vmatpush1.bf16.xpose.msra.mxu0 0
      %259 = vmatprep.subr.bf16.mxu0 0
      %260 = vmatpush1.bf16.xpose.msra.mxu0 0
      %261 = vmatprep.subr.bf16.mxu0 0
      %262 = vmatpush1.bf16.xpose.msra.mxu0 0
      %263 = vmatprep.subr.bf16.mxu0 0
      %264 = vmatpush1.bf16.xpose.msra.mxu0 %v249
      %265 = vmatprep.subr.bf16.mxu0 0
      %266 = vmatpush1.bf16.xpose.msra.mxu0 %v246
      %267 = vmatprep.subr.bf16.mxu0 0
      %268 = vmatpush2.bf16.xpose.msra.mxu0 0
      %269 = vmatprep.subr.bf16.mxu0 0
      %270 = vmatpush2.bf16.xpose.msra.mxu0 0
      %271 = vmatprep.subr.bf16.mxu0 0
      %272 = vmatpush2.bf16.xpose.msra.mxu0 0
      %273 = vmatprep.subr.bf16.mxu0 0
      %274 = vmatpush2.bf16.xpose.msra.mxu0 0
      %275 = vmatprep.subr.bf16.mxu0 0
      %276 = vmatpush2.bf16.xpose.msra.mxu0 0
      %277 = vmatprep.subr.bf16.mxu0 0
      %278 = vmatpush2.bf16.xpose.msra.mxu0 0
      %279 = vmatprep.subr.bf16.mxu0 0
      %280 = vmatpush2.bf16.xpose.msra.mxu0 0
      %281 = vmatprep.subr.bf16.mxu0 0
      %282 = vmatpush2.bf16.xpose.msra.mxu0 0
      %283 = vmatprep.mubr.bf16.mxu0 0
      %284 = vmatmul.mubr.bf16.gmra.mxu0 %v240
      %v285 = vpop.f32.mrf.mxu0
      %v286 = vadd.f32 0.0, %v285
      %v287 = vpop.f32.mrf.mxu0
      %v288 = vpop.f32.mrf.mxu0
      %v289 = vadd.f32 0.0, %v288
      %v290 = vpop.f32.mrf.mxu0
      %291 = vmatprep.mubr.bf16.mxu0 0
      %292 = vmatmul.mubr.bf16.gmra.mxu0 %v243
      %v293 = vpop.f32.mrf.mxu0
      %v294 = vadd.f32 0.0, %v293
      %v295 = vpop.f32.mrf.mxu0
      %v296 = vpop.f32.mrf.mxu0
      %v297 = vpop.f32.mrf.mxu0
      %298 = vdwg.mxu0
      %v299 = vmul.f32 %v286, 0.17677669
      %v300 = vmul.f32 %v289, 0.17677669
      %v301 = vmul.f32 %v294, 0.17677669
      %v302 = vlaneseq
      %v303 = vand.u32 %v302, 127
      %vm304 = vcmp.lt.s32.totalorder %v303, 17
      %v305 = vsel %vm304, %v299, -1e+30
      %v306 = vsel %vm304, %v300, -1e+30
      %v307 = vsel %vm304, %v301, -1e+30
      %vm308 = vcmask 195584
      %v309 = vsel %vm308, %v305, -inf
      %310 = vmax.xlane.f32.xlu0 %v309
      %v311 = vpop.xlane.xlu0 %310
      %v312 = vsel %vm308, %v306, -inf
      %313 = vmax.xlane.f32.xlu0 %v312
      %v314 = vpop.xlane.xlu0 %313
      %v315 = vsel %vm308, %v307, -inf
      %316 = vmax.xlane.f32.xlu0 %v315
      %v317 = vpop.xlane.xlu0 %316
      %v318 = vsub.f32 %v305, %v311
      %v319 = vsub.f32 %v306, %v314
      %v320 = vsub.f32 %v307, %v317
      %v321 = vmul.f32 %v318, 1.442695
      %v322 = vpow.pop %v321
      %v323 = vmul.f32 %v319, 1.442695
      %v324 = vpow.pop %v323
      %v325 = vmul.f32 %v320, 1.442695
      %v326 = vpow.pop %v325
      %v327 = vsel %vm308, %v322, 0.0
      %328 = vadd.xlane.f32.xlu0 %v327
      %v329 = vpop.xlane.xlu0 %328
      %v330 = vsel %vm308, %v324, 0.0
      %331 = vadd.xlane.f32.xlu0 %v330
      %v332 = vpop.xlane.xlu0 %331
      %v333 = vsel %vm308, %v326, 0.0
      %334 = vadd.xlane.f32.xlu0 %v333
      %v335 = vpop.xlane.xlu0 %334
      %v336 = vrcp.pop %v329
      %v337 = vrcp.pop %v332
      %v338 = vrcp.pop %v335
      %v339 = vmul.f32 %v322, %v336
      %v340 = vmul.f32 %v324, %v337
      %v341 = vmul.f32 %v326, %v338
      %v342 = vpack.c.bf16 %v340, %v339
      %v343 = vpack.c.bf16 %v341, %v341
      %v347 = vunpack.c.l.b16 %v220
      %v348 = vunpack.c.l.b16 %v222
      %v349 = vunpack.c.l.b16 %v224
      %v350 = vpack.c.b16 %v348, %v347
      %v351 = vpack.c.b16 %v349, %v349
      %v354 = vsel %vm308, %v342, 0
      %v357 = vsel %vm308, %v343, 0
      %vm359 = vcmask 1043456
      %v361 = vsel %vm359, %v351, 0
      %363 = vmatprep.subr.bf16.mxu0 0
      %364 = vmatpush1.bf16.msra.mxu0 0
      %365 = vmatprep.subr.bf16.mxu0 0
      %366 = vmatpush1.bf16.msra.mxu0 0
      %367 = vmatprep.subr.bf16.mxu0 0
      %368 = vmatpush1.bf16.msra.mxu0 0
      %369 = vmatprep.subr.bf16.mxu0 0
      %370 = vmatpush1.bf16.msra.mxu0 0
      %371 = vmatprep.subr.bf16.mxu0 0
      %372 = vmatpush1.bf16.msra.mxu0 0
      %373 = vmatprep.subr.bf16.mxu0 0
      %374 = vmatpush1.bf16.msra.mxu0 0
      %375 = vmatprep.subr.bf16.mxu0 0
      %376 = vmatpush1.bf16.msra.mxu0 %v361
      %377 = vmatprep.subr.bf16.mxu0 0
      %378 = vmatpush1.bf16.msra.mxu0 %v350
      %379 = vmatprep.subr.bf16.mxu0 0
      %380 = vmatpush2.bf16.msra.mxu0 0
      %381 = vmatprep.subr.bf16.mxu0 0
      %382 = vmatpush2.bf16.msra.mxu0 0
      %383 = vmatprep.subr.bf16.mxu0 0
      %384 = vmatpush2.bf16.msra.mxu0 0
      %385 = vmatprep.subr.bf16.mxu0 0
      %386 = vmatpush2.bf16.msra.mxu0 0
      %387 = vmatprep.subr.bf16.mxu0 0
      %388 = vmatpush2.bf16.msra.mxu0 0
      %389 = vmatprep.subr.bf16.mxu0 0
      %390 = vmatpush2.bf16.msra.mxu0 0
      %391 = vmatprep.subr.bf16.mxu0 0
      %392 = vmatpush2.bf16.msra.mxu0 0
      %393 = vmatprep.subr.bf16.mxu0 0
      %394 = vmatpush2.bf16.msra.mxu0 0
      %395 = vmatprep.mubr.bf16.mxu0 0
      %396 = vmatmul.mubr.bf16.gmra.mxu0 %v354
      %v397 = vpop.f32.mrf.mxu0
      %v398 = vadd.f32 0.0, %v397
      %v399 = vpop.f32.mrf.mxu0
      %v400 = vpop.f32.mrf.mxu0
      %v401 = vadd.f32 0.0, %v400
      %v402 = vpop.f32.mrf.mxu0
      %403 = vmatprep.mubr.bf16.mxu0 0
      %404 = vmatmul.mubr.bf16.gmra.mxu0 %v357
      %v405 = vpop.f32.mrf.mxu0
      %v406 = vadd.f32 0.0, %v405
      %v407 = vpop.f32.mrf.mxu0
      %v408 = vpop.f32.mrf.mxu0
      %v409 = vpop.f32.mrf.mxu0
      %410 = vdwg.mxu0
      %411 = vrot.lane.b32.xlu0 %v231, 96
      %v412 = vpop.permute.xlu0 %411
      %413 = vrot.lane.b32.xlu0 %v232, 96
      %v414 = vpop.permute.xlu0 %413
      %415 = vrot.lane.b32.xlu0 %v236, 96
      %v416 = vpop.permute.xlu0 %415
      %417 = vrot.lane.b32.xlu0 %v237, 96
      %v418 = vpop.permute.xlu0 %417
      %v420 = vsel %vm238, %v412, 0
      %v423 = vsel %vm238, %v414, 0
      %v426 = vsel %vm238, %v416, 0
      %v429 = vsel %vm238, %v418, 0
      %431 = vmatprep.subr.bf16.mxu0 0
      %432 = vmatpush1.bf16.xpose.msra.mxu0 0
      %433 = vmatprep.subr.bf16.mxu0 0
      %434 = vmatpush1.bf16.xpose.msra.mxu0 0
      %435 = vmatprep.subr.bf16.mxu0 0
      %436 = vmatpush1.bf16.xpose.msra.mxu0 0
      %437 = vmatprep.subr.bf16.mxu0 0
      %438 = vmatpush1.bf16.xpose.msra.mxu0 0
      %439 = vmatprep.subr.bf16.mxu0 0
      %440 = vmatpush1.bf16.xpose.msra.mxu0 0
      %441 = vmatprep.subr.bf16.mxu0 0
      %442 = vmatpush1.bf16.xpose.msra.mxu0 0
      %443 = vmatprep.subr.bf16.mxu0 0
      %444 = vmatpush1.bf16.xpose.msra.mxu0 %v429
      %445 = vmatprep.subr.bf16.mxu0 0
      %446 = vmatpush1.bf16.xpose.msra.mxu0 %v426
      %447 = vmatprep.subr.bf16.mxu0 0
      %448 = vmatpush2.bf16.xpose.msra.mxu0 0
      %449 = vmatprep.subr.bf16.mxu0 0
      %450 = vmatpush2.bf16.xpose.msra.mxu0 0
      %451 = vmatprep.subr.bf16.mxu0 0
      %452 = vmatpush2.bf16.xpose.msra.mxu0 0
      %453 = vmatprep.subr.bf16.mxu0 0
      %454 = vmatpush2.bf16.xpose.msra.mxu0 0
      %455 = vmatprep.subr.bf16.mxu0 0
      %456 = vmatpush2.bf16.xpose.msra.mxu0 0
      %457 = vmatprep.subr.bf16.mxu0 0
      %458 = vmatpush2.bf16.xpose.msra.mxu0 0
      %459 = vmatprep.subr.bf16.mxu0 0
      %460 = vmatpush2.bf16.xpose.msra.mxu0 0
      %461 = vmatprep.subr.bf16.mxu0 0
      %462 = vmatpush2.bf16.xpose.msra.mxu0 0
      %463 = vmatprep.mubr.bf16.mxu0 0
      %464 = vmatmul.mubr.bf16.gmra.mxu0 %v420
      %v465 = vpop.f32.mrf.mxu0
      %v466 = vadd.f32 0.0, %v465
      %v467 = vpop.f32.mrf.mxu0
      %v468 = vpop.f32.mrf.mxu0
      %v469 = vadd.f32 0.0, %v468
      %v470 = vpop.f32.mrf.mxu0
      %471 = vmatprep.mubr.bf16.mxu0 0
      %472 = vmatmul.mubr.bf16.gmra.mxu0 %v423
      %v473 = vpop.f32.mrf.mxu0
      %v474 = vadd.f32 0.0, %v473
      %v475 = vpop.f32.mrf.mxu0
      %v476 = vpop.f32.mrf.mxu0
      %v477 = vpop.f32.mrf.mxu0
      %478 = vdwg.mxu0
      %v479 = vmul.f32 %v466, 0.17677669
      %v480 = vmul.f32 %v469, 0.17677669
      %v481 = vmul.f32 %v474, 0.17677669
      %v482 = vsel %vm304, %v479, -1e+30
      %v483 = vsel %vm304, %v480, -1e+30
      %v484 = vsel %vm304, %v481, -1e+30
      %v485 = vsel %vm308, %v482, -inf
      %486 = vmax.xlane.f32.xlu0 %v485
      %v487 = vpop.xlane.xlu0 %486
      %v488 = vsel %vm308, %v483, -inf
      %489 = vmax.xlane.f32.xlu0 %v488
      %v490 = vpop.xlane.xlu0 %489
      %v491 = vsel %vm308, %v484, -inf
      %492 = vmax.xlane.f32.xlu0 %v491
      %v493 = vpop.xlane.xlu0 %492
      %v494 = vsub.f32 %v482, %v487
      %v495 = vsub.f32 %v483, %v490
      %v496 = vsub.f32 %v484, %v493
      %v497 = vmul.f32 %v494, 1.442695
      %v498 = vpow.pop %v497
      %v499 = vmul.f32 %v495, 1.442695
      %v500 = vpow.pop %v499
      %v501 = vmul.f32 %v496, 1.442695
      %v502 = vpow.pop %v501
      %v503 = vsel %vm308, %v498, 0.0
      %504 = vadd.xlane.f32.xlu0 %v503
      %v505 = vpop.xlane.xlu0 %504
      %v506 = vsel %vm308, %v500, 0.0
      %507 = vadd.xlane.f32.xlu0 %v506
      %v508 = vpop.xlane.xlu0 %507
      %v509 = vsel %vm308, %v502, 0.0
      %510 = vadd.xlane.f32.xlu0 %v509
      %v511 = vpop.xlane.xlu0 %510
      %v512 = vrcp.pop %v505
      %v513 = vrcp.pop %v508
      %v514 = vrcp.pop %v511
      %v515 = vmul.f32 %v498, %v512
      %v516 = vmul.f32 %v500, %v513
      %v517 = vmul.f32 %v502, %v514
      %v518 = vpack.c.bf16 %v516, %v515
      %v519 = vpack.c.bf16 %v517, %v517
      %520 = vrot.lane.b32.xlu0 %v350, 96
      %v521 = vpop.permute.xlu0 %520
      %522 = vrot.lane.b32.xlu0 %v351, 96
      %v523 = vpop.permute.xlu0 %522
      %v526 = vsel %vm308, %v518, 0
      %v529 = vsel %vm308, %v519, 0
      %v532 = vsel %vm359, %v523, 0
      %534 = vmatprep.subr.bf16.mxu0 0
      %535 = vmatpush1.bf16.msra.mxu0 0
      %536 = vmatprep.subr.bf16.mxu0 0
      %537 = vmatpush1.bf16.msra.mxu0 0
      %538 = vmatprep.subr.bf16.mxu0 0
      %539 = vmatpush1.bf16.msra.mxu0 0
      %540 = vmatprep.subr.bf16.mxu0 0
      %541 = vmatpush1.bf16.msra.mxu0 0
      %542 = vmatprep.subr.bf16.mxu0 0
      %543 = vmatpush1.bf16.msra.mxu0 0
      %544 = vmatprep.subr.bf16.mxu0 0
      %545 = vmatpush1.bf16.msra.mxu0 0
      %546 = vmatprep.subr.bf16.mxu0 0
      %547 = vmatpush1.bf16.msra.mxu0 %v532
      %548 = vmatprep.subr.bf16.mxu0 0
      %549 = vmatpush1.bf16.msra.mxu0 %v521
      %550 = vmatprep.subr.bf16.mxu0 0
      %551 = vmatpush2.bf16.msra.mxu0 0
      %552 = vmatprep.subr.bf16.mxu0 0
      %553 = vmatpush2.bf16.msra.mxu0 0
      %554 = vmatprep.subr.bf16.mxu0 0
      %555 = vmatpush2.bf16.msra.mxu0 0
      %556 = vmatprep.subr.bf16.mxu0 0
      %557 = vmatpush2.bf16.msra.mxu0 0
      %558 = vmatprep.subr.bf16.mxu0 0
      %559 = vmatpush2.bf16.msra.mxu0 0
      %560 = vmatprep.subr.bf16.mxu0 0
      %561 = vmatpush2.bf16.msra.mxu0 0
      %562 = vmatprep.subr.bf16.mxu0 0
      %563 = vmatpush2.bf16.msra.mxu0 0
      %564 = vmatprep.subr.bf16.mxu0 0
      %565 = vmatpush2.bf16.msra.mxu0 0
      %566 = vmatprep.mubr.bf16.mxu0 0
      %567 = vmatmul.mubr.bf16.gmra.mxu0 %v526
      %v568 = vpop.f32.mrf.mxu0
      %v569 = vadd.f32 0.0, %v568
      %v570 = vpop.f32.mrf.mxu0
      %v571 = vpop.f32.mrf.mxu0
      %v572 = vadd.f32 0.0, %v571
      %v573 = vpop.f32.mrf.mxu0
      %574 = vmatprep.mubr.bf16.mxu0 0
      %575 = vmatmul.mubr.bf16.gmra.mxu0 %v529
      %v576 = vpop.f32.mrf.mxu0
      %v577 = vadd.f32 0.0, %v576
      %v578 = vpop.f32.mrf.mxu0
      %v579 = vpop.f32.mrf.mxu0
      %v580 = vpop.f32.mrf.mxu0
      %581 = vdwg.mxu0
      %582 = vrot.lane.b32.xlu0 %v231, 64
      %v583 = vpop.permute.xlu0 %582
      %584 = vrot.lane.b32.xlu0 %v232, 64
      %v585 = vpop.permute.xlu0 %584
      %586 = vrot.lane.b32.xlu0 %v236, 64
      %v587 = vpop.permute.xlu0 %586
      %588 = vrot.lane.b32.xlu0 %v237, 64
      %v589 = vpop.permute.xlu0 %588
      %v591 = vsel %vm238, %v583, 0
      %v594 = vsel %vm238, %v585, 0
      %v597 = vsel %vm238, %v587, 0
      %v600 = vsel %vm238, %v589, 0
      %602 = vmatprep.subr.bf16.mxu0 0
      %603 = vmatpush1.bf16.xpose.msra.mxu0 0
      %604 = vmatprep.subr.bf16.mxu0 0
      %605 = vmatpush1.bf16.xpose.msra.mxu0 0
      %606 = vmatprep.subr.bf16.mxu0 0
      %607 = vmatpush1.bf16.xpose.msra.mxu0 0
      %608 = vmatprep.subr.bf16.mxu0 0
      %609 = vmatpush1.bf16.xpose.msra.mxu0 0
      %610 = vmatprep.subr.bf16.mxu0 0
      %611 = vmatpush1.bf16.xpose.msra.mxu0 0
      %612 = vmatprep.subr.bf16.mxu0 0
      %613 = vmatpush1.bf16.xpose.msra.mxu0 0
      %614 = vmatprep.subr.bf16.mxu0 0
      %615 = vmatpush1.bf16.xpose.msra.mxu0 %v600
      %616 = vmatprep.subr.bf16.mxu0 0
      %617 = vmatpush1.bf16.xpose.msra.mxu0 %v597
      %618 = vmatprep.subr.bf16.mxu0 0
      %619 = vmatpush2.bf16.xpose.msra.mxu0 0
      %620 = vmatprep.subr.bf16.mxu0 0
      %621 = vmatpush2.bf16.xpose.msra.mxu0 0
      %622 = vmatprep.subr.bf16.mxu0 0
      %623 = vmatpush2.bf16.xpose.msra.mxu0 0
      %624 = vmatprep.subr.bf16.mxu0 0
      %625 = vmatpush2.bf16.xpose.msra.mxu0 0
      %626 = vmatprep.subr.bf16.mxu0 0
      %627 = vmatpush2.bf16.xpose.msra.mxu0 0
      %628 = vmatprep.subr.bf16.mxu0 0
      %629 = vmatpush2.bf16.xpose.msra.mxu0 0
      %630 = vmatprep.subr.bf16.mxu0 0
      %631 = vmatpush2.bf16.xpose.msra.mxu0 0
      %632 = vmatprep.subr.bf16.mxu0 0
      %633 = vmatpush2.bf16.xpose.msra.mxu0 0
      %634 = vmatprep.mubr.bf16.mxu0 0
      %635 = vmatmul.mubr.bf16.gmra.mxu0 %v591
      %v636 = vpop.f32.mrf.mxu0
      %v637 = vadd.f32 0.0, %v636
      %v638 = vpop.f32.mrf.mxu0
      %v639 = vpop.f32.mrf.mxu0
      %v640 = vadd.f32 0.0, %v639
      %v641 = vpop.f32.mrf.mxu0
      %642 = vmatprep.mubr.bf16.mxu0 0
      %643 = vmatmul.mubr.bf16.gmra.mxu0 %v594
      %v644 = vpop.f32.mrf.mxu0
      %v645 = vadd.f32 0.0, %v644
      %v646 = vpop.f32.mrf.mxu0
      %v647 = vpop.f32.mrf.mxu0
      %v648 = vpop.f32.mrf.mxu0
      %649 = vdwg.mxu0
      %v650 = vmul.f32 %v637, 0.17677669
      %v651 = vmul.f32 %v640, 0.17677669
      %v652 = vmul.f32 %v645, 0.17677669
      %v653 = vsel %vm304, %v650, -1e+30
      %v654 = vsel %vm304, %v651, -1e+30
      %v655 = vsel %vm304, %v652, -1e+30
      %v656 = vsel %vm308, %v653, -inf
      %657 = vmax.xlane.f32.xlu0 %v656
      %v658 = vpop.xlane.xlu0 %657
      %v659 = vsel %vm308, %v654, -inf
      %660 = vmax.xlane.f32.xlu0 %v659
      %v661 = vpop.xlane.xlu0 %660
      %v662 = vsel %vm308, %v655, -inf
      %663 = vmax.xlane.f32.xlu0 %v662
      %v664 = vpop.xlane.xlu0 %663
      %v665 = vsub.f32 %v653, %v658
      %v666 = vsub.f32 %v654, %v661
      %v667 = vsub.f32 %v655, %v664
      %v668 = vmul.f32 %v665, 1.442695
      %v669 = vpow.pop %v668
      %v670 = vmul.f32 %v666, 1.442695
      %v671 = vpow.pop %v670
      %v672 = vmul.f32 %v667, 1.442695
      %v673 = vpow.pop %v672
      %v674 = vsel %vm308, %v669, 0.0
      %675 = vadd.xlane.f32.xlu0 %v674
      %v676 = vpop.xlane.xlu0 %675
      %v677 = vsel %vm308, %v671, 0.0
      %678 = vadd.xlane.f32.xlu0 %v677
      %v679 = vpop.xlane.xlu0 %678
      %v680 = vsel %vm308, %v673, 0.0
      %681 = vadd.xlane.f32.xlu0 %v680
      %v682 = vpop.xlane.xlu0 %681
      %v683 = vrcp.pop %v676
      %v684 = vrcp.pop %v679
      %v685 = vrcp.pop %v682
      %v686 = vmul.f32 %v669, %v683
      %v687 = vmul.f32 %v671, %v684
      %v688 = vmul.f32 %v673, %v685
      %v689 = vpack.c.bf16 %v687, %v686
      %v690 = vpack.c.bf16 %v688, %v688
      %691 = vrot.lane.b32.xlu0 %v350, 64
      %v692 = vpop.permute.xlu0 %691
      %693 = vrot.lane.b32.xlu0 %v351, 64
      %v694 = vpop.permute.xlu0 %693
      %v697 = vsel %vm308, %v689, 0
      %v700 = vsel %vm308, %v690, 0
      %v703 = vsel %vm359, %v694, 0
      %705 = vmatprep.subr.bf16.mxu0 0
      %706 = vmatpush1.bf16.msra.mxu0 0
      %707 = vmatprep.subr.bf16.mxu0 0
      %708 = vmatpush1.bf16.msra.mxu0 0
      %709 = vmatprep.subr.bf16.mxu0 0
      %710 = vmatpush1.bf16.msra.mxu0 0
      %711 = vmatprep.subr.bf16.mxu0 0
      %712 = vmatpush1.bf16.msra.mxu0 0
      %713 = vmatprep.subr.bf16.mxu0 0
      %714 = vmatpush1.bf16.msra.mxu0 0
      %715 = vmatprep.subr.bf16.mxu0 0
      %716 = vmatpush1.bf16.msra.mxu0 0
      %717 = vmatprep.subr.bf16.mxu0 0
      %718 = vmatpush1.bf16.msra.mxu0 %v703
      %719 = vmatprep.subr.bf16.mxu0 0
      %720 = vmatpush1.bf16.msra.mxu0 %v692
      %721 = vmatprep.subr.bf16.mxu0 0
      %722 = vmatpush2.bf16.msra.mxu0 0
      %723 = vmatprep.subr.bf16.mxu0 0
      %724 = vmatpush2.bf16.msra.mxu0 0
      %725 = vmatprep.subr.bf16.mxu0 0
      %726 = vmatpush2.bf16.msra.mxu0 0
      %727 = vmatprep.subr.bf16.mxu0 0
      %728 = vmatpush2.bf16.msra.mxu0 0
      %729 = vmatprep.subr.bf16.mxu0 0
      %730 = vmatpush2.bf16.msra.mxu0 0
      %731 = vmatprep.subr.bf16.mxu0 0
      %732 = vmatpush2.bf16.msra.mxu0 0
      %733 = vmatprep.subr.bf16.mxu0 0
      %734 = vmatpush2.bf16.msra.mxu0 0
      %735 = vmatprep.subr.bf16.mxu0 0
      %736 = vmatpush2.bf16.msra.mxu0 0
      %737 = vmatprep.mubr.bf16.mxu0 0
      %738 = vmatmul.mubr.bf16.gmra.mxu0 %v697
      %v739 = vpop.f32.mrf.mxu0
      %v740 = vadd.f32 0.0, %v739
      %v741 = vpop.f32.mrf.mxu0
      %v742 = vpop.f32.mrf.mxu0
      %v743 = vadd.f32 0.0, %v742
      %v744 = vpop.f32.mrf.mxu0
      %745 = vmatprep.mubr.bf16.mxu0 0
      %746 = vmatmul.mubr.bf16.gmra.mxu0 %v700
      %v747 = vpop.f32.mrf.mxu0
      %v748 = vadd.f32 0.0, %v747
      %v749 = vpop.f32.mrf.mxu0
      %v750 = vpop.f32.mrf.mxu0
      %v751 = vpop.f32.mrf.mxu0
      %752 = vdwg.mxu0
      %753 = vrot.lane.b32.xlu0 %v231, 32
      %v754 = vpop.permute.xlu0 %753
      %755 = vrot.lane.b32.xlu0 %v232, 32
      %v756 = vpop.permute.xlu0 %755
      %757 = vrot.lane.b32.xlu0 %v236, 32
      %v758 = vpop.permute.xlu0 %757
      %759 = vrot.lane.b32.xlu0 %v237, 32
      %v760 = vpop.permute.xlu0 %759
      %v762 = vsel %vm238, %v754, 0
      %v765 = vsel %vm238, %v756, 0
      %v768 = vsel %vm238, %v758, 0
      %v771 = vsel %vm238, %v760, 0
      %773 = vmatprep.subr.bf16.mxu0 0
      %774 = vmatpush1.bf16.xpose.msra.mxu0 0
      %775 = vmatprep.subr.bf16.mxu0 0
      %776 = vmatpush1.bf16.xpose.msra.mxu0 0
      %777 = vmatprep.subr.bf16.mxu0 0
      %778 = vmatpush1.bf16.xpose.msra.mxu0 0
      %779 = vmatprep.subr.bf16.mxu0 0
      %780 = vmatpush1.bf16.xpose.msra.mxu0 0
      %781 = vmatprep.subr.bf16.mxu0 0
      %782 = vmatpush1.bf16.xpose.msra.mxu0 0
      %783 = vmatprep.subr.bf16.mxu0 0
      %784 = vmatpush1.bf16.xpose.msra.mxu0 0
      %785 = vmatprep.subr.bf16.mxu0 0
      %786 = vmatpush1.bf16.xpose.msra.mxu0 %v771
      %787 = vmatprep.subr.bf16.mxu0 0
      %788 = vmatpush1.bf16.xpose.msra.mxu0 %v768
      %789 = vmatprep.subr.bf16.mxu0 0
      %790 = vmatpush2.bf16.xpose.msra.mxu0 0
      %791 = vmatprep.subr.bf16.mxu0 0
      %792 = vmatpush2.bf16.xpose.msra.mxu0 0
      %793 = vmatprep.subr.bf16.mxu0 0
      %794 = vmatpush2.bf16.xpose.msra.mxu0 0
      %795 = vmatprep.subr.bf16.mxu0 0
      %796 = vmatpush2.bf16.xpose.msra.mxu0 0
      %797 = vmatprep.subr.bf16.mxu0 0
      %798 = vmatpush2.bf16.xpose.msra.mxu0 0
      %799 = vmatprep.subr.bf16.mxu0 0
      %800 = vmatpush2.bf16.xpose.msra.mxu0 0
      %801 = vmatprep.subr.bf16.mxu0 0
      %802 = vmatpush2.bf16.xpose.msra.mxu0 0
      %803 = vmatprep.subr.bf16.mxu0 0
      %804 = vmatpush2.bf16.xpose.msra.mxu0 0
      %805 = vmatprep.mubr.bf16.mxu0 0
      %806 = vmatmul.mubr.bf16.gmra.mxu0 %v762
      %v807 = vpop.f32.mrf.mxu0
      %v808 = vadd.f32 0.0, %v807
      %v809 = vpop.f32.mrf.mxu0
      %v810 = vpop.f32.mrf.mxu0
      %v811 = vadd.f32 0.0, %v810
      %v812 = vpop.f32.mrf.mxu0
      %813 = vmatprep.mubr.bf16.mxu0 0
      %814 = vmatmul.mubr.bf16.gmra.mxu0 %v765
      %v815 = vpop.f32.mrf.mxu0
      %v816 = vadd.f32 0.0, %v815
      %v817 = vpop.f32.mrf.mxu0
      %v818 = vpop.f32.mrf.mxu0
      %v819 = vpop.f32.mrf.mxu0
      %820 = vdwg.mxu0
      %v821 = vmul.f32 %v808, 0.17677669
      %v822 = vmul.f32 %v811, 0.17677669
      %v823 = vmul.f32 %v816, 0.17677669
      %v824 = vsel %vm304, %v821, -1e+30
      %v825 = vsel %vm304, %v822, -1e+30
      %v826 = vsel %vm304, %v823, -1e+30
      %v827 = vsel %vm308, %v824, -inf
      %828 = vmax.xlane.f32.xlu0 %v827
      %v829 = vpop.xlane.xlu0 %828
      %v830 = vsel %vm308, %v825, -inf
      %831 = vmax.xlane.f32.xlu0 %v830
      %v832 = vpop.xlane.xlu0 %831
      %v833 = vsel %vm308, %v826, -inf
      %834 = vmax.xlane.f32.xlu0 %v833
      %v835 = vpop.xlane.xlu0 %834
      %v836 = vsub.f32 %v824, %v829
      %v837 = vsub.f32 %v825, %v832
      %v838 = vsub.f32 %v826, %v835
      %v839 = vmul.f32 %v836, 1.442695
      %v840 = vpow.pop %v839
      %v841 = vmul.f32 %v837, 1.442695
      %v842 = vpow.pop %v841
      %v843 = vmul.f32 %v838, 1.442695
      %v844 = vpow.pop %v843
      %v845 = vsel %vm308, %v840, 0.0
      %846 = vadd.xlane.f32.xlu0 %v845
      %v847 = vpop.xlane.xlu0 %846
      %v848 = vsel %vm308, %v842, 0.0
      %849 = vadd.xlane.f32.xlu0 %v848
      %v850 = vpop.xlane.xlu0 %849
      %v851 = vsel %vm308, %v844, 0.0
      %852 = vadd.xlane.f32.xlu0 %v851
      %v853 = vpop.xlane.xlu0 %852
      %v854 = vrcp.pop %v847
      %v855 = vrcp.pop %v850
      %v856 = vrcp.pop %v853
      %v857 = vmul.f32 %v840, %v854
      %v858 = vmul.f32 %v842, %v855
      %v859 = vmul.f32 %v844, %v856
      %v860 = vpack.c.bf16 %v858, %v857
      %v861 = vpack.c.bf16 %v859, %v859
      %862 = vrot.lane.b32.xlu0 %v350, 32
      %v863 = vpop.permute.xlu0 %862
      %864 = vrot.lane.b32.xlu0 %v351, 32
      %v865 = vpop.permute.xlu0 %864
      %v868 = vsel %vm308, %v860, 0
      %v871 = vsel %vm308, %v861, 0
      %v874 = vsel %vm359, %v865, 0
      %876 = vmatprep.subr.bf16.mxu0 0
      %877 = vmatpush1.bf16.msra.mxu0 0
      %878 = vmatprep.subr.bf16.mxu0 0
      %879 = vmatpush1.bf16.msra.mxu0 0
      %880 = vmatprep.subr.bf16.mxu0 0
      %881 = vmatpush1.bf16.msra.mxu0 0
      %882 = vmatprep.subr.bf16.mxu0 0
      %883 = vmatpush1.bf16.msra.mxu0 0
      %884 = vmatprep.subr.bf16.mxu0 0
      %885 = vmatpush1.bf16.msra.mxu0 0
      %886 = vmatprep.subr.bf16.mxu0 0
      %887 = vmatpush1.bf16.msra.mxu0 0
      %888 = vmatprep.subr.bf16.mxu0 0
      %889 = vmatpush1.bf16.msra.mxu0 %v874
      %890 = vmatprep.subr.bf16.mxu0 0
      %891 = vmatpush1.bf16.msra.mxu0 %v863
      %892 = vmatprep.subr.bf16.mxu0 0
      %893 = vmatpush2.bf16.msra.mxu0 0
      %894 = vmatprep.subr.bf16.mxu0 0
      %895 = vmatpush2.bf16.msra.mxu0 0
      %896 = vmatprep.subr.bf16.mxu0 0
      %897 = vmatpush2.bf16.msra.mxu0 0
      %898 = vmatprep.subr.bf16.mxu0 0
      %899 = vmatpush2.bf16.msra.mxu0 0
      %900 = vmatprep.subr.bf16.mxu0 0
      %901 = vmatpush2.bf16.msra.mxu0 0
      %902 = vmatprep.subr.bf16.mxu0 0
      %903 = vmatpush2.bf16.msra.mxu0 0
      %904 = vmatprep.subr.bf16.mxu0 0
      %905 = vmatpush2.bf16.msra.mxu0 0
      %906 = vmatprep.subr.bf16.mxu0 0
      %907 = vmatpush2.bf16.msra.mxu0 0
      %908 = vmatprep.mubr.bf16.mxu0 0
      %909 = vmatmul.mubr.bf16.gmra.mxu0 %v868
      %v910 = vpop.f32.mrf.mxu0
      %v911 = vadd.f32 0.0, %v910
      %v912 = vpop.f32.mrf.mxu0
      %v913 = vpop.f32.mrf.mxu0
      %v914 = vadd.f32 0.0, %v913
      %v915 = vpop.f32.mrf.mxu0
      %916 = vmatprep.mubr.bf16.mxu0 0
      %917 = vmatmul.mubr.bf16.gmra.mxu0 %v871
      %v918 = vpop.f32.mrf.mxu0
      %v919 = vadd.f32 0.0, %v918
      %v920 = vpop.f32.mrf.mxu0
      %v921 = vpop.f32.mrf.mxu0
      %v922 = vpop.f32.mrf.mxu0
      %923 = vdwg.mxu0
      %927 = vrot.lane.b32.xlu0 %v569, 32
      %v928 = vpop.permute.xlu0 %927
      %929 = vrot.lane.b32.xlu0 %v572, 32
      %v930 = vpop.permute.xlu0 %929
      %931 = vrot.lane.b32.xlu0 %v577, 32
      %v932 = vpop.permute.xlu0 %931
      %939 = vrot.lane.b32.xlu0 %v740, 64
      %v940 = vpop.permute.xlu0 %939
      %941 = vrot.lane.b32.xlu0 %v743, 64
      %v942 = vpop.permute.xlu0 %941
      %943 = vrot.lane.b32.xlu0 %v748, 64
      %v944 = vpop.permute.xlu0 %943
      %951 = vrot.lane.b32.xlu0 %v911, 96
      %v952 = vpop.permute.xlu0 %951
      %953 = vrot.lane.b32.xlu0 %v914, 96
      %v954 = vpop.permute.xlu0 %953
      %955 = vrot.lane.b32.xlu0 %v919, 96
      %v956 = vpop.permute.xlu0 %955
      %v960 = vsel %vm238, %v398, %v928
      %v961 = vsel %vm238, %v401, %v930
      %v962 = vsel %vm238, %v406, %v932
      %vm963 = vcmask 523264
      %v964 = vsel %vm963, %v960, %v940
      %v965 = vsel %vm963, %v961, %v942
      %v966 = vsel %vm963, %v962, %v944
      %vm967 = vcmask 785408
      %v968 = vsel %vm967, %v964, %v952
      %v969 = vsel %vm967, %v965, %v954
      %v970 = vsel %vm967, %v966, %v956
      %v971 = vpack.c.bf16 %v969, %v968
      %v972 = vpack.c.bf16 %v970, %v970
      %v973 = vld [vmem:[%s1] sm:$0xf]
      %v974 = vld [vmem:[%s1 + $0x4] sm:$0xf]
      %v975 = vld [vmem:[%s1 + $0x8] sm:$0xf]
      %v976 = vld [vmem:[%s1 + $0xc] sm:$0xf]
      %v977 = vld [vmem:[%s1 + $0x10] sm:$0xf]
      %v978 = vld [vmem:[%s1 + $0x14] sm:$0xf]
      %v979 = vld [vmem:[%s1 + $0x18] sm:$0xf]
      %v980 = vld [vmem:[%s1 + $0x1c] sm:$0xf]
      %v981 = vld [vmem:[%s1 + $0x20] sm:$0xf]
      %v982 = vld [vmem:[%s1 + $0x24] sm:$0xf]
      %v983 = vld [vmem:[%s1 + $0x28] sm:$0xf]
      %v984 = vld [vmem:[%s1 + $0x2c] sm:$0xf]
      %v985 = vld [vmem:[%s1 + $0x30] sm:$0xf]
      %v986 = vld [vmem:[%s1 + $0x34] sm:$0xf]
      %v987 = vld [vmem:[%s1 + $0x38] sm:$0xf]
      %v988 = vld [vmem:[%s1 + $0x3c] sm:$0xf]
      %v989 = vld [vmem:[%s2] sm:$0x1]
      %v991 = vlaneseq
      %v992 = vshrl.u32 %v991, 7
      %v993 = vsub.s32 0, %v992
      %v994 = vrot.slane %v989, %v993
      %v1012 = vunpack.c.l.b16 %v973
      %v1013 = vunpack.c.l.b16 %v974
      %v1014 = vunpack.c.l.b16 %v975
      %v1015 = vunpack.c.l.b16 %v976
      %v1016 = vunpack.c.l.b16 %v977
      %v1017 = vunpack.c.l.b16 %v978
      %v1018 = vunpack.c.l.b16 %v979
      %v1019 = vunpack.c.l.b16 %v980
      %v1020 = vunpack.c.l.b16 %v981
      %v1021 = vunpack.c.l.b16 %v982
      %v1022 = vunpack.c.l.b16 %v983
      %v1023 = vunpack.c.l.b16 %v984
      %v1024 = vunpack.c.l.b16 %v985
      %v1025 = vunpack.c.l.b16 %v986
      %v1026 = vunpack.c.l.b16 %v987
      %v1027 = vunpack.c.l.b16 %v988
      %v1028 = vpack.c.b16 %v1013, %v1012
      %v1029 = vpack.c.b16 %v1015, %v1014
      %v1030 = vpack.c.b16 %v1017, %v1016
      %v1031 = vpack.c.b16 %v1019, %v1018
      %v1032 = vpack.c.b16 %v1021, %v1020
      %v1033 = vpack.c.b16 %v1023, %v1022
      %v1034 = vpack.c.b16 %v1025, %v1024
      %v1035 = vpack.c.b16 %v1027, %v1026
      %1044 = vmatprep.subr.bf16.mxu0 0
      %1045 = vmatpush1.bf16.msra.mxu0 %v1035
      %1046 = vmatprep.subr.bf16.mxu0 0
      %1047 = vmatpush1.bf16.msra.mxu0 %v1034
      %1048 = vmatprep.subr.bf16.mxu0 0
      %1049 = vmatpush1.bf16.msra.mxu0 %v1033
      %1050 = vmatprep.subr.bf16.mxu0 0
      %1051 = vmatpush1.bf16.msra.mxu0 %v1032
      %1052 = vmatprep.subr.bf16.mxu0 0
      %1053 = vmatpush1.bf16.msra.mxu0 %v1031
      %1054 = vmatprep.subr.bf16.mxu0 0
      %1055 = vmatpush1.bf16.msra.mxu0 %v1030
      %1056 = vmatprep.subr.bf16.mxu0 0
      %1057 = vmatpush1.bf16.msra.mxu0 %v1029
      %1058 = vmatprep.subr.bf16.mxu0 0
      %1059 = vmatpush1.bf16.msra.mxu0 %v1028
      %1060 = vmatprep.subr.bf16.mxu0 0
      %1061 = vmatpush2.bf16.msra.mxu0 0
      %1062 = vmatprep.subr.bf16.mxu0 0
      %1063 = vmatpush2.bf16.msra.mxu0 0
      %1064 = vmatprep.subr.bf16.mxu0 0
      %1065 = vmatpush2.bf16.msra.mxu0 0
      %1066 = vmatprep.subr.bf16.mxu0 0
      %1067 = vmatpush2.bf16.msra.mxu0 0
      %1068 = vmatprep.subr.bf16.mxu0 0
      %1069 = vmatpush2.bf16.msra.mxu0 0
      %1070 = vmatprep.subr.bf16.mxu0 0
      %1071 = vmatpush2.bf16.msra.mxu0 0
      %1072 = vmatprep.subr.bf16.mxu0 0
      %1073 = vmatpush2.bf16.msra.mxu0 0
      %1074 = vmatprep.subr.bf16.mxu0 0
      %1075 = vmatpush2.bf16.msra.mxu0 0
      %1076 = vmatprep.mubr.bf16.mxu0 0
      %1077 = vmatmul.mubr.bf16.gmra.mxu0 %v971
      %v1078 = vpop.f32.mrf.mxu0
      %v1079 = vadd.f32 %v994, %v1078
      %v1080 = vpop.f32.mrf.mxu0
      %v1081 = vpop.f32.mrf.mxu0
      %v1082 = vadd.f32 %v994, %v1081
      %v1083 = vpop.f32.mrf.mxu0
      %1084 = vmatprep.mubr.bf16.mxu0 0
      %1085 = vmatmul.mubr.bf16.gmra.mxu0 %v972
      %v1086 = vpop.f32.mrf.mxu0
      %v1087 = vadd.f32 %v994, %v1086
      %v1088 = vpop.f32.mrf.mxu0
      %v1089 = vpop.f32.mrf.mxu0
      %v1090 = vpop.f32.mrf.mxu0
      %1091 = vdwg.mxu0
      %v1092 = vld [vmem:[%s212] sm:$0xff]
      %v1093 = vld [vmem:[%s212 + $0x8] sm:$0xff]
      %v1094 = vld [vmem:[%s212 + $0x10] sm:$0xff]
      %v1095 = vadd.f32 %v1079, %v1092
      %v1096 = vadd.f32 %v1082, %v1093
      %v1097 = vadd.f32 %v1087, %v1094
      %1098 = vst [vmem:[%s217] sm:$0xff] %v1095
      %1099 = vst [vmem:[%s217 + $0x8] sm:$0xff] %v1096
      %1100 = vst [vmem:[%s217 + $0x10] sm:$0xff] %v1097
      %p1101 = scmp.lt.s32.totalorder %s15, 1
      %s1102 = scalar_select %p1101, %s15, 1
      %s1103 = smul.addr %s1102, 3
      %s1104 = smul.addr %s1103, 8
      %s1105 = scalar_lea.vmem %s4, %s1104
      // Predicated region
      $region37: #{visual_transformer_forward.12} parent=35 // pred_check
        %p1106 = pneg %p127
      $region38: #{visual_transformer_forward.12} parent=35 // pred_check_branch
        %1108 = sbr.rel (%p1106) target = $region40
      $region39: #{visual_transformer_forward.12} parent=35 // pred_region
        _
      $region40: #{visual_transformer_forward.12} parent=35 // pred_fallthru
        _
    $region36: #{visual_transformer_forward.12} parent=5 // pred_fallthru
      _
    %p1109 = scmp.le.s32.totalorder 2, %s10
    // Predicated region
    $region41: #{visual_transformer_forward.12} parent=5 // pred_check
      %p1110 = pneg %p1109
    $region42: #{visual_transformer_forward.12} parent=5 // pred_check_branch
      %1112 = sbr.rel (%p1110) target = $region44
    $region43: #{visual_transformer_forward.12} parent=5 // pred_region
      %s1113 = ssub.s32 %s10, 2
      // Predicated region
      $region45: #{visual_transformer_forward.12} parent=43 // pred_check
        %p1114 = pneg %p133
      $region46: #{visual_transformer_forward.12} parent=43 // pred_check_branch
        %1116 = sbr.rel (%p1114) target = $region48
      $region47: #{visual_transformer_forward.12} parent=43 // pred_region
        %p1117 = scmp.lt.s32.totalorder %s16, 1
        %s1118 = scalar_select %p1117, %s16, 1
        %s1119 = smul.addr %s1118, 3
        %s1120 = smul.addr %s1119, 8
        %s1121 = scalar_lea.vmem %s4, %s1120
      $region48: #{visual_transformer_forward.12} parent=43 // pred_fallthru
        _
    $region44: #{visual_transformer_forward.12} parent=5 // pred_fallthru
      _
  $region6: #{visual_transformer_forward.12} parent=0 // loop_footer
    %s14 = sadd.s32 1, %s10
  $region7: #{visual_transformer_forward.12} parent=0 // loop_footer_branch
    %9 = sbr.rel target = $region3
  $region8: #{visual_transformer_forward.12} parent=0 // loop_exit
    _

// kernel: visual_transformer_forward.17
$region0: #{visual_transformer_forward.17}
  #allocation0 [shape = 'u32[]', space=smem, size = 0x4, offset = 0x4, fixed_abs, tag = 'smem constant byte address 0x4 - core index']
  #allocation1 [shape = 'u32[144,128]{1,0:T(1,128)}', space=vmem, size = 0x12000, scoped, tag = 'internal scratch']
  %s0 = inlined_call_operand.vmem [shape: f32[2,128], index: 0, kind: input, shape index: {}]
  %s1 = inlined_call_operand.vmem [shape: f32[1,128], index: 1, kind: input, shape index: {}]
  %s2 = inlined_call_operand.vmem [shape: f32[1,128], index: 2, kind: input, shape index: {}]
  %s3 = inlined_call_operand.vmem [shape: bf16[128,128], index: 3, kind: input, shape index: {}]
  %s4 = inlined_call_operand.hbm [shape: f32[2,128], index: 4, kind: output, shape index: {}]
  %s5 = sld [smem:[#allocation0]]
  $region26: #{visual_transformer_forward.17} parent=0
    _
  %s7 = ssub.s32 1, %s5
  %s8 = scalar_select 0, %s7, %s5
  $region1: #{visual_transformer_forward.17} parent=0
    #allocation2 [shape = 'u8[1024]{0}', space=vmem, size = 0x400, scoped, tag = 'output window, operand 0, single buffered']
    #allocation3 [shape = 's32[1]{0}', space=sflag, size = 0x4, scoped, tag = 'scoped memory for visual_transformer_forward.17']
    %9 = vsyncpa [#allocation3], 0
    // Predicated region
    $region2: #{visual_transformer_forward.17} parent=1 // pred_check
      _
    $region3: #{visual_transformer_forward.17} parent=1 // pred_check_branch
      %11 = sbr.rel (0) target = $region5
    $region4: #{visual_transformer_forward.17} parent=1 // pred_region
      _
    $region5: #{visual_transformer_forward.17} parent=1 // pred_fallthru
      _
    // Predicated region
    $region6: #{visual_transformer_forward.17} parent=1 // pred_check
      _
    $region7: #{visual_transformer_forward.17} parent=1 // pred_check_branch
      %13 = sbr.rel (0) target = $region9
    $region8: #{visual_transformer_forward.17} parent=1 // pred_region
      _
    $region9: #{visual_transformer_forward.17} parent=1 // pred_fallthru
      _
    // Predicated region
    $region10: #{visual_transformer_forward.17} parent=1 // pred_check
      _
    $region11: #{visual_transformer_forward.17} parent=1 // pred_check_branch
      %15 = sbr.rel (0) target = $region13
    $region12: #{visual_transformer_forward.17} parent=1 // pred_region
      _
    $region13: #{visual_transformer_forward.17} parent=1 // pred_fallthru
      _
    // Predicated region
    $region14: #{visual_transformer_forward.17} parent=1 // pred_check
      _
    $region15: #{visual_transformer_forward.17} parent=1 // pred_check_branch
      %17 = sbr.rel (0) target = $region17
    $region16: #{visual_transformer_forward.17} parent=1 // pred_region
      _
    $region17: #{visual_transformer_forward.17} parent=1 // pred_fallthru
      _
    %v19 = vld [vmem:[%s0] sm:$0x3]
    %v20 = vld [vmem:[%s1] sm:$0x1]
    %v21 = vld [vmem:[%s2] sm:$0x1]
    %vm22 = vcmask 1041408
    %v23 = vsel %vm22, %v19, 0.0
    %24 = vadd.xlane.f32.xlu0 %v23
    %v25 = vpop.xlane.xlu0 %24
    %v26 = vrcp.pop 128.0
    %v27 = vmul.f32 %v25, %v26
    %v28 = vsub.f32 %v19, %v27
    %v29 = vmul.f32 %v28, %v28
    %v30 = vsel %vm22, %v29, 0.0
    %31 = vadd.xlane.f32.xlu0 %v30
    %v32 = vpop.xlane.xlu0 %31
    %v33 = vmul.f32 %v32, %v26
    %v34 = vadd.f32 %v33, 1e-05
    %v35 = vrsqrt.pop %v34
    %v36 = vmul.f32 %v28, %v35
    %v38 = vlaneseq
    %v39 = vshrl.u32 %v38, 7
    %v40 = vsub.s32 0, %v39
    %v41 = vrot.slane %v20, %v40
    %v43 = vmul.f32 %v36, %v41
    %v45 = vlaneseq
    %v46 = vshrl.u32 %v45, 7
    %v47 = vsub.s32 0, %v46
    %v48 = vrot.slane %v21, %v47
    %v50 = vadd.f32 %v43, %v48
    %v51 = vpack.c.bf16 %v50, %v50
    %v52 = vld [vmem:[%s3] sm:$0xf]
    %v53 = vld [vmem:[%s3 + $0x4] sm:$0xf]
    %v54 = vld [vmem:[%s3 + $0x8] sm:$0xf]
    %v55 = vld [vmem:[%s3 + $0xc] sm:$0xf]
    %v56 = vld [vmem:[%s3 + $0x10] sm:$0xf]
    %v57 = vld [vmem:[%s3 + $0x14] sm:$0xf]
    %v58 = vld [vmem:[%s3 + $0x18] sm:$0xf]
    %v59 = vld [vmem:[%s3 + $0x1c] sm:$0xf]
    %v60 = vld [vmem:[%s3 + $0x20] sm:$0xf]
    %v61 = vld [vmem:[%s3 + $0x24] sm:$0xf]
    %v62 = vld [vmem:[%s3 + $0x28] sm:$0xf]
    %v63 = vld [vmem:[%s3 + $0x2c] sm:$0xf]
    %v64 = vld [vmem:[%s3 + $0x30] sm:$0xf]
    %v65 = vld [vmem:[%s3 + $0x34] sm:$0xf]
    %v66 = vld [vmem:[%s3 + $0x38] sm:$0xf]
    %v67 = vld [vmem:[%s3 + $0x3c] sm:$0xf]
    %v84 = vunpack.c.l.b16 %v52
    %v85 = vunpack.c.l.b16 %v53
    %v86 = vunpack.c.l.b16 %v54
    %v87 = vunpack.c.l.b16 %v55
    %v88 = vunpack.c.l.b16 %v56
    %v89 = vunpack.c.l.b16 %v57
    %v90 = vunpack.c.l.b16 %v58
    %v91 = vunpack.c.l.b16 %v59
    %v92 = vunpack.c.l.b16 %v60
    %v93 = vunpack.c.l.b16 %v61
    %v94 = vunpack.c.l.b16 %v62
    %v95 = vunpack.c.l.b16 %v63
    %v96 = vunpack.c.l.b16 %v64
    %v97 = vunpack.c.l.b16 %v65
    %v98 = vunpack.c.l.b16 %v66
    %v99 = vunpack.c.l.b16 %v67
    %v100 = vpack.c.b16 %v85, %v84
    %v101 = vpack.c.b16 %v87, %v86
    %v102 = vpack.c.b16 %v89, %v88
    %v103 = vpack.c.b16 %v91, %v90
    %v104 = vpack.c.b16 %v93, %v92
    %v105 = vpack.c.b16 %v95, %v94
    %v106 = vpack.c.b16 %v97, %v96
    %v107 = vpack.c.b16 %v99, %v98
    %116 = vmatprep.subr.bf16.mxu0 0
    %117 = vmatpush1.bf16.msra.mxu0 %v107
    %118 = vmatprep.subr.bf16.mxu0 0
    %119 = vmatpush1.bf16.msra.mxu0 %v106
    %120 = vmatprep.subr.bf16.mxu0 0
    %121 = vmatpush1.bf16.msra.mxu0 %v105
    %122 = vmatprep.subr.bf16.mxu0 0
    %123 = vmatpush1.bf16.msra.mxu0 %v104
    %124 = vmatprep.subr.bf16.mxu0 0
    %125 = vmatpush1.bf16.msra.mxu0 %v103
    %126 = vmatprep.subr.bf16.mxu0 0
    %127 = vmatpush1.bf16.msra.mxu0 %v102
    %128 = vmatprep.subr.bf16.mxu0 0
    %129 = vmatpush1.bf16.msra.mxu0 %v101
    %130 = vmatprep.subr.bf16.mxu0 0
    %131 = vmatpush1.bf16.msra.mxu0 %v100
    %132 = vmatprep.subr.bf16.mxu0 0
    %133 = vmatpush2.bf16.msra.mxu0 0
    %134 = vmatprep.subr.bf16.mxu0 0
    %135 = vmatpush2.bf16.msra.mxu0 0
    %136 = vmatprep.subr.bf16.mxu0 0
    %137 = vmatpush2.bf16.msra.mxu0 0
    %138 = vmatprep.subr.bf16.mxu0 0
    %139 = vmatpush2.bf16.msra.mxu0 0
    %140 = vmatprep.subr.bf16.mxu0 0
    %141 = vmatpush2.bf16.msra.mxu0 0
    %142 = vmatprep.subr.bf16.mxu0 0
    %143 = vmatpush2.bf16.msra.mxu0 0
    %144 = vmatprep.subr.bf16.mxu0 0
    %145 = vmatpush2.bf16.msra.mxu0 0
    %146 = vmatprep.subr.bf16.mxu0 0
    %147 = vmatpush2.bf16.msra.mxu0 0
    %148 = vmatprep.mubr.bf16.mxu0 0
    %149 = vmatmul.mubr.bf16.gmra.mxu0 %v51
    %v150 = vpop.f32.mrf.mxu0
    %v151 = vadd.f32 0.0, %v150
    %v152 = vpop.f32.mrf.mxu0
    %v153 = vpop.f32.mrf.mxu0
    %v154 = vpop.f32.mrf.mxu0
    %155 = vdwg.mxu0
    %156 = vst [vmem:[#allocation2] sm:$0x3] %v151
    // Predicated region
    $region18: #{visual_transformer_forward.17} parent=1 // pred_check
      _
    $region19: #{visual_transformer_forward.17} parent=1 // pred_check_branch
      %158 = sbr.rel (0) target = $region21
    $region20: #{visual_transformer_forward.17} parent=1 // pred_region
      %s160 = ssub.s32 32, 32
      %161 = vsyncadd [#allocation3], %s160
      %s163 = sshll.u32 [#allocation2], 4
      %s164 = int_to_ptr.vmem [resolvable:$true] %s163
      %166 = dma.vmem_to_hbm [thread:$0]  %s164, 32, %s4, [#allocation3]
    $region21: #{visual_transformer_forward.17} parent=1 // pred_fallthru
      _
    // Predicated region
    $region22: #{visual_transformer_forward.17} parent=1 // pred_check
      _
    $region23: #{visual_transformer_forward.17} parent=1 // pred_check_branch
      %168 = sbr.rel (0) target = $region25
    $region24: #{visual_transformer_forward.17} parent=1 // pred_region
      %169 = dma.done [#allocation3], 32
    $region25: #{visual_transformer_forward.17} parent=1 // pred_fallthru
      _
    %170 = vsyncpa [#allocation3], 1

// kernel: visual_transformer_forward.13
$region0: #{visual_transformer_forward.13}
  #allocation0 [shape = 'u32[]', space=smem, size = 0x4, offset = 0x4, fixed_abs, tag = 'smem constant byte address 0x4 - core index']
  #allocation1 [shape = 'u32[144,128]{1,0:T(1,128)}', space=vmem, size = 0x12000, scoped, tag = 'internal scratch']
  %s0 = inlined_call_operand.vmem [shape: f32[48,128], index: 0, kind: input, shape index: {}]
  %s1 = inlined_call_operand.vmem [shape: f32[1,128], index: 1, kind: input, shape index: {}]
  %s2 = inlined_call_operand.vmem [shape: f32[1,128], index: 2, kind: input, shape index: {}]
  %s3 = inlined_call_operand.vmem [shape: bf16[128,512], index: 3, kind: input, shape index: {}]
  %s4 = inlined_call_operand.vmem [shape: f32[1,512], index: 4, kind: input, shape index: {}]
  %s5 = inlined_call_operand.vmem [shape: bf16[512,128], index: 5, kind: input, shape index: {}]
  %s6 = inlined_call_operand.vmem [shape: f32[1,128], index: 6, kind: input, shape index: {}]
  %s7 = inlined_call_operand.vmem [shape: f32[48,128], index: 7, kind: output, shape index: {}]
  %s8 = sld [smem:[#allocation0]]
  $region61: #{visual_transformer_forward.13} parent=0
    _
  %s10 = ssub.s32 1, %s8
  %s11 = scalar_select 0, %s10, %s8
  loop: start=0, step=1, limit=4
  $region2: #{visual_transformer_forward.13} parent=0 // loop_pre_header
    _
  $region3: #{visual_transformer_forward.13} parent=0 // loop_header
    %s13 = sphi 0, %s17
    %p14 = scmp.ge.s32.totalorder %s13, 4
    %s23 = sphi 0, %s25
    %s26 = sphi 0, %s23
    %s27 = sphi 0, %s26
    %s43 = sphi 0, %s27
    %s47 = sphi 0, %s47
    %s49 = sphi 0, %s47
    %s50 = sphi 0, %s49
    %s64 = sphi 0, %s50
    %s68 = sphi 0, %s68
    %s70 = sphi 0, %s68
    %s71 = sphi 0, %s70
    %s85 = sphi 0, %s71
    %s89 = sphi 0, %s89
    %s91 = sphi 0, %s89
    %s92 = sphi 0, %s91
    %s106 = sphi 0, %s92
    %s110 = sphi 0, %s110
    %s112 = sphi 0, %s110
    %s113 = sphi 0, %s112
    %s127 = sphi 0, %s113
    %s131 = sphi 0, %s131
    %s133 = sphi 0, %s131
    %s134 = sphi 0, %s133
    %s148 = sphi 0, %s134
    %s152 = sphi 0, %s152
    %s154 = sphi 0, %s152
    %s155 = sphi 0, %s154
    %s169 = sphi 0, %s155
    %s175 = sphi 0, %s177
    %s178 = sphi 0, %s175
    %s179 = sphi 0, %s178
    %s195 = sphi 0, %s179
  $region4: #{visual_transformer_forward.13} parent=0 // loop_header_branch
    %16 = sbr.rel (%p14) target = $region8
  $region5: #{visual_transformer_forward.13} parent=0 // loop_body
    %s18 = ssub.s32 %s13, 1
    %s19 = ssub.s32 %s13, 2
    %s20 = sadd.s32 %s13, 1
    %s21 = ssub.s32 %s13, %s20
    %p22 = scmp.eq.s32.totalorder %s21, 0
    %s24 = sadd.s32 %s23, 1
    %s25 = scalar_select %p22, %s23, %s24
    %p28 = pneg %p22
    %p29 = scmp.eq.s32.totalorder %s13, 1
    %p30 = por %p28, %p29
    %p31 = scmp.ne.s32.totalorder %s23, %s26
    %p32 = scmp.eq.s32.totalorder %s13, 0
    %p33 = por %p31, %p32
    %p34 = scmp.ne.s32.totalorder %s23, %s26
    %p35 = scmp.eq.s32.totalorder %s18, 1
    %p36 = por %p34, %p35
    %p37 = scmp.ne.s32.totalorder %s26, %s27
    %p38 = scmp.eq.s32.totalorder %s18, 0
    %p39 = por %p37, %p38
    %p40 = scmp.ne.s32.totalorder %s26, %s27
    %p41 = scmp.eq.s32.totalorder %s19, 1
    %p42 = por %p40, %p41
    %p44 = scmp.ne.s32.totalorder %s27, %s43
    %p45 = scmp.eq.s32.totalorder %s19, 0
    %p46 = por %p44, %p45
    %s48 = sadd.s32 %s47, 1
    %p51 = scmp.eq.s32.totalorder %s13, 1
    %p52 = scmp.ne.s32.totalorder %s47, %s49
    %p53 = scmp.eq.s32.totalorder %s13, 0
    %p54 = por %p52, %p53
    %p55 = scmp.ne.s32.totalorder %s47, %s49
    %p56 = scmp.eq.s32.totalorder %s18, 1
    %p57 = por %p55, %p56
    %p58 = scmp.ne.s32.totalorder %s49, %s50
    %p59 = scmp.eq.s32.totalorder %s18, 0
    %p60 = por %p58, %p59
    %p61 = scmp.ne.s32.totalorder %s49, %s50
    %p62 = scmp.eq.s32.totalorder %s19, 1
    %p63 = por %p61, %p62
    %p65 = scmp.ne.s32.totalorder %s50, %s64
    %p66 = scmp.eq.s32.totalorder %s19, 0
    %p67 = por %p65, %p66
    %s69 = sadd.s32 %s68, 1
    %p72 = scmp.eq.s32.totalorder %s13, 1
    %p73 = scmp.ne.s32.totalorder %s68, %s70
    %p74 = scmp.eq.s32.totalorder %s13, 0
    %p75 = por %p73, %p74
    %p76 = scmp.ne.s32.totalorder %s68, %s70
    %p77 = scmp.eq.s32.totalorder %s18, 1
    %p78 = por %p76, %p77
    %p79 = scmp.ne.s32.totalorder %s70, %s71
    %p80 = scmp.eq.s32.totalorder %s18, 0
    %p81 = por %p79, %p80
    %p82 = scmp.ne.s32.totalorder %s70, %s71
    %p83 = scmp.eq.s32.totalorder %s19, 1
    %p84 = por %p82, %p83
    %p86 = scmp.ne.s32.totalorder %s71, %s85
    %p87 = scmp.eq.s32.totalorder %s19, 0
    %p88 = por %p86, %p87
    %s90 = sadd.s32 %s89, 1
    %p93 = scmp.eq.s32.totalorder %s13, 1
    %p94 = scmp.ne.s32.totalorder %s89, %s91
    %p95 = scmp.eq.s32.totalorder %s13, 0
    %p96 = por %p94, %p95
    %p97 = scmp.ne.s32.totalorder %s89, %s91
    %p98 = scmp.eq.s32.totalorder %s18, 1
    %p99 = por %p97, %p98
    %p100 = scmp.ne.s32.totalorder %s91, %s92
    %p101 = scmp.eq.s32.totalorder %s18, 0
    %p102 = por %p100, %p101
    %p103 = scmp.ne.s32.totalorder %s91, %s92
    %p104 = scmp.eq.s32.totalorder %s19, 1
    %p105 = por %p103, %p104
    %p107 = scmp.ne.s32.totalorder %s92, %s106
    %p108 = scmp.eq.s32.totalorder %s19, 0
    %p109 = por %p107, %p108
    %s111 = sadd.s32 %s110, 1
    %p114 = scmp.eq.s32.totalorder %s13, 1
    %p115 = scmp.ne.s32.totalorder %s110, %s112
    %p116 = scmp.eq.s32.totalorder %s13, 0
    %p117 = por %p115, %p116
    %p118 = scmp.ne.s32.totalorder %s110, %s112
    %p119 = scmp.eq.s32.totalorder %s18, 1
    %p120 = por %p118, %p119
    %p121 = scmp.ne.s32.totalorder %s112, %s113
    %p122 = scmp.eq.s32.totalorder %s18, 0
    %p123 = por %p121, %p122
    %p124 = scmp.ne.s32.totalorder %s112, %s113
    %p125 = scmp.eq.s32.totalorder %s19, 1
    %p126 = por %p124, %p125
    %p128 = scmp.ne.s32.totalorder %s113, %s127
    %p129 = scmp.eq.s32.totalorder %s19, 0
    %p130 = por %p128, %p129
    %s132 = sadd.s32 %s131, 1
    %p135 = scmp.eq.s32.totalorder %s13, 1
    %p136 = scmp.ne.s32.totalorder %s131, %s133
    %p137 = scmp.eq.s32.totalorder %s13, 0
    %p138 = por %p136, %p137
    %p139 = scmp.ne.s32.totalorder %s131, %s133
    %p140 = scmp.eq.s32.totalorder %s18, 1
    %p141 = por %p139, %p140
    %p142 = scmp.ne.s32.totalorder %s133, %s134
    %p143 = scmp.eq.s32.totalorder %s18, 0
    %p144 = por %p142, %p143
    %p145 = scmp.ne.s32.totalorder %s133, %s134
    %p146 = scmp.eq.s32.totalorder %s19, 1
    %p147 = por %p145, %p146
    %p149 = scmp.ne.s32.totalorder %s134, %s148
    %p150 = scmp.eq.s32.totalorder %s19, 0
    %p151 = por %p149, %p150
    %s153 = sadd.s32 %s152, 1
    %p156 = scmp.eq.s32.totalorder %s13, 1
    %p157 = scmp.ne.s32.totalorder %s152, %s154
    %p158 = scmp.eq.s32.totalorder %s13, 0
    %p159 = por %p157, %p158
    %p160 = scmp.ne.s32.totalorder %s152, %s154
    %p161 = scmp.eq.s32.totalorder %s18, 1
    %p162 = por %p160, %p161
    %p163 = scmp.ne.s32.totalorder %s154, %s155
    %p164 = scmp.eq.s32.totalorder %s18, 0
    %p165 = por %p163, %p164
    %p166 = scmp.ne.s32.totalorder %s154, %s155
    %p167 = scmp.eq.s32.totalorder %s19, 1
    %p168 = por %p166, %p167
    %p170 = scmp.ne.s32.totalorder %s155, %s169
    %p171 = scmp.eq.s32.totalorder %s19, 0
    %p172 = por %p170, %p171
    %s173 = ssub.s32 %s13, %s20
    %p174 = scmp.eq.s32.totalorder %s173, 0
    %s176 = sadd.s32 %s175, 1
    %s177 = scalar_select %p174, %s175, %s176
    %p180 = pneg %p174
    %p181 = scmp.eq.s32.totalorder %s13, 1
    %p182 = por %p180, %p181
    %p183 = scmp.ne.s32.totalorder %s175, %s178
    %p184 = scmp.eq.s32.totalorder %s13, 0
    %p185 = por %p183, %p184
    %p186 = scmp.ne.s32.totalorder %s175, %s178
    %p187 = scmp.eq.s32.totalorder %s18, 1
    %p188 = por %p186, %p187
    %p189 = scmp.ne.s32.totalorder %s178, %s179
    %p190 = scmp.eq.s32.totalorder %s18, 0
    %p191 = por %p189, %p190
    %p192 = scmp.ne.s32.totalorder %s178, %s179
    %p193 = scmp.eq.s32.totalorder %s19, 1
    %p194 = por %p192, %p193
    %p196 = scmp.ne.s32.totalorder %s179, %s195
    %p197 = scmp.eq.s32.totalorder %s19, 0
    %p198 = por %p196, %p197
    %p199 = scmp.le.s32.totalorder 1, %s13
    %p200 = scmp.lt.s32.totalorder %s13, 3
    %p201 = pnand %p199, %p200
    %p202 = pneg %p201
    // Predicated region
    $region9: #{visual_transformer_forward.13} parent=5 // pred_check
      _
    $region10: #{visual_transformer_forward.13} parent=5 // pred_check_branch
      %204 = sbr.rel (%p201) target = $region12
    $region11: #{visual_transformer_forward.13} parent=5 // pred_region
      %s205 = ssub.s32 %s13, 1
      // Predicated region
      $region13: #{visual_transformer_forward.13} parent=11 // pred_check
        %p206 = pneg %p60
      $region14: #{visual_transformer_forward.13} parent=11 // pred_check_branch
        %208 = sbr.rel (%p206) target = $region16
      $region15: #{visual_transformer_forward.13} parent=11 // pred_region
        _
      $region16: #{visual_transformer_forward.13} parent=11 // pred_fallthru
        _
      // Predicated region
      $region17: #{visual_transformer_forward.13} parent=11 // pred_check
        %p209 = pneg %p81
      $region18: #{visual_transformer_forward.13} parent=11 // pred_check_branch
        %211 = sbr.rel (%p209) target = $region20
      $region19: #{visual_transformer_forward.13} parent=11 // pred_region
        _
      $region20: #{visual_transformer_forward.13} parent=11 // pred_fallthru
        _
      // Predicated region
      $region21: #{visual_transformer_forward.13} parent=11 // pred_check
        %p212 = pneg %p102
      $region22: #{visual_transformer_forward.13} parent=11 // pred_check_branch
        %214 = sbr.rel (%p212) target = $region24
      $region23: #{visual_transformer_forward.13} parent=11 // pred_region
        _
      $region24: #{visual_transformer_forward.13} parent=11 // pred_fallthru
        _
      // Predicated region
      $region25: #{visual_transformer_forward.13} parent=11 // pred_check
        %p215 = pneg %p123
      $region26: #{visual_transformer_forward.13} parent=11 // pred_check_branch
        %217 = sbr.rel (%p215) target = $region28
      $region27: #{visual_transformer_forward.13} parent=11 // pred_region
        _
      $region28: #{visual_transformer_forward.13} parent=11 // pred_fallthru
        _
      // Predicated region
      $region29: #{visual_transformer_forward.13} parent=11 // pred_check
        %p218 = pneg %p144
      $region30: #{visual_transformer_forward.13} parent=11 // pred_check_branch
        %220 = sbr.rel (%p218) target = $region32
      $region31: #{visual_transformer_forward.13} parent=11 // pred_region
        _
      $region32: #{visual_transformer_forward.13} parent=11 // pred_fallthru
        _
      // Predicated region
      $region33: #{visual_transformer_forward.13} parent=11 // pred_check
        %p221 = pneg %p165
      $region34: #{visual_transformer_forward.13} parent=11 // pred_check_branch
        %223 = sbr.rel (%p221) target = $region36
      $region35: #{visual_transformer_forward.13} parent=11 // pred_region
        _
      $region36: #{visual_transformer_forward.13} parent=11 // pred_fallthru
        _
    $region12: #{visual_transformer_forward.13} parent=5 // pred_fallthru
      _
    %p224 = scmp.lt.s32.totalorder %s13, 2
    // Predicated region
    $region37: #{visual_transformer_forward.13} parent=5 // pred_check
      %p225 = pneg %p224
    $region38: #{visual_transformer_forward.13} parent=5 // pred_check_branch
      %227 = sbr.rel (%p225) target = $region40
    $region39: #{visual_transformer_forward.13} parent=5 // pred_region
      // Predicated region
      $region41: #{visual_transformer_forward.13} parent=39 // pred_check
        %p228 = pneg %p33
      $region42: #{visual_transformer_forward.13} parent=39 // pred_check_branch
        %230 = sbr.rel (%p228) target = $region44
      $region43: #{visual_transformer_forward.13} parent=39 // pred_region
        %s231 = smul.u32 3, %s13
        %p232 = scmp.lt.s32.totalorder %s231, 5
        %s233 = scalar_select %p232, %s231, 5
        %s234 = smul.addr %s233, 8
        %s235 = scalar_lea.vmem %s0, %s234
        %s236 = smul.u32 3, %s13
      $region44: #{visual_transformer_forward.13} parent=39 // pred_fallthru
        _
    $region40: #{visual_transformer_forward.13} parent=5 // pred_fallthru
      _
    %p237 = scmp.le.s32.totalorder 1, %s13
    %p238 = scmp.lt.s32.totalorder %s13, 3
    %p239 = pnand %p237, %p238
    %p240 = pneg %p239
    // Predicated region
    $region45: #{visual_transformer_forward.13} parent=5 // pred_check
      _
    $region46: #{visual_transformer_forward.13} parent=5 // pred_check_branch
      %242 = sbr.rel (%p239) target = $region48
    $region47: #{visual_transformer_forward.13} parent=5 // pred_region
      %s243 = ssub.s32 %s13, 1
      %s244 = smul.u32 3, %s18
      %p245 = scmp.lt.s32.totalorder %s244, 5
      %s246 = scalar_select %p245, %s244, 5
      %s247 = smul.addr %s246, 8
      %s248 = scalar_lea.vmem %s0, %s247
      %p249 = pneg %p39
      %p250 = pneg %p36
      %p251 = pneg %p60
      %p252 = pneg %p57
      %p253 = pneg %p81
      %p254 = pneg %p78
      %p255 = pneg %p102
      %p256 = pneg %p99
      %p257 = pneg %p123
      %p258 = pneg %p120
      %p259 = pneg %p144
      %p260 = pneg %p141
      %p261 = pneg %p165
      %p262 = pneg %p162
      %p263 = pneg %p191
      %p264 = pneg %p188
      %s265 = smul.u32 3, %s18
      %p266 = scmp.lt.s32.totalorder %s265, 5
      %s267 = scalar_select %p266, %s265, 5
      %s268 = smul.addr %s267, 8
      %s269 = scalar_lea.vmem %s7, %s268
      %s270 = smul.u32 3, %s18
      %p271 = scmp.lt.s32.totalorder %s270, 5
      %s272 = scalar_select %p271, %s270, 5
      %s273 = smul.addr %s272, 8
      %s274 = scalar_lea.vmem %s0, %s273
      %s275 = smul.u32 3, %s18
      %s276 = smul.u32 3, %s18
      %p277 = scmp.lt.s32.totalorder %s276, 5
      %s278 = scalar_select %p277, %s276, 5
      %s279 = smul.addr %s278, 8
      %s280 = scalar_lea.vmem %s7, %s279
      %s281 = smul.u32 3, %s18
      %v283 = vld [vmem:[%s274] sm:$0xff]
      %v284 = vld [vmem:[%s274 + $0x8] sm:$0xff]
      %v285 = vld [vmem:[%s274 + $0x10] sm:$0xff]
      %v286 = vld [vmem:[%s1] sm:$0x1]
      %v287 = vld [vmem:[%s2] sm:$0x1]
      %288 = vadd.xlane.f32.xlu0 %v283
      %v289 = vpop.xlane.xlu0 %288
      %290 = vadd.xlane.f32.xlu0 %v284
      %v291 = vpop.xlane.xlu0 %290
      %292 = vadd.xlane.f32.xlu0 %v285
      %v293 = vpop.xlane.xlu0 %292
      %v294 = vrcp.pop 128.0
      %v295 = vmul.f32 %v289, %v294
      %v296 = vmul.f32 %v291, %v294
      %v297 = vmul.f32 %v293, %v294
      %v298 = vsub.f32 %v283, %v295
      %v299 = vsub.f32 %v284, %v296
      %v300 = vsub.f32 %v285, %v297
      %v301 = vmul.f32 %v298, %v298
      %v302 = vmul.f32 %v299, %v299
      %v303 = vmul.f32 %v300, %v300
      %304 = vadd.xlane.f32.xlu0 %v301
      %v305 = vpop.xlane.xlu0 %304
      %306 = vadd.xlane.f32.xlu0 %v302
      %v307 = vpop.xlane.xlu0 %306
      %308 = vadd.xlane.f32.xlu0 %v303
      %v309 = vpop.xlane.xlu0 %308
      %v310 = vmul.f32 %v305, %v294
      %v311 = vmul.f32 %v307, %v294
      %v312 = vmul.f32 %v309, %v294
      %v313 = vadd.f32 %v310, 1e-05
      %v314 = vadd.f32 %v311, 1e-05
      %v315 = vadd.f32 %v312, 1e-05
      %v316 = vrsqrt.pop %v313
      %v317 = vrsqrt.pop %v314
      %v318 = vrsqrt.pop %v315
      %v319 = vmul.f32 %v298, %v316
      %v320 = vmul.f32 %v299, %v317
      %v321 = vmul.f32 %v300, %v318
      %v323 = vlaneseq
      %v324 = vshrl.u32 %v323, 7
      %v325 = vsub.s32 0, %v324
      %v326 = vrot.slane %v286, %v325
      %v328 = vmul.f32 %v319, %v326
      %v329 = vmul.f32 %v320, %v326
      %v330 = vmul.f32 %v321, %v326
      %v332 = vlaneseq
      %v333 = vshrl.u32 %v332, 7
      %v334 = vsub.s32 0, %v333
      %v335 = vrot.slane %v287, %v334
      %v337 = vadd.f32 %v328, %v335
      %v338 = vadd.f32 %v329, %v335
      %v339 = vadd.f32 %v330, %v335
      %v340 = vpack.c.bf16 %v338, %v337
      %v341 = vpack.c.bf16 %v339, %v339
      %v342 = vld [vmem:[%s3] sm:$0xff]
      %v343 = vld [vmem:[%s3 + $0x8] sm:$0xff]
      %v344 = vld [vmem:[%s3 + $0x10] sm:$0xff]
      %v345 = vld [vmem:[%s3 + $0x18] sm:$0xff]
      %v346 = vld [vmem:[%s3 + $0x20] sm:$0xff]
      %v347 = vld [vmem:[%s3 + $0x28] sm:$0xff]
      %v348 = vld [vmem:[%s3 + $0x30] sm:$0xff]
      %v349 = vld [vmem:[%s3 + $0x38] sm:$0xff]
      %v350 = vld [vmem:[%s3 + $0x40] sm:$0xff]
      %v351 = vld [vmem:[%s3 + $0x48] sm:$0xff]
      %v352 = vld [vmem:[%s3 + $0x50] sm:$0xff]
      %v353 = vld [vmem:[%s3 + $0x58] sm:$0xff]
      %v354 = vld [vmem:[%s3 + $0x60] sm:$0xff]
      %v355 = vld [vmem:[%s3 + $0x68] sm:$0xff]
      %v356 = vld [vmem:[%s3 + $0x70] sm:$0xff]
      %v357 = vld [vmem:[%s3 + $0x78] sm:$0xff]
      %v358 = vld [vmem:[%s3 + $0x80] sm:$0xff]
      %v359 = vld [vmem:[%s3 + $0x88] sm:$0xff]
      %v360 = vld [vmem:[%s3 + $0x90] sm:$0xff]
      %v361 = vld [vmem:[%s3 + $0x98] sm:$0xff]
      %v362 = vld [vmem:[%s3 + $0xa0] sm:$0xff]
      %v363 = vld [vmem:[%s3 + $0xa8] sm:$0xff]
      %v364 = vld [vmem:[%s3 + $0xb0] sm:$0xff]
      %v365 = vld [vmem:[%s3 + $0xb8] sm:$0xff]
      %v366 = vld [vmem:[%s3 + $0xc0] sm:$0xff]
      %v367 = vld [vmem:[%s3 + $0xc8] sm:$0xff]
      %v368 = vld [vmem:[%s3 + $0xd0] sm:$0xff]
      %v369 = vld [vmem:[%s3 + $0xd8] sm:$0xff]
      %v370 = vld [vmem:[%s3 + $0xe0] sm:$0xff]
      %v371 = vld [vmem:[%s3 + $0xe8] sm:$0xff]
      %v372 = vld [vmem:[%s3 + $0xf0] sm:$0xff]
      %v373 = vld [vmem:[%s3 + $0xf8] sm:$0xff]
      %v374 = vld [vmem:[%s4] sm:$0xf]
      %v376 = vlaneseq
      %v377 = vshrl.u32 %v376, 7
      %v378 = vsub.s32 0, %v377
      %v379 = vrot.slane %v374, %v378
      %v380 = vlaneseq
      %v381 = vshrl.u32 %v380, 7
      %v382 = vsub.s32 1, %v381
      %v383 = vrot.slane %v374, %v382
      %v384 = vlaneseq
      %v385 = vshrl.u32 %v384, 7
      %v386 = vsub.s32 2, %v385
      %v387 = vrot.slane %v374, %v386
      %v388 = vlaneseq
      %v389 = vshrl.u32 %v388, 7
      %v390 = vsub.s32 3, %v389
      %v391 = vrot.slane %v374, %v390
      %v428 = vunpack.c.l.b16 %v342
      %v429 = vunpack.c.h.b16 %v342
      %v430 = vunpack.c.l.b16 %v343
      %v431 = vunpack.c.h.b16 %v343
      %v432 = vunpack.c.l.b16 %v344
      %v433 = vunpack.c.h.b16 %v344
      %v434 = vunpack.c.l.b16 %v345
      %v435 = vunpack.c.h.b16 %v345
      %v436 = vunpack.c.l.b16 %v346
      %v437 = vunpack.c.h.b16 %v346
      %v438 = vunpack.c.l.b16 %v347
      %v439 = vunpack.c.h.b16 %v347
      %v440 = vunpack.c.l.b16 %v348
      %v441 = vunpack.c.h.b16 %v348
      %v442 = vunpack.c.l.b16 %v349
      %v443 = vunpack.c.h.b16 %v349
      %v444 = vunpack.c.l.b16 %v350
      %v445 = vunpack.c.h.b16 %v350
      %v446 = vunpack.c.l.b16 %v351
      %v447 = vunpack.c.h.b16 %v351
      %v448 = vunpack.c.l.b16 %v352
      %v449 = vunpack.c.h.b16 %v352
      %v450 = vunpack.c.l.b16 %v353
      %v451 = vunpack.c.h.b16 %v353
      %v452 = vunpack.c.l.b16 %v354
      %v453 = vunpack.c.h.b16 %v354
      %v454 = vunpack.c.l.b16 %v355
      %v455 = vunpack.c.h.b16 %v355
      %v456 = vunpack.c.l.b16 %v356
      %v457 = vunpack.c.h.b16 %v356
      %v458 = vunpack.c.l.b16 %v357
      %v459 = vunpack.c.h.b16 %v357
      %v460 = vunpack.c.l.b16 %v358
      %v461 = vunpack.c.h.b16 %v358
      %v462 = vunpack.c.l.b16 %v359
      %v463 = vunpack.c.h.b16 %v359
      %v464 = vunpack.c.l.b16 %v360
      %v465 = vunpack.c.h.b16 %v360
      %v466 = vunpack.c.l.b16 %v361
      %v467 = vunpack.c.h.b16 %v361
      %v468 = vunpack.c.l.b16 %v362
      %v469 = vunpack.c.h.b16 %v362
      %v470 = vunpack.c.l.b16 %v363
      %v471 = vunpack.c.h.b16 %v363
      %v472 = vunpack.c.l.b16 %v364
      %v473 = vunpack.c.h.b16 %v364
      %v474 = vunpack.c.l.b16 %v365
      %v475 = vunpack.c.h.b16 %v365
      %v476 = vunpack.c.l.b16 %v366
      %v477 = vunpack.c.h.b16 %v366
      %v478 = vunpack.c.l.b16 %v367
      %v479 = vunpack.c.h.b16 %v367
      %v480 = vunpack.c.l.b16 %v368
      %v481 = vunpack.c.h.b16 %v368
      %v482 = vunpack.c.l.b16 %v369
      %v483 = vunpack.c.h.b16 %v369
      %v484 = vunpack.c.l.b16 %v370
      %v485 = vunpack.c.h.b16 %v370
      %v486 = vunpack.c.l.b16 %v371
      %v487 = vunpack.c.h.b16 %v371
      %v488 = vunpack.c.l.b16 %v372
      %v489 = vunpack.c.h.b16 %v372
      %v490 = vunpack.c.l.b16 %v373
      %v491 = vunpack.c.h.b16 %v373
      %v492 = vpack.c.b16 %v432, %v428
      %v493 = vpack.c.b16 %v433, %v429
      %v494 = vpack.c.b16 %v434, %v430
      %v495 = vpack.c.b16 %v435, %v431
      %v496 = vpack.c.b16 %v440, %v436
      %v497 = vpack.c.b16 %v441, %v437
      %v498 = vpack.c.b16 %v442, %v438
      %v499 = vpack.c.b16 %v443, %v439
      %v500 = vpack.c.b16 %v448, %v444
      %v501 = vpack.c.b16 %v449, %v445
      %v502 = vpack.c.b16 %v450, %v446
      %v503 = vpack.c.b16 %v451, %v447
      %v504 = vpack.c.b16 %v456, %v452
      %v505 = vpack.c.b16 %v457, %v453
      %v506 = vpack.c.b16 %v458, %v454
      %v507 = vpack.c.b16 %v459, %v455
      %v508 = vpack.c.b16 %v464, %v460
      %v509 = vpack.c.b16 %v465, %v461
      %v510 = vpack.c.b16 %v466, %v462
      %v511 = vpack.c.b16 %v467, %v463
      %v512 = vpack.c.b16 %v472, %v468
      %v513 = vpack.c.b16 %v473, %v469
      %v514 = vpack.c.b16 %v474, %v470
      %v515 = vpack.c.b16 %v475, %v471
      %v516 = vpack.c.b16 %v480, %v476
      %v517 = vpack.c.b16 %v481, %v477
      %v518 = vpack.c.b16 %v482, %v478
      %v519 = vpack.c.b16 %v483, %v479
      %v520 = vpack.c.b16 %v488, %v484
      %v521 = vpack.c.b16 %v489, %v485
      %v522 = vpack.c.b16 %v490, %v486
      %v523 = vpack.c.b16 %v491, %v487
      %556 = vmatprep.subr.bf16.mxu0 %v521
      %557 = vmatpush1.bf16.msra.mxu0 %v520
      %558 = vmatprep.subr.bf16.mxu0 %v517
      %559 = vmatpush1.bf16.msra.mxu0 %v516
      %560 = vmatprep.subr.bf16.mxu0 %v513
      %561 = vmatpush1.bf16.msra.mxu0 %v512
      %562 = vmatprep.subr.bf16.mxu0 %v509
      %563 = vmatpush1.bf16.msra.mxu0 %v508
      %564 = vmatprep.subr.bf16.mxu0 %v505
      %565 = vmatpush1.bf16.msra.mxu0 %v504
      %566 = vmatprep.subr.bf16.mxu0 %v501
      %567 = vmatpush1.bf16.msra.mxu0 %v500
      %568 = vmatprep.subr.bf16.mxu0 %v497
      %569 = vmatpush1.bf16.msra.mxu0 %v496
      %570 = vmatprep.subr.bf16.mxu0 %v493
      %571 = vmatpush1.bf16.msra.mxu0 %v492
      %572 = vmatprep.subr.bf16.mxu0 0
      %573 = vmatpush2.bf16.msra.mxu0 0
      %574 = vmatprep.subr.bf16.mxu0 0
      %575 = vmatpush2.bf16.msra.mxu0 0
      %576 = vmatprep.subr.bf16.mxu0 0
      %577 = vmatpush2.bf16.msra.mxu0 0
      %578 = vmatprep.subr.bf16.mxu0 0
      %579 = vmatpush2.bf16.msra.mxu0 0
      %580 = vmatprep.subr.bf16.mxu0 0
      %581 = vmatpush2.bf16.msra.mxu0 0
      %582 = vmatprep.subr.bf16.mxu0 0
      %583 = vmatpush2.bf16.msra.mxu0 0
      %584 = vmatprep.subr.bf16.mxu0 0
      %585 = vmatpush2.bf16.msra.mxu0 0
      %586 = vmatprep.subr.bf16.mxu0 0
      %587 = vmatpush2.bf16.msra.mxu0 0
      %588 = vmatprep.mubr.bf16.mxu0 0
      %589 = vmatmul.mubr.bf16.gmra.mxu0 %v340
      %v590 = vpop.f32.mrf.mxu0
      %v591 = vadd.f32 %v379, %v590
      %v592 = vpop.f32.mrf.mxu0
      %v593 = vadd.f32 %v383, %v592
      %v594 = vpop.f32.mrf.mxu0
      %v595 = vadd.f32 %v379, %v594
      %v596 = vpop.f32.mrf.mxu0
      %v597 = vadd.f32 %v383, %v596
      %598 = vmatprep.mubr.bf16.mxu0 0
      %599 = vmatmul.mubr.bf16.gmra.mxu0 %v341
      %v600 = vpop.f32.mrf.mxu0
      %v601 = vadd.f32 %v379, %v600
      %v602 = vpop.f32.mrf.mxu0
      %v603 = vadd.f32 %v383, %v602
      %v604 = vpop.f32.mrf.mxu0
      %v605 = vpop.f32.mrf.mxu0
      %606 = vdwg.mxu0
      %607 = vmatprep.subr.bf16.mxu0 %v523
      %608 = vmatpush1.bf16.msra.mxu0 %v522
      %609 = vmatprep.subr.bf16.mxu0 %v519
      %610 = vmatpush1.bf16.msra.mxu0 %v518
      %611 = vmatprep.subr.bf16.mxu0 %v515
      %612 = vmatpush1.bf16.msra.mxu0 %v514
      %613 = vmatprep.subr.bf16.mxu0 %v511
      %614 = vmatpush1.bf16.msra.mxu0 %v510
      %615 = vmatprep.subr.bf16.mxu0 %v507
      %616 = vmatpush1.bf16.msra.mxu0 %v506
      %617 = vmatprep.subr.bf16.mxu0 %v503
      %618 = vmatpush1.bf16.msra.mxu0 %v502
      %619 = vmatprep.subr.bf16.mxu0 %v499
      %620 = vmatpush1.bf16.msra.mxu0 %v498
      %621 = vmatprep.subr.bf16.mxu0 %v495
      %622 = vmatpush1.bf16.msra.mxu0 %v494
      %623 = vmatprep.subr.bf16.mxu0 0
      %624 = vmatpush2.bf16.msra.mxu0 0
      %625 = vmatprep.subr.bf16.mxu0 0
      %626 = vmatpush2.bf16.msra.mxu0 0
      %627 = vmatprep.subr.bf16.mxu0 0
      %628 = vmatpush2.bf16.msra.mxu0 0
      %629 = vmatprep.subr.bf16.mxu0 0
      %630 = vmatpush2.bf16.msra.mxu0 0
      %631 = vmatprep.subr.bf16.mxu0 0
      %632 = vmatpush2.bf16.msra.mxu0 0
      %633 = vmatprep.subr.bf16.mxu0 0
      %634 = vmatpush2.bf16.msra.mxu0 0
      %635 = vmatprep.subr.bf16.mxu0 0
      %636 = vmatpush2.bf16.msra.mxu0 0
      %637 = vmatprep.subr.bf16.mxu0 0
      %638 = vmatpush2.bf16.msra.mxu0 0
      %639 = vmatprep.mubr.bf16.mxu0 0
      %640 = vmatmul.mubr.bf16.gmra.mxu0 %v340
      %v641 = vpop.f32.mrf.mxu0
      %v642 = vadd.f32 %v387, %v641
      %v643 = vpop.f32.mrf.mxu0
      %v644 = vadd.f32 %v391, %v643
      %v645 = vpop.f32.mrf.mxu0
      %v646 = vadd.f32 %v387, %v645
      %v647 = vpop.f32.mrf.mxu0
      %v648 = vadd.f32 %v391, %v647
      %649 = vmatprep.mubr.bf16.mxu0 0
      %650 = vmatmul.mubr.bf16.gmra.mxu0 %v341
      %v651 = vpop.f32.mrf.mxu0
      %v652 = vadd.f32 %v387, %v651
      %v653 = vpop.f32.mrf.mxu0
      %v654 = vadd.f32 %v391, %v653
      %v655 = vpop.f32.mrf.mxu0
      %v656 = vpop.f32.mrf.mxu0
      %657 = vdwg.mxu0
      %v658 = vmul.f32 %v591, 1.702
      %v659 = vmul.f32 %v593, 1.702
      %v660 = vmul.f32 %v642, 1.702
      %v661 = vmul.f32 %v644, 1.702
      %v662 = vmul.f32 %v595, 1.702
      %v663 = vmul.f32 %v597, 1.702
      %v664 = vmul.f32 %v646, 1.702
      %v665 = vmul.f32 %v648, 1.702
      %v666 = vmul.f32 %v601, 1.702
      %v667 = vmul.f32 %v603, 1.702
      %v668 = vmul.f32 %v652, 1.702
      %v669 = vmul.f32 %v654, 1.702
      %v670 = vxor.u32 %v658, 2147483648
      %v671 = vxor.u32 %v659, 2147483648
      %v672 = vxor.u32 %v660, 2147483648
      %v673 = vxor.u32 %v661, 2147483648
      %v674 = vxor.u32 %v662, 2147483648
      %v675 = vxor.u32 %v663, 2147483648
      %v676 = vxor.u32 %v664, 2147483648
      %v677 = vxor.u32 %v665, 2147483648
      %v678 = vxor.u32 %v666, 2147483648
      %v679 = vxor.u32 %v667, 2147483648
      %v680 = vxor.u32 %v668, 2147483648
      %v681 = vxor.u32 %v669, 2147483648
      %v682 = vmul.f32 %v670, 1.442695
      %v683 = vpow.pop %v682
      %v684 = vmul.f32 %v671, 1.442695
      %v685 = vpow.pop %v684
      %v686 = vmul.f32 %v672, 1.442695
      %v687 = vpow.pop %v686
      %v688 = vmul.f32 %v673, 1.442695
      %v689 = vpow.pop %v688
      %v690 = vmul.f32 %v674, 1.442695
      %v691 = vpow.pop %v690
      %v692 = vmul.f32 %v675, 1.442695
      %v693 = vpow.pop %v692
      %v694 = vmul.f32 %v676, 1.442695
      %v695 = vpow.pop %v694
      %v696 = vmul.f32 %v677, 1.442695
      %v697 = vpow.pop %v696
      %v698 = vmul.f32 %v678, 1.442695
      %v699 = vpow.pop %v698
      %v700 = vmul.f32 %v679, 1.442695
      %v701 = vpow.pop %v700
      %v702 = vmul.f32 %v680, 1.442695
      %v703 = vpow.pop %v702
      %v704 = vmul.f32 %v681, 1.442695
      %v705 = vpow.pop %v704
      %v706 = vadd.f32 %v683, 1.0
      %v707 = vadd.f32 %v685, 1.0
      %v708 = vadd.f32 %v687, 1.0
      %v709 = vadd.f32 %v689, 1.0
      %v710 = vadd.f32 %v691, 1.0
      %v711 = vadd.f32 %v693, 1.0
      %v712 = vadd.f32 %v695, 1.0
      %v713 = vadd.f32 %v697, 1.0
      %v714 = vadd.f32 %v699, 1.0
      %v715 = vadd.f32 %v701, 1.0
      %v716 = vadd.f32 %v703, 1.0
      %v717 = vadd.f32 %v705, 1.0
      %v718 = vrcp.pop %v706
      %v719 = vmul.f32 1.0, %v718
      %v720 = vrcp.pop %v707
      %v721 = vmul.f32 1.0, %v720
      %v722 = vrcp.pop %v708
      %v723 = vmul.f32 1.0, %v722
      %v724 = vrcp.pop %v709
      %v725 = vmul.f32 1.0, %v724
      %v726 = vrcp.pop %v710
      %v727 = vmul.f32 1.0, %v726
      %v728 = vrcp.pop %v711
      %v729 = vmul.f32 1.0, %v728
      %v730 = vrcp.pop %v712
      %v731 = vmul.f32 1.0, %v730
      %v732 = vrcp.pop %v713
      %v733 = vmul.f32 1.0, %v732
      %v734 = vrcp.pop %v714
      %v735 = vmul.f32 1.0, %v734
      %v736 = vrcp.pop %v715
      %v737 = vmul.f32 1.0, %v736
      %v738 = vrcp.pop %v716
      %v739 = vmul.f32 1.0, %v738
      %v740 = vrcp.pop %v717
      %v741 = vmul.f32 1.0, %v740
      %v742 = vmul.f32 %v591, %v719
      %v743 = vmul.f32 %v593, %v721
      %v744 = vmul.f32 %v642, %v723
      %v745 = vmul.f32 %v644, %v725
      %v746 = vmul.f32 %v595, %v727
      %v747 = vmul.f32 %v597, %v729
      %v748 = vmul.f32 %v646, %v731
      %v749 = vmul.f32 %v648, %v733
      %v750 = vmul.f32 %v601, %v735
      %v751 = vmul.f32 %v603, %v737
      %v752 = vmul.f32 %v652, %v739
      %v753 = vmul.f32 %v654, %v741
      %v754 = vpack.c.bf16 %v746, %v742
      %v755 = vpack.c.bf16 %v747, %v743
      %v756 = vpack.c.bf16 %v748, %v744
      %v757 = vpack.c.bf16 %v749, %v745
      %v758 = vpack.c.bf16 %v750, %v750
      %v759 = vpack.c.bf16 %v751, %v751
      %v760 = vpack.c.bf16 %v752, %v752
      %v761 = vpack.c.bf16 %v753, %v753
      %v762 = vld [vmem:[%s5] sm:$0xf]
      %v763 = vld [vmem:[%s5 + $0x4] sm:$0xf]
      %v764 = vld [vmem:[%s5 + $0x8] sm:$0xf]
      %v765 = vld [vmem:[%s5 + $0xc] sm:$0xf]
      %v766 = vld [vmem:[%s5 + $0x10] sm:$0xf]
      %v767 = vld [vmem:[%s5 + $0x14] sm:$0xf]
      %v768 = vld [vmem:[%s5 + $0x18] sm:$0xf]
      %v769 = vld [vmem:[%s5 + $0x1c] sm:$0xf]
      %v770 = vld [vmem:[%s5 + $0x20] sm:$0xf]
      %v771 = vld [vmem:[%s5 + $0x24] sm:$0xf]
      %v772 = vld [vmem:[%s5 + $0x28] sm:$0xf]
      %v773 = vld [vmem:[%s5 + $0x2c] sm:$0xf]
      %v774 = vld [vmem:[%s5 + $0x30] sm:$0xf]
      %v775 = vld [vmem:[%s5 + $0x34] sm:$0xf]
      %v776 = vld [vmem:[%s5 + $0x38] sm:$0xf]
      %v777 = vld [vmem:[%s5 + $0x3c] sm:$0xf]
      %v778 = vld [vmem:[%s5 + $0x40] sm:$0xf]
      %v779 = vld [vmem:[%s5 + $0x44] sm:$0xf]
      %v780 = vld [vmem:[%s5 + $0x48] sm:$0xf]
      %v781 = vld [vmem:[%s5 + $0x4c] sm:$0xf]
      %v782 = vld [vmem:[%s5 + $0x50] sm:$0xf]
      %v783 = vld [vmem:[%s5 + $0x54] sm:$0xf]
      %v784 = vld [vmem:[%s5 + $0x58] sm:$0xf]
      %v785 = vld [vmem:[%s5 + $0x5c] sm:$0xf]
      %v786 = vld [vmem:[%s5 + $0x60] sm:$0xf]
      %v787 = vld [vmem:[%s5 + $0x64] sm:$0xf]
      %v788 = vld [vmem:[%s5 + $0x68] sm:$0xf]
      %v789 = vld [vmem:[%s5 + $0x6c] sm:$0xf]
      %v790 = vld [vmem:[%s5 + $0x70] sm:$0xf]
      %v791 = vld [vmem:[%s5 + $0x74] sm:$0xf]
      %v792 = vld [vmem:[%s5 + $0x78] sm:$0xf]
      %v793 = vld [vmem:[%s5 + $0x7c] sm:$0xf]
      %v794 = vld [vmem:[%s5 + $0x80] sm:$0xf]
      %v795 = vld [vmem:[%s5 + $0x84] sm:$0xf]
      %v796 = vld [vmem:[%s5 + $0x88] sm:$0xf]
      %v797 = vld [vmem:[%s5 + $0x8c] sm:$0xf]
      %v798 = vld [vmem:[%s5 + $0x90] sm:$0xf]
      %v799 = vld [vmem:[%s5 + $0x94] sm:$0xf]
      %v800 = vld [vmem:[%s5 + $0x98] sm:$0xf]
      %v801 = vld [vmem:[%s5 + $0x9c] sm:$0xf]
      %v802 = vld [vmem:[%s5 + $0xa0] sm:$0xf]
      %v803 = vld [vmem:[%s5 + $0xa4] sm:$0xf]
      %v804 = vld [vmem:[%s5 + $0xa8] sm:$0xf]
      %v805 = vld [vmem:[%s5 + $0xac] sm:$0xf]
      %v806 = vld [vmem:[%s5 + $0xb0] sm:$0xf]
      %v807 = vld [vmem:[%s5 + $0xb4] sm:$0xf]
      %v808 = vld [vmem:[%s5 + $0xb8] sm:$0xf]
      %v809 = vld [vmem:[%s5 + $0xbc] sm:$0xf]
      %v810 = vld [vmem:[%s5 + $0xc0] sm:$0xf]
      %v811 = vld [vmem:[%s5 + $0xc4] sm:$0xf]
      %v812 = vld [vmem:[%s5 + $0xc8] sm:$0xf]
      %v813 = vld [vmem:[%s5 + $0xcc] sm:$0xf]
      %v814 = vld [vmem:[%s5 + $0xd0] sm:$0xf]
      %v815 = vld [vmem:[%s5 + $0xd4] sm:$0xf]
      %v816 = vld [vmem:[%s5 + $0xd8] sm:$0xf]
      %v817 = vld [vmem:[%s5 + $0xdc] sm:$0xf]
      %v818 = vld [vmem:[%s5 + $0xe0] sm:$0xf]
      %v819 = vld [vmem:[%s5 + $0xe4] sm:$0xf]
      %v820 = vld [vmem:[%s5 + $0xe8] sm:$0xf]
      %v821 = vld [vmem:[%s5 + $0xec] sm:$0xf]
      %v822 = vld [vmem:[%s5 + $0xf0] sm:$0xf]
      %v823 = vld [vmem:[%s5 + $0xf4] sm:$0xf]
      %v824 = vld [vmem:[%s5 + $0xf8] sm:$0xf]
      %v825 = vld [vmem:[%s5 + $0xfc] sm:$0xf]
      %v826 = vld [vmem:[%s6] sm:$0x1]
      %v828 = vlaneseq
      %v829 = vshrl.u32 %v828, 7
      %v830 = vsub.s32 0, %v829
      %v831 = vrot.slane %v826, %v830
      %v897 = vunpack.c.l.b16 %v762
      %v898 = vunpack.c.l.b16 %v763
      %v899 = vunpack.c.l.b16 %v764
      %v900 = vunpack.c.l.b16 %v765
      %v901 = vunpack.c.l.b16 %v766
      %v902 = vunpack.c.l.b16 %v767
      %v903 = vunpack.c.l.b16 %v768
      %v904 = vunpack.c.l.b16 %v769
      %v905 = vunpack.c.l.b16 %v770
      %v906 = vunpack.c.l.b16 %v771
      %v907 = vunpack.c.l.b16 %v772
      %v908 = vunpack.c.l.b16 %v773
      %v909 = vunpack.c.l.b16 %v774
      %v910 = vunpack.c.l.b16 %v775
      %v911 = vunpack.c.l.b16 %v776
      %v912 = vunpack.c.l.b16 %v777
      %v913 = vunpack.c.l.b16 %v778
      %v914 = vunpack.c.l.b16 %v779
      %v915 = vunpack.c.l.b16 %v780
      %v916 = vunpack.c.l.b16 %v781
      %v917 = vunpack.c.l.b16 %v782
      %v918 = vunpack.c.l.b16 %v783
      %v919 = vunpack.c.l.b16 %v784
      %v920 = vunpack.c.l.b16 %v785
      %v921 = vunpack.c.l.b16 %v786
      %v922 = vunpack.c.l.b16 %v787
      %v923 = vunpack.c.l.b16 %v788
      %v924 = vunpack.c.l.b16 %v789
      %v925 = vunpack.c.l.b16 %v790
      %v926 = vunpack.c.l.b16 %v791
      %v927 = vunpack.c.l.b16 %v792
      %v928 = vunpack.c.l.b16 %v793
      %v929 = vunpack.c.l.b16 %v794
      %v930 = vunpack.c.l.b16 %v795
      %v931 = vunpack.c.l.b16 %v796
      %v932 = vunpack.c.l.b16 %v797
      %v933 = vunpack.c.l.b16 %v798
      %v934 = vunpack.c.l.b16 %v799
      %v935 = vunpack.c.l.b16 %v800
      %v936 = vunpack.c.l.b16 %v801
      %v937 = vunpack.c.l.b16 %v802
      %v938 = vunpack.c.l.b16 %v803
      %v939 = vunpack.c.l.b16 %v804
      %v940 = vunpack.c.l.b16 %v805
      %v941 = vunpack.c.l.b16 %v806
      %v942 = vunpack.c.l.b16 %v807
      %v943 = vunpack.c.l.b16 %v808
      %v944 = vunpack.c.l.b16 %v809
      %v945 = vunpack.c.l.b16 %v810
      %v946 = vunpack.c.l.b16 %v811
      %v947 = vunpack.c.l.b16 %v812
      %v948 = vunpack.c.l.b16 %v813
      %v949 = vunpack.c.l.b16 %v814
      %v950 = vunpack.c.l.b16 %v815
      %v951 = vunpack.c.l.b16 %v816
      %v952 = vunpack.c.l.b16 %v817
      %v953 = vunpack.c.l.b16 %v818
      %v954 = vunpack.c.l.b16 %v819
      %v955 = vunpack.c.l.b16 %v820
      %v956 = vunpack.c.l.b16 %v821
      %v957 = vunpack.c.l.b16 %v822
      %v958 = vunpack.c.l.b16 %v823
      %v959 = vunpack.c.l.b16 %v824
      %v960 = vunpack.c.l.b16 %v825
      %v961 = vpack.c.b16 %v898, %v897
      %v962 = vpack.c.b16 %v900, %v899
      %v963 = vpack.c.b16 %v902, %v901
      %v964 = vpack.c.b16 %v904, %v903
      %v965 = vpack.c.b16 %v906, %v905
      %v966 = vpack.c.b16 %v908, %v907
      %v967 = vpack.c.b16 %v910, %v909
      %v968 = vpack.c.b16 %v912, %v911
      %v969 = vpack.c.b16 %v914, %v913
      %v970 = vpack.c.b16 %v916, %v915
      %v971 = vpack.c.b16 %v918, %v917
      %v972 = vpack.c.b16 %v920, %v919
      %v973 = vpack.c.b16 %v922, %v921
      %v974 = vpack.c.b16 %v924, %v923
      %v975 = vpack.c.b16 %v926, %v925
      %v976 = vpack.c.b16 %v928, %v927
      %v977 = vpack.c.b16 %v930, %v929
      %v978 = vpack.c.b16 %v932, %v931
      %v979 = vpack.c.b16 %v934, %v933
      %v980 = vpack.c.b16 %v936, %v935
      %v981 = vpack.c.b16 %v938, %v937
      %v982 = vpack.c.b16 %v940, %v939
      %v983 = vpack.c.b16 %v942, %v941
      %v984 = vpack.c.b16 %v944, %v943
      %v985 = vpack.c.b16 %v946, %v945
      %v986 = vpack.c.b16 %v948, %v947
      %v987 = vpack.c.b16 %v950, %v949
      %v988 = vpack.c.b16 %v952, %v951
      %v989 = vpack.c.b16 %v954, %v953
      %v990 = vpack.c.b16 %v956, %v955
      %v991 = vpack.c.b16 %v958, %v957
      %v992 = vpack.c.b16 %v960, %v959
      %1025 = vmatprep.subr.bf16.mxu0 0
      %1026 = vmatpush1.bf16.msra.mxu0 %v968
      %1027 = vmatprep.subr.bf16.mxu0 0
      %1028 = vmatpush1.bf16.msra.mxu0 %v967
      %1029 = vmatprep.subr.bf16.mxu0 0
      %1030 = vmatpush1.bf16.msra.mxu0 %v966
      %1031 = vmatprep.subr.bf16.mxu0 0
      %1032 = vmatpush1.bf16.msra.mxu0 %v965
      %1033 = vmatprep.subr.bf16.mxu0 0
      %1034 = vmatpush1.bf16.msra.mxu0 %v964
      %1035 = vmatprep.subr.bf16.mxu0 0
      %1036 = vmatpush1.bf16.msra.mxu0 %v963
      %1037 = vmatprep.subr.bf16.mxu0 0
      %1038 = vmatpush1.bf16.msra.mxu0 %v962
      %1039 = vmatprep.subr.bf16.mxu0 0
      %1040 = vmatpush1.bf16.msra.mxu0 %v961
      %1041 = vmatprep.subr.bf16.mxu0 0
      %1042 = vmatpush2.bf16.msra.mxu0 %v976
      %1043 = vmatprep.subr.bf16.mxu0 0
      %1044 = vmatpush2.bf16.msra.mxu0 %v975
      %1045 = vmatprep.subr.bf16.mxu0 0
      %1046 = vmatpush2.bf16.msra.mxu0 %v974
      %1047 = vmatprep.subr.bf16.mxu0 0
      %1048 = vmatpush2.bf16.msra.mxu0 %v973
      %1049 = vmatprep.subr.bf16.mxu0 0
      %1050 = vmatpush2.bf16.msra.mxu0 %v972
      %1051 = vmatprep.subr.bf16.mxu0 0
      %1052 = vmatpush2.bf16.msra.mxu0 %v971
      %1053 = vmatprep.subr.bf16.mxu0 0
      %1054 = vmatpush2.bf16.msra.mxu0 %v970
      %1055 = vmatprep.subr.bf16.mxu0 0
      %1056 = vmatpush2.bf16.msra.mxu0 %v969
      %1057 = vmatprep.mubr.bf16.mxu0 %v755
      %1058 = vmatmul.mubr.bf16.gmra.mxu0 %v754
      %v1059 = vpop.f32.mrf.mxu0
      %v1060 = vadd.f32 %v831, %v1059
      %v1061 = vpop.f32.mrf.mxu0
      %v1062 = vpop.f32.mrf.mxu0
      %v1063 = vadd.f32 %v831, %v1062
      %v1064 = vpop.f32.mrf.mxu0
      %1065 = vmatprep.mubr.bf16.mxu0 %v759
      %1066 = vmatmul.mubr.bf16.gmra.mxu0 %v758
      %v1067 = vpop.f32.mrf.mxu0
      %v1068 = vadd.f32 %v831, %v1067
      %v1069 = vpop.f32.mrf.mxu0
      %v1070 = vpop.f32.mrf.mxu0
      %v1071 = vpop.f32.mrf.mxu0
      %1072 = vdwg.mxu0
      %1073 = vmatprep.subr.bf16.mxu0 0
      %1074 = vmatpush1.bf16.msra.mxu0 %v984
      %1075 = vmatprep.subr.bf16.mxu0 0
      %1076 = vmatpush1.bf16.msra.mxu0 %v983
      %1077 = vmatprep.subr.bf16.mxu0 0
      %1078 = vmatpush1.bf16.msra.mxu0 %v982
      %1079 = vmatprep.subr.bf16.mxu0 0
      %1080 = vmatpush1.bf16.msra.mxu0 %v981
      %1081 = vmatprep.subr.bf16.mxu0 0
      %1082 = vmatpush1.bf16.msra.mxu0 %v980
      %1083 = vmatprep.subr.bf16.mxu0 0
      %1084 = vmatpush1.bf16.msra.mxu0 %v979
      %1085 = vmatprep.subr.bf16.mxu0 0
      %1086 = vmatpush1.bf16.msra.mxu0 %v978
      %1087 = vmatprep.subr.bf16.mxu0 0
      %1088 = vmatpush1.bf16.msra.mxu0 %v977
      %1089 = vmatprep.subr.bf16.mxu0 0
      %1090 = vmatpush2.bf16.msra.mxu0 %v992
      %1091 = vmatprep.subr.bf16.mxu0 0
      %1092 = vmatpush2.bf16.msra.mxu0 %v991
      %1093 = vmatprep.subr.bf16.mxu0 0
      %1094 = vmatpush2.bf16.msra.mxu0 %v990
      %1095 = vmatprep.subr.bf16.mxu0 0
      %1096 = vmatpush2.bf16.msra.mxu0 %v989
      %1097 = vmatprep.subr.bf16.mxu0 0
      %1098 = vmatpush2.bf16.msra.mxu0 %v988
      %1099 = vmatprep.subr.bf16.mxu0 0
      %1100 = vmatpush2.bf16.msra.mxu0 %v987
      %1101 = vmatprep.subr.bf16.mxu0 0
      %1102 = vmatpush2.bf16.msra.mxu0 %v986
      %1103 = vmatprep.subr.bf16.mxu0 0
      %1104 = vmatpush2.bf16.msra.mxu0 %v985
      %1105 = vmatprep.mubr.bf16.mxu0 %v757
      %1106 = vmatmul.mubr.bf16.gmra.mxu0 %v756
      %v1107 = vpop.f32.mrf.mxu0
      %v1108 = vadd.f32 %v1060, %v1107
      %v1109 = vpop.f32.mrf.mxu0
      %v1110 = vpop.f32.mrf.mxu0
      %v1111 = vadd.f32 %v1063, %v1110
      %v1112 = vpop.f32.mrf.mxu0
      %1113 = vmatprep.mubr.bf16.mxu0 %v761
      %1114 = vmatmul.mubr.bf16.gmra.mxu0 %v760
      %v1115 = vpop.f32.mrf.mxu0
      %v1116 = vadd.f32 %v1068, %v1115
      %v1117 = vpop.f32.mrf.mxu0
      %v1118 = vpop.f32.mrf.mxu0
      %v1119 = vpop.f32.mrf.mxu0
      %1120 = vdwg.mxu0
      %v1121 = vadd.f32 %v283, %v1108
      %v1122 = vadd.f32 %v284, %v1111
      %v1123 = vadd.f32 %v285, %v1116
      %1124 = vst [vmem:[%s280] sm:$0xff] %v1121
      %1125 = vst [vmem:[%s280 + $0x8] sm:$0xff] %v1122
      %1126 = vst [vmem:[%s280 + $0x10] sm:$0xff] %v1123
      %s1127 = smul.u32 3, %s18
      %p1128 = scmp.lt.s32.totalorder %s1127, 5
      %s1129 = scalar_select %p1128, %s1127, 5
      %s1130 = smul.addr %s1129, 8
      %s1131 = scalar_lea.vmem %s7, %s1130
      // Predicated region
      $region49: #{visual_transformer_forward.13} parent=47 // pred_check
        %p1132 = pneg %p188
      $region50: #{visual_transformer_forward.13} parent=47 // pred_check_branch
        %1134 = sbr.rel (%p1132) target = $region52
      $region51: #{visual_transformer_forward.13} parent=47 // pred_region
        %s1135 = smul.u32 3, %s18
      $region52: #{visual_transformer_forward.13} parent=47 // pred_fallthru
        _
    $region48: #{visual_transformer_forward.13} parent=5 // pred_fallthru
      _
    %p1136 = scmp.le.s32.totalorder 2, %s13
    // Predicated region
    $region53: #{visual_transformer_forward.13} parent=5 // pred_check
      %p1137 = pneg %p1136
    $region54: #{visual_transformer_forward.13} parent=5 // pred_check_branch
      %1139 = sbr.rel (%p1137) target = $region56
    $region55: #{visual_transformer_forward.13} parent=5 // pred_region
      %s1140 = ssub.s32 %s13, 2
      // Predicated region
      $region57: #{visual_transformer_forward.13} parent=55 // pred_check
        %p1141 = pneg %p194
      $region58: #{visual_transformer_forward.13} parent=55 // pred_check_branch
        %1143 = sbr.rel (%p1141) target = $region60
      $region59: #{visual_transformer_forward.13} parent=55 // pred_region
        %s1144 = smul.u32 3, %s19
        %p1145 = scmp.lt.s32.totalorder %s1144, 5
        %s1146 = scalar_select %p1145, %s1144, 5
        %s1147 = smul.addr %s1146, 8
        %s1148 = scalar_lea.vmem %s7, %s1147
      $region60: #{visual_transformer_forward.13} parent=55 // pred_fallthru
        _
    $region56: #{visual_transformer_forward.13} parent=5 // pred_fallthru
      _
  $region6: #{visual_transformer_forward.13} parent=0 // loop_footer
    %s17 = sadd.s32 1, %s13
  $region7: #{visual_transformer_forward.13} parent=0 // loop_footer_branch
    %12 = sbr.rel target = $region3
  $region8: #{visual_transformer_forward.13} parent=0 // loop_exit
    _

</llo_original>
